<compile_context>
chip_gen: v7x
topology: tpu7x:2x2x1
jax: 0.10.0
libtpu: 0.0.40
codegen_flags: <defaults>
</compile_context>

<pallas_src>
import functools
import math

import jax
import jax.numpy as jnp
from jax.experimental import pallas as pl
from jax.experimental.pallas import tpu as pltpu


# ----------------------------------------------------------------------------
# helpers used inside the kernel
# ----------------------------------------------------------------------------
def _silu(x):
    return x * jax.nn.sigmoid(x)


def _layernorm(x, w, b, eps):
    mean = jnp.mean(x, axis=-1, keepdims=True)
    var = jnp.mean(jnp.square(x - mean), axis=-1, keepdims=True)
    return (x - mean) * jax.lax.rsqrt(var + eps) * w + b


def _bf(x):
    return x.astype(jnp.bfloat16)


def _fori(lo, hi, body, init, unroll):
    # fori_loop(..., unroll=) exists on current JAX; fall back gracefully.
    try:
        return jax.lax.fori_loop(lo, hi, body, init, unroll=unroll)
    except TypeError:
        return jax.lax.fori_loop(lo, hi, body, init)


# ----------------------------------------------------------------------------
# Pallas kernel: one Mega encoder layer (MEGA attention + NFFN, postnorm)
# for a single batch element.  Grid iterates (in parallel) over batch.
# ----------------------------------------------------------------------------
def _mega_layer_kernel(x_ref, omega_ref,
                       qf_ref, bf_ref, gf_ref, qb_ref, bb_ref, gb_ref,
                       vw_ref, vb_ref,
                       uw_ref, ub_ref, zw_ref, zb_ref, rw_ref, rb_ref,
                       hxw_ref, hxb_ref,
                       qg_ref, qbt_ref, kg_ref, kbt_ref, bias_ref,
                       hw_ref, hb_ref, anw_ref, anb_ref,
                       f1w_ref, f1b_ref, f2w_ref, f2b_ref, fnw_ref, fnb_ref,
                       out_ref, emaf_ref, emab_ref, *, T, eps):
    x = x_ref[0]                                   # (T, D) f32
    residual = x
    x_bf = _bf(x)

    # ---- MultiHeadEMA: bidirectional damped EMA as rank-N linear scans -----
    # forward : hf[t] = qf*hf[t-1] + bf*x[t]     ; y_f[t,d] = sum_n gf[n,d]*hf[t,n,d]
    # backward: hb[t] = qb*hb[t+1] + bb*x[t]     ; y_b[t,d] = sum_n gb[n,d]*hb[t,n,d]
    # (diagonal term t == s is counted by BOTH scans, matching the fairseq
    #  bidirectional kernel-padding scheme.)
    qf = qf_ref[...]; bfw = bf_ref[...]; gf = gf_ref[...]        # (N, D)
    qb = qb_ref[...]; bbw = bb_ref[...]; gb = gb_ref[...]        # (N, D)

    def ema_step(i, carry):
        hf, hb = carry
        t_b = T - 1 - i
        xf = x_ref[0, pl.ds(i, 1), :]                            # (1, D)
        xb = x_ref[0, pl.ds(t_b, 1), :]                          # (1, D)
        hf = qf * hf + bfw * xf                                  # (N, D)
        hb = qb * hb + bbw * xb                                  # (N, D)
        emaf_ref[pl.ds(i, 1), :] = jnp.sum(gf * hf, axis=0, keepdims=True)
        emab_ref[pl.ds(t_b, 1), :] = jnp.sum(gb * hb, axis=0, keepdims=True)
        return hf, hb

    unroll = T if T <= 32 else 8
    _fori(0, T, ema_step, (jnp.zeros_like(qf), jnp.zeros_like(qb)), unroll)

    mx = _silu(emaf_ref[...] + emab_ref[...] + x * omega_ref[...])   # (T, D) f32
    mx_bf = _bf(mx)

    # ---- MovingAverageGatedAttention (prenorm=False) ------------------------
    v = _silu(jnp.dot(x_bf, vw_ref[...],
                      preferred_element_type=jnp.float32) + vb_ref[...])   # (T, H)

    # mx_proj, split into lane-aligned blocks (u | z | r | hx) in the wrapper.
    u = jax.nn.sigmoid(jnp.dot(mx_bf, uw_ref[...],
                               preferred_element_type=jnp.float32) + ub_ref[...])
    z = _silu(jnp.dot(mx_bf, zw_ref[...],
                      preferred_element_type=jnp.float32) + zb_ref[...])    # (T, Z)
    r = _silu(jnp.dot(mx_bf, rw_ref[...],
                      preferred_element_type=jnp.float32) + rb_ref[...])    # (T, H)
    hx = jnp.dot(mx_bf, hxw_ref[...],
                 preferred_element_type=jnp.float32) + hxb_ref[...]         # (T, D)

    # attention scale (Z**-0.5) is pre-folded into qg/qbt.
    q = z * qg_ref[...] + qbt_ref[...]                                      # (T, Z)
    k = z * kg_ref[...] + kbt_ref[...]                                      # (T, Z)

    # softmax attention with simple relative position bias
    # TODO(synk): for very long T, tile over KV with an online-softmax
    # accumulator instead of materializing the full (T, T) matrices.
    qk = jax.lax.dot_general(_bf(q), _bf(k), (((1,), (1,)), ((), ())),
                             preferred_element_type=jnp.float32)            # (T, T)
    qk = qk + bias_ref[...]
    qk = qk - jnp.max(qk, axis=-1, keepdims=True)
    p = jnp.exp(qk)
    attn = p * pl.reciprocal(jnp.sum(p, axis=-1, keepdims=True), approx=True)

    h = jnp.dot(_bf(attn), _bf(v), preferred_element_type=jnp.float32)      # (T, H)
    h = jnp.dot(_bf(h * r), hw_ref[...],
                preferred_element_type=jnp.float32) + hb_ref[...]           # (T, D)
    h = _silu(hx + h)

    out = residual + u * (h - residual)                      # torch.addcmul
    out = _layernorm(out, anw_ref[...], anb_ref[...], eps)   # postnorm

    # ---- NormalizedFeedForwardNetwork (prenorm=False) ------------------------
    hh = _silu(jnp.dot(_bf(out), f1w_ref[...],
                       preferred_element_type=jnp.float32) + f1b_ref[...])
    hh = jnp.dot(_bf(hh), f2w_ref[...],
                 preferred_element_type=jnp.float32) + f2b_ref[...]
    y = _layernorm(hh + out, fnw_ref[...], fnb_ref[...], eps)

    # TODO(synk): D < 128 makes this a masked (non lane-dense) store; padding D
    # to a multiple of 128 in the kernel layout would be the next store lever.
    out_ref[0] = y.astype(out_ref.dtype)


# ----------------------------------------------------------------------------
# JAX glue: one-time parameter transforms (rank-N EMA factors, mx_proj split,
# attention-scale folding, bf16 weight casts) and the relative position bias.
# ----------------------------------------------------------------------------
def _prep_layer_params(lp, Z, H):
    delta = lp['ema_delta'][..., 0]                  # (2D, N)
    alpha = lp['ema_alpha'][..., 0]
    beta = lp['ema_beta'][..., 0]
    gamma = lp['ema_gamma']                          # (2D, N)
    p = jax.nn.sigmoid(delta)
    q = 1.0 - p * jax.nn.sigmoid(alpha)              # decay
    b = p * beta                                     # input scale
    N = gamma.shape[1]
    g = gamma * math.sqrt(1.0 / N)                   # output weights
    D = q.shape[0] // 2

    def split_nd(a):                                 # (2D, N) -> fwd/bwd, each (N, D)
        return a[:D].T.astype(jnp.float32), a[D:].T.astype(jnp.float32)

    qf, qb = split_nd(q)
    bf_, bb = split_nd(b)
    gf, gb = split_nd(g)

    mx_w, mx_b = lp['mx_w'], lp['mx_b']
    # column order of mx_proj output: [u (D) | z (Z) | r (H) | hx (D)]
    uw, zw, rw, hxw = (mx_w[:, :D], mx_w[:, D:D + Z],
                       mx_w[:, D + Z:D + Z + H], mx_w[:, D + Z + H:])
    ub, zb, rb, hxb = (mx_b[:D], mx_b[D:D + Z],
                       mx_b[D + Z:D + Z + H], mx_b[D + Z + H:])

    scale = Z ** -0.5
    qg = (lp['qk_gamma'][0:1] * scale).astype(jnp.float32)
    qbt = (lp['qk_beta'][0:1] * scale).astype(jnp.float32)
    kg = lp['qk_gamma'][1:2].astype(jnp.float32)
    kbt = lp['qk_beta'][1:2].astype(jnp.float32)

    row = lambda v: v.reshape(1, -1).astype(jnp.float32)
    w16 = lambda w: w.astype(jnp.bfloat16)

    return dict(
        omega=row(lp['ema_omega']),
        qf=qf, bf=bf_, gf=gf, qb=qb, bb=bb, gb=gb,
        vw=w16(lp['v_w']), vb=row(lp['v_b']),
        uw=w16(uw), ub=row(ub), zw=w16(zw), zb=row(zb),
        rw=w16(rw), rb=row(rb), hxw=w16(hxw), hxb=row(hxb),
        qg=qg, qbt=qbt, kg=kg, kbt=kbt,
        rel_pos=lp['rel_pos'],
        hw=w16(lp['h_w']), hb=row(lp['h_b']),
        anw=row(lp['attn_norm_w']), anb=row(lp['attn_norm_b']),
        f1w=w16(lp['fc1_w']), f1b=row(lp['fc1_b']),
        f2w=w16(lp['fc2_w']), f2b=row(lp['fc2_b']),
        fnw=row(lp['ffn_norm_w']), fnb=row(lp['ffn_norm_b']),
    )


def _build_rel_bias(rel_w, T, max_pos):
    # SimpleRelativePositionalBias: bias[i, j] = w[max_pos - 1 + (j - i)]
    # TODO(synk): could be gathered in-kernel from the (2*max_pos-1,) vector;
    # kept in the wrapper for lowering safety (T^2 f32 is small here).
    idx = (max_pos - 1) + (jnp.arange(T)[None, :] - jnp.arange(T)[:, None])
    return rel_w[idx].astype(jnp.float32)                                 # (T, T)


def _full_spec(shape):
    return pl.BlockSpec(shape, lambda b: (0,) * len(shape))


def _vmem_limit_bytes():
    try:
        cap = pltpu.get_tpu_info().vmem_capacity_bytes
    except Exception:
        cap = 64 * 1024 * 1024
    return int(cap) * 3 // 4


def mega_layer_pallas(x, lp, *, Z, H, max_pos, eps=1e-5):
    B, T, D = x.shape
    pp = _prep_layer_params(lp, Z, H)
    bias = _build_rel_bias(pp['rel_pos'], T, max_pos)

    kernel = functools.partial(_mega_layer_kernel, T=T, eps=eps)
    operands = (
        x.astype(jnp.float32), pp['omega'],
        pp['qf'], pp['bf'], pp['gf'], pp['qb'], pp['bb'], pp['gb'],
        pp['vw'], pp['vb'],
        pp['uw'], pp['ub'], pp['zw'], pp['zb'], pp['rw'], pp['rb'],
        pp['hxw'], pp['hxb'],
        pp['qg'], pp['qbt'], pp['kg'], pp['kbt'], bias,
        pp['hw'], pp['hb'], pp['anw'], pp['anb'],
        pp['f1w'], pp['f1b'], pp['f2w'], pp['f2b'], pp['fnw'], pp['fnb'],
    )
    in_specs = [pl.BlockSpec((1, T, D), lambda b: (b, 0, 0))]
    # Constant operands keep index (0, ...) across the batch grid, so Pallas
    # DMAs them once and reuses the VMEM copy; with bf16 weights and no dense
    # Toeplitz this fits comfortably under the VMEM limit.
    in_specs += [_full_spec(op.shape) for op in operands[1:]]
    return pl.pallas_call(
        kernel,
        out_shape=jax.ShapeDtypeStruct((B, T, D), jnp.float32),
        grid=(B,),
        in_specs=in_specs,
        out_specs=pl.BlockSpec((1, T, D), lambda b: (b, 0, 0)),
        scratch_shapes=[pltpu.VMEM((T, D), jnp.float32),   # forward EMA
                        pltpu.VMEM((T, D), jnp.float32)],  # backward EMA
        compiler_params=pltpu.CompilerParams(
            dimension_semantics=("parallel",),
            vmem_limit_bytes=_vmem_limit_bytes()),
    )(*operands)


# ----------------------------------------------------------------------------
# Full encoder forward (mirrors MegaECGRawEncoder.forward)
# ----------------------------------------------------------------------------
def mega_ecgraw_encoder_forward(tokens, src_lengths, params, cfg,
                                last_state_only=False):
    B, T = tokens.shape
    D = cfg['embedding_dim']
    # RealNumberEmbedding: x = tokens.unsqueeze(-1) * weight * D**-0.5
    x = tokens[..., None].astype(jnp.float32) * params['embed_weight'] * (D ** -0.5)
    # embedding_dropout: p = 0 -> identity
    # TODO(synk): layerdrop / chunk_size>0 chunking / 'rotary' rel_pos_bias and
    # padding masks not implemented (module defaults: layerdrop=0, chunk=-1,
    # 'simple' bias, padding_mask=None).
    inner_states = []
    if not last_state_only:
        inner_states.append(jnp.transpose(x, (1, 0, 2)))          # T x B x C
    for lp in params['layers']:
        x = mega_layer_pallas(x, lp, Z=cfg['z_dim'], H=cfg['hidden_dim'],
                              max_pos=cfg['max_seq_len'])
        if not last_state_only:
            inner_states.append(jnp.transpose(x, (1, 0, 2)))
    # TODO(synk): layers are separate pallas_calls; stacking per-layer weights
    # under a leading 'arbitrary' layer grid axis would cut inter-layer HBM
    # round trips and call overhead.
    # final_norm is None because normalize_before=False
    if cfg['sen_rep_type'] == 'mp':
        sentence_rep = jnp.sum(jnp.transpose(x, (1, 0, 2)), axis=0) / src_lengths[:, None]
    else:  # 'cls'
        sentence_rep = x[:, 0, :]                                  # == x_TBC[0, :, :]
    if last_state_only:
        inner_states = [jnp.transpose(x, (1, 0, 2))]
    return inner_states, sentence_rep


# ----------------------------------------------------------------------------
# deterministic synthetic parameter initialization
# ----------------------------------------------------------------------------
def init_params(key, cfg):
    D, H = cfg['embedding_dim'], cfg['hidden_dim']
    F_, Z, N = cfg['ffn_hidden_dim'], cfg['z_dim'], cfg['n_dim']
    L, max_pos = cfg['num_encoder_layers'], cfg['max_seq_len']
    keys = jax.random.split(key, L + 1)

    def nrm(k, shape, std=0.1):
        return jax.random.normal(k, shape, dtype=jnp.float32) * std

    params = {'embed_weight': nrm(keys[0], (D,), 1.0)}
    layers = []
    for li in range(L):
        k = jax.random.split(keys[li + 1], 12)
        layers.append(dict(
            ema_delta=nrm(k[0], (2 * D, N, 1), 0.2),
            ema_alpha=nrm(k[1], (2 * D, N, 1), 0.2),
            ema_beta=nrm(k[2], (2 * D, N, 1), 0.2),
            ema_gamma=nrm(k[3], (2 * D, N), 1.0),
            ema_omega=nrm(k[4], (D,), 1.0),
            v_w=nrm(k[5], (D, H)), v_b=jnp.zeros((H,), jnp.float32),
            mx_w=nrm(k[6], (D, Z + H + 2 * D)),
            mx_b=jnp.zeros((Z + H + 2 * D,), jnp.float32),
            h_w=nrm(k[7], (H, D)), h_b=jnp.zeros((D,), jnp.float32),
            qk_gamma=nrm(k[8], (2, Z), 0.25),
            qk_beta=jnp.zeros((2, Z), jnp.float32),
            rel_pos=nrm(k[9], (2 * max_pos - 1,)),
            attn_norm_w=jnp.ones((D,), jnp.float32),
            attn_norm_b=jnp.zeros((D,), jnp.float32),
            fc1_w=nrm(k[10], (D, F_)), fc1_b=jnp.zeros((F_,), jnp.float32),
            fc2_w=nrm(k[11], (F_, D)), fc2_b=jnp.zeros((D,), jnp.float32),
            ffn_norm_w=jnp.ones((D,), jnp.float32),
            ffn_norm_b=jnp.zeros((D,), jnp.float32),
        ))
    params['layers'] = layers
    return params


if __name__ == "__main__":
    cfg = dict(num_encoder_layers=2, embedding_dim=32, hidden_dim=64,
               ffn_hidden_dim=64, z_dim=16, n_dim=4, max_seq_len=64,
               sen_rep_type='cls')
    key = jax.random.PRNGKey(0)
    kp, kt = jax.random.split(key)
    params = init_params(kp, cfg)

    B, T = 2, 16
    tokens = jax.random.normal(kt, (B, T), dtype=jnp.float32)       # raw ECG samples
    src_lengths = jnp.full((B,), T, dtype=jnp.float32)

    inner_states, sentence_rep = mega_ecgraw_encoder_forward(
        tokens, src_lengths, params, cfg)
    sentence_rep = jax.block_until_ready(sentence_rep)
    inner_states = [jax.block_until_ready(s) for s in inner_states]

    assert sentence_rep.shape == (B, cfg['embedding_dim'])
    assert len(inner_states) == cfg['num_encoder_layers'] + 1
    assert all(s.shape == (T, B, cfg['embedding_dim']) for s in inner_states)
    assert bool(jnp.isfinite(sentence_rep).all())
    assert all(bool(jnp.isfinite(s).all()) for s in inner_states)
    print("KERNEL_OK")
</pallas_src>

<mosaic_0001>
module attributes {stable_mosaic.version = 11 : i64} {
  func.func @_mega_layer_kernel(%arg0: i32, %arg1: memref<1x16x32xf32, #tpu.memory_space<vmem>>, %arg2: memref<1x32xf32, #tpu.memory_space<vmem>>, %arg3: memref<4x32xf32, #tpu.memory_space<vmem>>, %arg4: memref<4x32xf32, #tpu.memory_space<vmem>>, %arg5: memref<4x32xf32, #tpu.memory_space<vmem>>, %arg6: memref<4x32xf32, #tpu.memory_space<vmem>>, %arg7: memref<4x32xf32, #tpu.memory_space<vmem>>, %arg8: memref<4x32xf32, #tpu.memory_space<vmem>>, %arg9: memref<32x64xbf16, #tpu.memory_space<vmem>>, %arg10: memref<1x64xf32, #tpu.memory_space<vmem>>, %arg11: memref<32x32xbf16, #tpu.memory_space<vmem>>, %arg12: memref<1x32xf32, #tpu.memory_space<vmem>>, %arg13: memref<32x16xbf16, #tpu.memory_space<vmem>>, %arg14: memref<1x16xf32, #tpu.memory_space<vmem>>, %arg15: memref<32x64xbf16, #tpu.memory_space<vmem>>, %arg16: memref<1x64xf32, #tpu.memory_space<vmem>>, %arg17: memref<32x32xbf16, #tpu.memory_space<vmem>>, %arg18: memref<1x32xf32, #tpu.memory_space<vmem>>, %arg19: memref<1x16xf32, #tpu.memory_space<vmem>>, %arg20: memref<1x16xf32, #tpu.memory_space<vmem>>, %arg21: memref<1x16xf32, #tpu.memory_space<vmem>>, %arg22: memref<1x16xf32, #tpu.memory_space<vmem>>, %arg23: memref<16x16xf32, #tpu.memory_space<vmem>>, %arg24: memref<64x32xbf16, #tpu.memory_space<vmem>>, %arg25: memref<1x32xf32, #tpu.memory_space<vmem>>, %arg26: memref<1x32xf32, #tpu.memory_space<vmem>>, %arg27: memref<1x32xf32, #tpu.memory_space<vmem>>, %arg28: memref<32x64xbf16, #tpu.memory_space<vmem>>, %arg29: memref<1x64xf32, #tpu.memory_space<vmem>>, %arg30: memref<64x32xbf16, #tpu.memory_space<vmem>>, %arg31: memref<1x32xf32, #tpu.memory_space<vmem>>, %arg32: memref<1x32xf32, #tpu.memory_space<vmem>>, %arg33: memref<1x32xf32, #tpu.memory_space<vmem>>, %arg34: memref<1x16x32xf32, #tpu.memory_space<vmem>>, %arg35: memref<16x32xf32, #tpu.memory_space<vmem>>, %arg36: memref<16x32xf32, #tpu.memory_space<vmem>>) attributes {dimension_semantics = [#tpu.dimension_semantics<parallel>], iteration_bounds = array<i64: 2>, scalar_prefetch = 0 : i64, scratch_operands = 2 : i64, tpu.core_type = #tpu.core_type<tc>, window_params = [{transform_indices = @transform_0, window_bounds = array<i64: 1, 16, 32>}, {pipeline_mode = #tpu.pipeline_mode<synchronous>, transform_indices = @transform_1, window_bounds = array<i64: 1, 32>}, {pipeline_mode = #tpu.pipeline_mode<synchronous>, transform_indices = @transform_2, window_bounds = array<i64: 4, 32>}, {pipeline_mode = #tpu.pipeline_mode<synchronous>, transform_indices = @transform_3, window_bounds = array<i64: 4, 32>}, {pipeline_mode = #tpu.pipeline_mode<synchronous>, transform_indices = @transform_4, window_bounds = array<i64: 4, 32>}, {pipeline_mode = #tpu.pipeline_mode<synchronous>, transform_indices = @transform_5, window_bounds = array<i64: 4, 32>}, {pipeline_mode = #tpu.pipeline_mode<synchronous>, transform_indices = @transform_6, window_bounds = array<i64: 4, 32>}, {pipeline_mode = #tpu.pipeline_mode<synchronous>, transform_indices = @transform_7, window_bounds = array<i64: 4, 32>}, {pipeline_mode = #tpu.pipeline_mode<synchronous>, transform_indices = @transform_8, window_bounds = array<i64: 32, 64>}, {pipeline_mode = #tpu.pipeline_mode<synchronous>, transform_indices = @transform_9, window_bounds = array<i64: 1, 64>}, {pipeline_mode = #tpu.pipeline_mode<synchronous>, transform_indices = @transform_10, window_bounds = array<i64: 32, 32>}, {pipeline_mode = #tpu.pipeline_mode<synchronous>, transform_indices = @transform_11, window_bounds = array<i64: 1, 32>}, {pipeline_mode = #tpu.pipeline_mode<synchronous>, transform_indices = @transform_12, window_bounds = array<i64: 32, 16>}, {pipeline_mode = #tpu.pipeline_mode<synchronous>, transform_indices = @transform_13, window_bounds = array<i64: 1, 16>}, {pipeline_mode = #tpu.pipeline_mode<synchronous>, transform_indices = @transform_14, window_bounds = array<i64: 32, 64>}, {pipeline_mode = #tpu.pipeline_mode<synchronous>, transform_indices = @transform_15, window_bounds = array<i64: 1, 64>}, {pipeline_mode = #tpu.pipeline_mode<synchronous>, transform_indices = @transform_16, window_bounds = array<i64: 32, 32>}, {pipeline_mode = #tpu.pipeline_mode<synchronous>, transform_indices = @transform_17, window_bounds = array<i64: 1, 32>}, {pipeline_mode = #tpu.pipeline_mode<synchronous>, transform_indices = @transform_18, window_bounds = array<i64: 1, 16>}, {pipeline_mode = #tpu.pipeline_mode<synchronous>, transform_indices = @transform_19, window_bounds = array<i64: 1, 16>}, {pipeline_mode = #tpu.pipeline_mode<synchronous>, transform_indices = @transform_20, window_bounds = array<i64: 1, 16>}, {pipeline_mode = #tpu.pipeline_mode<synchronous>, transform_indices = @transform_21, window_bounds = array<i64: 1, 16>}, {pipeline_mode = #tpu.pipeline_mode<synchronous>, transform_indices = @transform_22, window_bounds = array<i64: 16, 16>}, {pipeline_mode = #tpu.pipeline_mode<synchronous>, transform_indices = @transform_23, window_bounds = array<i64: 64, 32>}, {pipeline_mode = #tpu.pipeline_mode<synchronous>, transform_indices = @transform_24, window_bounds = array<i64: 1, 32>}, {pipeline_mode = #tpu.pipeline_mode<synchronous>, transform_indices = @transform_25, window_bounds = array<i64: 1, 32>}, {pipeline_mode = #tpu.pipeline_mode<synchronous>, transform_indices = @transform_26, window_bounds = array<i64: 1, 32>}, {pipeline_mode = #tpu.pipeline_mode<synchronous>, transform_indices = @transform_27, window_bounds = array<i64: 32, 64>}, {pipeline_mode = #tpu.pipeline_mode<synchronous>, transform_indices = @transform_28, window_bounds = array<i64: 1, 64>}, {pipeline_mode = #tpu.pipeline_mode<synchronous>, transform_indices = @transform_29, window_bounds = array<i64: 64, 32>}, {pipeline_mode = #tpu.pipeline_mode<synchronous>, transform_indices = @transform_30, window_bounds = array<i64: 1, 32>}, {pipeline_mode = #tpu.pipeline_mode<synchronous>, transform_indices = @transform_31, window_bounds = array<i64: 1, 32>}, {pipeline_mode = #tpu.pipeline_mode<synchronous>, transform_indices = @transform_32, window_bounds = array<i64: 1, 32>}, {transform_indices = @transform_33, window_bounds = array<i64: 1, 16, 32>}]} {
    %c0 = arith.constant 0 : index
    %c0_0 = arith.constant 0 : index
    %c0_1 = arith.constant 0 : index
    %0 = vector.load %arg1[%c0, %c0_0, %c0_1] : memref<1x16x32xf32, #tpu.memory_space<vmem>>, vector<1x16x32xf32>
    %1 = vector.shape_cast %0 : vector<1x16x32xf32> to vector<16x32xf32>
    %2 = arith.truncf %1 : vector<16x32xf32> to vector<16x32xbf16>
    %c0_2 = arith.constant 0 : index
    %c0_3 = arith.constant 0 : index
    %3 = vector.load %arg3[%c0_2, %c0_3] : memref<4x32xf32, #tpu.memory_space<vmem>>, vector<4x32xf32>
    %c0_4 = arith.constant 0 : index
    %c0_5 = arith.constant 0 : index
    %4 = vector.load %arg4[%c0_4, %c0_5] : memref<4x32xf32, #tpu.memory_space<vmem>>, vector<4x32xf32>
    %c0_6 = arith.constant 0 : index
    %c0_7 = arith.constant 0 : index
    %5 = vector.load %arg5[%c0_6, %c0_7] : memref<4x32xf32, #tpu.memory_space<vmem>>, vector<4x32xf32>
    %c0_8 = arith.constant 0 : index
    %c0_9 = arith.constant 0 : index
    %6 = vector.load %arg6[%c0_8, %c0_9] : memref<4x32xf32, #tpu.memory_space<vmem>>, vector<4x32xf32>
    %c0_10 = arith.constant 0 : index
    %c0_11 = arith.constant 0 : index
    %7 = vector.load %arg7[%c0_10, %c0_11] : memref<4x32xf32, #tpu.memory_space<vmem>>, vector<4x32xf32>
    %c0_12 = arith.constant 0 : index
    %c0_13 = arith.constant 0 : index
    %8 = vector.load %arg8[%c0_12, %c0_13] : memref<4x32xf32, #tpu.memory_space<vmem>>, vector<4x32xf32>
    %cst = arith.constant 0.000000e+00 : f32
    %9 = vector.broadcast %cst : f32 to vector<4x32xf32>
    %cst_14 = arith.constant 0.000000e+00 : f32
    %10 = vector.broadcast %cst_14 : f32 to vector<4x32xf32>
    %c0_i32 = arith.constant 0 : i32
    %c15_i32 = arith.constant 15 : i32
    %11 = arith.subi %c15_i32, %c0_i32 : i32
    %c0_15 = arith.constant 0 : index
    %12 = arith.index_cast %c0_i32 : i32 to index
    %c0_16 = arith.constant 0 : index
    %13 = vector.load %arg1[%c0_15, %12, %c0_16] : memref<1x16x32xf32, #tpu.memory_space<vmem>>, vector<1x1x32xf32>
    %14 = vector.shape_cast %13 : vector<1x1x32xf32> to vector<1x32xf32>
    %c0_17 = arith.constant 0 : index
    %15 = arith.index_cast %11 : i32 to index
    %c0_18 = arith.constant 0 : index
    %16 = vector.load %arg1[%c0_17, %15, %c0_18] : memref<1x16x32xf32, #tpu.memory_space<vmem>>, vector<1x1x32xf32>
    %17 = vector.shape_cast %16 : vector<1x1x32xf32> to vector<1x32xf32>
    %18 = arith.mulf %3, %9 : vector<4x32xf32>
    %19 = vector.broadcast %14 : vector<1x32xf32> to vector<4x32xf32>
    %20 = arith.mulf %4, %19 : vector<4x32xf32>
    %21 = arith.addf %18, %20 : vector<4x32xf32>
    %22 = arith.mulf %6, %10 : vector<4x32xf32>
    %23 = vector.broadcast %17 : vector<1x32xf32> to vector<4x32xf32>
    %24 = arith.mulf %7, %23 : vector<4x32xf32>
    %25 = arith.addf %22, %24 : vector<4x32xf32>
    %26 = arith.mulf %5, %21 : vector<4x32xf32>
    %cst_19 = arith.constant dense<0.000000e+00> : vector<32xf32>
    %27 = vector.multi_reduction <add>, %26, %cst_19 [0] : vector<4x32xf32> to vector<32xf32>
    %28 = vector.shape_cast %27 : vector<32xf32> to vector<1x32xf32>
    %29 = arith.index_cast %c0_i32 : i32 to index
    %c0_20 = arith.constant 0 : index
    %30 = vector.load %arg35[%29, %c0_20] : memref<16x32xf32, #tpu.memory_space<vmem>>, vector<1x32xf32>
    tpu.vector_store %arg35[%29, %c0_20], %28 {strides = array<i32>} : memref<16x32xf32, #tpu.memory_space<vmem>>, vector<1x32xf32>,
    %31 = arith.mulf %8, %25 : vector<4x32xf32>
    %cst_21 = arith.constant dense<0.000000e+00> : vector<32xf32>
    %32 = vector.multi_reduction <add>, %31, %cst_21 [0] : vector<4x32xf32> to vector<32xf32>
    %33 = vector.shape_cast %32 : vector<32xf32> to vector<1x32xf32>
    %34 = arith.index_cast %11 : i32 to index
    %c0_22 = arith.constant 0 : index
    %35 = vector.load %arg36[%34, %c0_22] : memref<16x32xf32, #tpu.memory_space<vmem>>, vector<1x32xf32>
    tpu.vector_store %arg36[%34, %c0_22], %33 {strides = array<i32>} : memref<16x32xf32, #tpu.memory_space<vmem>>, vector<1x32xf32>,
    %c1_i32 = arith.constant 1 : i32
    %c15_i32_23 = arith.constant 15 : i32
    %36 = arith.subi %c15_i32_23, %c1_i32 : i32
    %c0_24 = arith.constant 0 : index
    %37 = arith.index_cast %c1_i32 : i32 to index
    %c0_25 = arith.constant 0 : index
    %38 = vector.load %arg1[%c0_24, %37, %c0_25] : memref<1x16x32xf32, #tpu.memory_space<vmem>>, vector<1x1x32xf32>
    %39 = vector.shape_cast %38 : vector<1x1x32xf32> to vector<1x32xf32>
    %c0_26 = arith.constant 0 : index
    %40 = arith.index_cast %36 : i32 to index
    %c0_27 = arith.constant 0 : index
    %41 = vector.load %arg1[%c0_26, %40, %c0_27] : memref<1x16x32xf32, #tpu.memory_space<vmem>>, vector<1x1x32xf32>
    %42 = vector.shape_cast %41 : vector<1x1x32xf32> to vector<1x32xf32>
    %43 = arith.mulf %3, %21 : vector<4x32xf32>
    %44 = vector.broadcast %39 : vector<1x32xf32> to vector<4x32xf32>
    %45 = arith.mulf %4, %44 : vector<4x32xf32>
    %46 = arith.addf %43, %45 : vector<4x32xf32>
    %47 = arith.mulf %6, %25 : vector<4x32xf32>
    %48 = vector.broadcast %42 : vector<1x32xf32> to vector<4x32xf32>
    %49 = arith.mulf %7, %48 : vector<4x32xf32>
    %50 = arith.addf %47, %49 : vector<4x32xf32>
    %51 = arith.mulf %5, %46 : vector<4x32xf32>
    %cst_28 = arith.constant dense<0.000000e+00> : vector<32xf32>
    %52 = vector.multi_reduction <add>, %51, %cst_28 [0] : vector<4x32xf32> to vector<32xf32>
    %53 = vector.shape_cast %52 : vector<32xf32> to vector<1x32xf32>
    %54 = arith.index_cast %c1_i32 : i32 to index
    %c0_29 = arith.constant 0 : index
    %55 = vector.load %arg35[%54, %c0_29] : memref<16x32xf32, #tpu.memory_space<vmem>>, vector<1x32xf32>
    tpu.vector_store %arg35[%54, %c0_29], %53 {strides = array<i32>} : memref<16x32xf32, #tpu.memory_space<vmem>>, vector<1x32xf32>,
    %56 = arith.mulf %8, %50 : vector<4x32xf32>
    %cst_30 = arith.constant dense<0.000000e+00> : vector<32xf32>
    %57 = vector.multi_reduction <add>, %56, %cst_30 [0] : vector<4x32xf32> to vector<32xf32>
    %58 = vector.shape_cast %57 : vector<32xf32> to vector<1x32xf32>
    %59 = arith.index_cast %36 : i32 to index
    %c0_31 = arith.constant 0 : index
    %60 = vector.load %arg36[%59, %c0_31] : memref<16x32xf32, #tpu.memory_space<vmem>>, vector<1x32xf32>
    tpu.vector_store %arg36[%59, %c0_31], %58 {strides = array<i32>} : memref<16x32xf32, #tpu.memory_space<vmem>>, vector<1x32xf32>,
    %c2_i32 = arith.constant 2 : i32
    %c15_i32_32 = arith.constant 15 : i32
    %61 = arith.subi %c15_i32_32, %c2_i32 : i32
    %c0_33 = arith.constant 0 : index
    %62 = arith.index_cast %c2_i32 : i32 to index
    %c0_34 = arith.constant 0 : index
    %63 = vector.load %arg1[%c0_33, %62, %c0_34] : memref<1x16x32xf32, #tpu.memory_space<vmem>>, vector<1x1x32xf32>
    %64 = vector.shape_cast %63 : vector<1x1x32xf32> to vector<1x32xf32>
    %c0_35 = arith.constant 0 : index
    %65 = arith.index_cast %61 : i32 to index
    %c0_36 = arith.constant 0 : index
    %66 = vector.load %arg1[%c0_35, %65, %c0_36] : memref<1x16x32xf32, #tpu.memory_space<vmem>>, vector<1x1x32xf32>
    %67 = vector.shape_cast %66 : vector<1x1x32xf32> to vector<1x32xf32>
    %68 = arith.mulf %3, %46 : vector<4x32xf32>
    %69 = vector.broadcast %64 : vector<1x32xf32> to vector<4x32xf32>
    %70 = arith.mulf %4, %69 : vector<4x32xf32>
    %71 = arith.addf %68, %70 : vector<4x32xf32>
    %72 = arith.mulf %6, %50 : vector<4x32xf32>
    %73 = vector.broadcast %67 : vector<1x32xf32> to vector<4x32xf32>
    %74 = arith.mulf %7, %73 : vector<4x32xf32>
    %75 = arith.addf %72, %74 : vector<4x32xf32>
    %76 = arith.mulf %5, %71 : vector<4x32xf32>
    %cst_37 = arith.constant dense<0.000000e+00> : vector<32xf32>
    %77 = vector.multi_reduction <add>, %76, %cst_37 [0] : vector<4x32xf32> to vector<32xf32>
    %78 = vector.shape_cast %77 : vector<32xf32> to vector<1x32xf32>
    %79 = arith.index_cast %c2_i32 : i32 to index
    %c0_38 = arith.constant 0 : index
    %80 = vector.load %arg35[%79, %c0_38] : memref<16x32xf32, #tpu.memory_space<vmem>>, vector<1x32xf32>
    tpu.vector_store %arg35[%79, %c0_38], %78 {strides = array<i32>} : memref<16x32xf32, #tpu.memory_space<vmem>>, vector<1x32xf32>,
    %81 = arith.mulf %8, %75 : vector<4x32xf32>
    %cst_39 = arith.constant dense<0.000000e+00> : vector<32xf32>
    %82 = vector.multi_reduction <add>, %81, %cst_39 [0] : vector<4x32xf32> to vector<32xf32>
    %83 = vector.shape_cast %82 : vector<32xf32> to vector<1x32xf32>
    %84 = arith.index_cast %61 : i32 to index
    %c0_40 = arith.constant 0 : index
    %85 = vector.load %arg36[%84, %c0_40] : memref<16x32xf32, #tpu.memory_space<vmem>>, vector<1x32xf32>
    tpu.vector_store %arg36[%84, %c0_40], %83 {strides = array<i32>} : memref<16x32xf32, #tpu.memory_space<vmem>>, vector<1x32xf32>,
    %c3_i32 = arith.constant 3 : i32
    %c15_i32_41 = arith.constant 15 : i32
    %86 = arith.subi %c15_i32_41, %c3_i32 : i32
    %c0_42 = arith.constant 0 : index
    %87 = arith.index_cast %c3_i32 : i32 to index
    %c0_43 = arith.constant 0 : index
    %88 = vector.load %arg1[%c0_42, %87, %c0_43] : memref<1x16x32xf32, #tpu.memory_space<vmem>>, vector<1x1x32xf32>
    %89 = vector.shape_cast %88 : vector<1x1x32xf32> to vector<1x32xf32>
    %c0_44 = arith.constant 0 : index
    %90 = arith.index_cast %86 : i32 to index
    %c0_45 = arith.constant 0 : index
    %91 = vector.load %arg1[%c0_44, %90, %c0_45] : memref<1x16x32xf32, #tpu.memory_space<vmem>>, vector<1x1x32xf32>
    %92 = vector.shape_cast %91 : vector<1x1x32xf32> to vector<1x32xf32>
    %93 = arith.mulf %3, %71 : vector<4x32xf32>
    %94 = vector.broadcast %89 : vector<1x32xf32> to vector<4x32xf32>
    %95 = arith.mulf %4, %94 : vector<4x32xf32>
    %96 = arith.addf %93, %95 : vector<4x32xf32>
    %97 = arith.mulf %6, %75 : vector<4x32xf32>
    %98 = vector.broadcast %92 : vector<1x32xf32> to vector<4x32xf32>
    %99 = arith.mulf %7, %98 : vector<4x32xf32>
    %100 = arith.addf %97, %99 : vector<4x32xf32>
    %101 = arith.mulf %5, %96 : vector<4x32xf32>
    %cst_46 = arith.constant dense<0.000000e+00> : vector<32xf32>
    %102 = vector.multi_reduction <add>, %101, %cst_46 [0] : vector<4x32xf32> to vector<32xf32>
    %103 = vector.shape_cast %102 : vector<32xf32> to vector<1x32xf32>
    %104 = arith.index_cast %c3_i32 : i32 to index
    %c0_47 = arith.constant 0 : index
    %105 = vector.load %arg35[%104, %c0_47] : memref<16x32xf32, #tpu.memory_space<vmem>>, vector<1x32xf32>
    tpu.vector_store %arg35[%104, %c0_47], %103 {strides = array<i32>} : memref<16x32xf32, #tpu.memory_space<vmem>>, vector<1x32xf32>,
    %106 = arith.mulf %8, %100 : vector<4x32xf32>
    %cst_48 = arith.constant dense<0.000000e+00> : vector<32xf32>
    %107 = vector.multi_reduction <add>, %106, %cst_48 [0] : vector<4x32xf32> to vector<32xf32>
    %108 = vector.shape_cast %107 : vector<32xf32> to vector<1x32xf32>
    %109 = arith.index_cast %86 : i32 to index
    %c0_49 = arith.constant 0 : index
    %110 = vector.load %arg36[%109, %c0_49] : memref<16x32xf32, #tpu.memory_space<vmem>>, vector<1x32xf32>
    tpu.vector_store %arg36[%109, %c0_49], %108 {strides = array<i32>} : memref<16x32xf32, #tpu.memory_space<vmem>>, vector<1x32xf32>,
    %c4_i32 = arith.constant 4 : i32
    %c15_i32_50 = arith.constant 15 : i32
    %111 = arith.subi %c15_i32_50, %c4_i32 : i32
    %c0_51 = arith.constant 0 : index
    %112 = arith.index_cast %c4_i32 : i32 to index
    %c0_52 = arith.constant 0 : index
    %113 = vector.load %arg1[%c0_51, %112, %c0_52] : memref<1x16x32xf32, #tpu.memory_space<vmem>>, vector<1x1x32xf32>
    %114 = vector.shape_cast %113 : vector<1x1x32xf32> to vector<1x32xf32>
    %c0_53 = arith.constant 0 : index
    %115 = arith.index_cast %111 : i32 to index
    %c0_54 = arith.constant 0 : index
    %116 = vector.load %arg1[%c0_53, %115, %c0_54] : memref<1x16x32xf32, #tpu.memory_space<vmem>>, vector<1x1x32xf32>
    %117 = vector.shape_cast %116 : vector<1x1x32xf32> to vector<1x32xf32>
    %118 = arith.mulf %3, %96 : vector<4x32xf32>
    %119 = vector.broadcast %114 : vector<1x32xf32> to vector<4x32xf32>
    %120 = arith.mulf %4, %119 : vector<4x32xf32>
    %121 = arith.addf %118, %120 : vector<4x32xf32>
    %122 = arith.mulf %6, %100 : vector<4x32xf32>
    %123 = vector.broadcast %117 : vector<1x32xf32> to vector<4x32xf32>
    %124 = arith.mulf %7, %123 : vector<4x32xf32>
    %125 = arith.addf %122, %124 : vector<4x32xf32>
    %126 = arith.mulf %5, %121 : vector<4x32xf32>
    %cst_55 = arith.constant dense<0.000000e+00> : vector<32xf32>
    %127 = vector.multi_reduction <add>, %126, %cst_55 [0] : vector<4x32xf32> to vector<32xf32>
    %128 = vector.shape_cast %127 : vector<32xf32> to vector<1x32xf32>
    %129 = arith.index_cast %c4_i32 : i32 to index
    %c0_56 = arith.constant 0 : index
    %130 = vector.load %arg35[%129, %c0_56] : memref<16x32xf32, #tpu.memory_space<vmem>>, vector<1x32xf32>
    tpu.vector_store %arg35[%129, %c0_56], %128 {strides = array<i32>} : memref<16x32xf32, #tpu.memory_space<vmem>>, vector<1x32xf32>,
    %131 = arith.mulf %8, %125 : vector<4x32xf32>
    %cst_57 = arith.constant dense<0.000000e+00> : vector<32xf32>
    %132 = vector.multi_reduction <add>, %131, %cst_57 [0] : vector<4x32xf32> to vector<32xf32>
    %133 = vector.shape_cast %132 : vector<32xf32> to vector<1x32xf32>
    %134 = arith.index_cast %111 : i32 to index
    %c0_58 = arith.constant 0 : index
    %135 = vector.load %arg36[%134, %c0_58] : memref<16x32xf32, #tpu.memory_space<vmem>>, vector<1x32xf32>
    tpu.vector_store %arg36[%134, %c0_58], %133 {strides = array<i32>} : memref<16x32xf32, #tpu.memory_space<vmem>>, vector<1x32xf32>,
    %c5_i32 = arith.constant 5 : i32
    %c15_i32_59 = arith.constant 15 : i32
    %136 = arith.subi %c15_i32_59, %c5_i32 : i32
    %c0_60 = arith.constant 0 : index
    %137 = arith.index_cast %c5_i32 : i32 to index
    %c0_61 = arith.constant 0 : index
    %138 = vector.load %arg1[%c0_60, %137, %c0_61] : memref<1x16x32xf32, #tpu.memory_space<vmem>>, vector<1x1x32xf32>
    %139 = vector.shape_cast %138 : vector<1x1x32xf32> to vector<1x32xf32>
    %c0_62 = arith.constant 0 : index
    %140 = arith.index_cast %136 : i32 to index
    %c0_63 = arith.constant 0 : index
    %141 = vector.load %arg1[%c0_62, %140, %c0_63] : memref<1x16x32xf32, #tpu.memory_space<vmem>>, vector<1x1x32xf32>
    %142 = vector.shape_cast %141 : vector<1x1x32xf32> to vector<1x32xf32>
    %143 = arith.mulf %3, %121 : vector<4x32xf32>
    %144 = vector.broadcast %139 : vector<1x32xf32> to vector<4x32xf32>
    %145 = arith.mulf %4, %144 : vector<4x32xf32>
    %146 = arith.addf %143, %145 : vector<4x32xf32>
    %147 = arith.mulf %6, %125 : vector<4x32xf32>
    %148 = vector.broadcast %142 : vector<1x32xf32> to vector<4x32xf32>
    %149 = arith.mulf %7, %148 : vector<4x32xf32>
    %150 = arith.addf %147, %149 : vector<4x32xf32>
    %151 = arith.mulf %5, %146 : vector<4x32xf32>
    %cst_64 = arith.constant dense<0.000000e+00> : vector<32xf32>
    %152 = vector.multi_reduction <add>, %151, %cst_64 [0] : vector<4x32xf32> to vector<32xf32>
    %153 = vector.shape_cast %152 : vector<32xf32> to vector<1x32xf32>
    %154 = arith.index_cast %c5_i32 : i32 to index
    %c0_65 = arith.constant 0 : index
    %155 = vector.load %arg35[%154, %c0_65] : memref<16x32xf32, #tpu.memory_space<vmem>>, vector<1x32xf32>
    tpu.vector_store %arg35[%154, %c0_65], %153 {strides = array<i32>} : memref<16x32xf32, #tpu.memory_space<vmem>>, vector<1x32xf32>,
    %156 = arith.mulf %8, %150 : vector<4x32xf32>
    %cst_66 = arith.constant dense<0.000000e+00> : vector<32xf32>
    %157 = vector.multi_reduction <add>, %156, %cst_66 [0] : vector<4x32xf32> to vector<32xf32>
    %158 = vector.shape_cast %157 : vector<32xf32> to vector<1x32xf32>
    %159 = arith.index_cast %136 : i32 to index
    %c0_67 = arith.constant 0 : index
    %160 = vector.load %arg36[%159, %c0_67] : memref<16x32xf32, #tpu.memory_space<vmem>>, vector<1x32xf32>
    tpu.vector_store %arg36[%159, %c0_67], %158 {strides = array<i32>} : memref<16x32xf32, #tpu.memory_space<vmem>>, vector<1x32xf32>,
    %c6_i32 = arith.constant 6 : i32
    %c15_i32_68 = arith.constant 15 : i32
    %161 = arith.subi %c15_i32_68, %c6_i32 : i32
    %c0_69 = arith.constant 0 : index
    %162 = arith.index_cast %c6_i32 : i32 to index
    %c0_70 = arith.constant 0 : index
    %163 = vector.load %arg1[%c0_69, %162, %c0_70] : memref<1x16x32xf32, #tpu.memory_space<vmem>>, vector<1x1x32xf32>
    %164 = vector.shape_cast %163 : vector<1x1x32xf32> to vector<1x32xf32>
    %c0_71 = arith.constant 0 : index
    %165 = arith.index_cast %161 : i32 to index
    %c0_72 = arith.constant 0 : index
    %166 = vector.load %arg1[%c0_71, %165, %c0_72] : memref<1x16x32xf32, #tpu.memory_space<vmem>>, vector<1x1x32xf32>
    %167 = vector.shape_cast %166 : vector<1x1x32xf32> to vector<1x32xf32>
    %168 = arith.mulf %3, %146 : vector<4x32xf32>
    %169 = vector.broadcast %164 : vector<1x32xf32> to vector<4x32xf32>
    %170 = arith.mulf %4, %169 : vector<4x32xf32>
    %171 = arith.addf %168, %170 : vector<4x32xf32>
    %172 = arith.mulf %6, %150 : vector<4x32xf32>
    %173 = vector.broadcast %167 : vector<1x32xf32> to vector<4x32xf32>
    %174 = arith.mulf %7, %173 : vector<4x32xf32>
    %175 = arith.addf %172, %174 : vector<4x32xf32>
    %176 = arith.mulf %5, %171 : vector<4x32xf32>
    %cst_73 = arith.constant dense<0.000000e+00> : vector<32xf32>
    %177 = vector.multi_reduction <add>, %176, %cst_73 [0] : vector<4x32xf32> to vector<32xf32>
    %178 = vector.shape_cast %177 : vector<32xf32> to vector<1x32xf32>
    %179 = arith.index_cast %c6_i32 : i32 to index
    %c0_74 = arith.constant 0 : index
    %180 = vector.load %arg35[%179, %c0_74] : memref<16x32xf32, #tpu.memory_space<vmem>>, vector<1x32xf32>
    tpu.vector_store %arg35[%179, %c0_74], %178 {strides = array<i32>} : memref<16x32xf32, #tpu.memory_space<vmem>>, vector<1x32xf32>,
    %181 = arith.mulf %8, %175 : vector<4x32xf32>
    %cst_75 = arith.constant dense<0.000000e+00> : vector<32xf32>
    %182 = vector.multi_reduction <add>, %181, %cst_75 [0] : vector<4x32xf32> to vector<32xf32>
    %183 = vector.shape_cast %182 : vector<32xf32> to vector<1x32xf32>
    %184 = arith.index_cast %161 : i32 to index
    %c0_76 = arith.constant 0 : index
    %185 = vector.load %arg36[%184, %c0_76] : memref<16x32xf32, #tpu.memory_space<vmem>>, vector<1x32xf32>
    tpu.vector_store %arg36[%184, %c0_76], %183 {strides = array<i32>} : memref<16x32xf32, #tpu.memory_space<vmem>>, vector<1x32xf32>,
    %c7_i32 = arith.constant 7 : i32
    %c15_i32_77 = arith.constant 15 : i32
    %186 = arith.subi %c15_i32_77, %c7_i32 : i32
    %c0_78 = arith.constant 0 : index
    %187 = arith.index_cast %c7_i32 : i32 to index
    %c0_79 = arith.constant 0 : index
    %188 = vector.load %arg1[%c0_78, %187, %c0_79] : memref<1x16x32xf32, #tpu.memory_space<vmem>>, vector<1x1x32xf32>
    %189 = vector.shape_cast %188 : vector<1x1x32xf32> to vector<1x32xf32>
    %c0_80 = arith.constant 0 : index
    %190 = arith.index_cast %186 : i32 to index
    %c0_81 = arith.constant 0 : index
    %191 = vector.load %arg1[%c0_80, %190, %c0_81] : memref<1x16x32xf32, #tpu.memory_space<vmem>>, vector<1x1x32xf32>
    %192 = vector.shape_cast %191 : vector<1x1x32xf32> to vector<1x32xf32>
    %193 = arith.mulf %3, %171 : vector<4x32xf32>
    %194 = vector.broadcast %189 : vector<1x32xf32> to vector<4x32xf32>
    %195 = arith.mulf %4, %194 : vector<4x32xf32>
    %196 = arith.addf %193, %195 : vector<4x32xf32>
    %197 = arith.mulf %6, %175 : vector<4x32xf32>
    %198 = vector.broadcast %192 : vector<1x32xf32> to vector<4x32xf32>
    %199 = arith.mulf %7, %198 : vector<4x32xf32>
    %200 = arith.addf %197, %199 : vector<4x32xf32>
    %201 = arith.mulf %5, %196 : vector<4x32xf32>
    %cst_82 = arith.constant dense<0.000000e+00> : vector<32xf32>
    %202 = vector.multi_reduction <add>, %201, %cst_82 [0] : vector<4x32xf32> to vector<32xf32>
    %203 = vector.shape_cast %202 : vector<32xf32> to vector<1x32xf32>
    %204 = arith.index_cast %c7_i32 : i32 to index
    %c0_83 = arith.constant 0 : index
    %205 = vector.load %arg35[%204, %c0_83] : memref<16x32xf32, #tpu.memory_space<vmem>>, vector<1x32xf32>
    tpu.vector_store %arg35[%204, %c0_83], %203 {strides = array<i32>} : memref<16x32xf32, #tpu.memory_space<vmem>>, vector<1x32xf32>,
    %206 = arith.mulf %8, %200 : vector<4x32xf32>
    %cst_84 = arith.constant dense<0.000000e+00> : vector<32xf32>
    %207 = vector.multi_reduction <add>, %206, %cst_84 [0] : vector<4x32xf32> to vector<32xf32>
    %208 = vector.shape_cast %207 : vector<32xf32> to vector<1x32xf32>
    %209 = arith.index_cast %186 : i32 to index
    %c0_85 = arith.constant 0 : index
    %210 = vector.load %arg36[%209, %c0_85] : memref<16x32xf32, #tpu.memory_space<vmem>>, vector<1x32xf32>
    tpu.vector_store %arg36[%209, %c0_85], %208 {strides = array<i32>} : memref<16x32xf32, #tpu.memory_space<vmem>>, vector<1x32xf32>,
    %c8_i32 = arith.constant 8 : i32
    %c15_i32_86 = arith.constant 15 : i32
    %211 = arith.subi %c15_i32_86, %c8_i32 : i32
    %c0_87 = arith.constant 0 : index
    %212 = arith.index_cast %c8_i32 : i32 to index
    %c0_88 = arith.constant 0 : index
    %213 = vector.load %arg1[%c0_87, %212, %c0_88] : memref<1x16x32xf32, #tpu.memory_space<vmem>>, vector<1x1x32xf32>
    %214 = vector.shape_cast %213 : vector<1x1x32xf32> to vector<1x32xf32>
    %c0_89 = arith.constant 0 : index
    %215 = arith.index_cast %211 : i32 to index
    %c0_90 = arith.constant 0 : index
    %216 = vector.load %arg1[%c0_89, %215, %c0_90] : memref<1x16x32xf32, #tpu.memory_space<vmem>>, vector<1x1x32xf32>
    %217 = vector.shape_cast %216 : vector<1x1x32xf32> to vector<1x32xf32>
    %218 = arith.mulf %3, %196 : vector<4x32xf32>
    %219 = vector.broadcast %214 : vector<1x32xf32> to vector<4x32xf32>
    %220 = arith.mulf %4, %219 : vector<4x32xf32>
    %221 = arith.addf %218, %220 : vector<4x32xf32>
    %222 = arith.mulf %6, %200 : vector<4x32xf32>
    %223 = vector.broadcast %217 : vector<1x32xf32> to vector<4x32xf32>
    %224 = arith.mulf %7, %223 : vector<4x32xf32>
    %225 = arith.addf %222, %224 : vector<4x32xf32>
    %226 = arith.mulf %5, %221 : vector<4x32xf32>
    %cst_91 = arith.constant dense<0.000000e+00> : vector<32xf32>
    %227 = vector.multi_reduction <add>, %226, %cst_91 [0] : vector<4x32xf32> to vector<32xf32>
    %228 = vector.shape_cast %227 : vector<32xf32> to vector<1x32xf32>
    %229 = arith.index_cast %c8_i32 : i32 to index
    %c0_92 = arith.constant 0 : index
    %230 = vector.load %arg35[%229, %c0_92] : memref<16x32xf32, #tpu.memory_space<vmem>>, vector<1x32xf32>
    tpu.vector_store %arg35[%229, %c0_92], %228 {strides = array<i32>} : memref<16x32xf32, #tpu.memory_space<vmem>>, vector<1x32xf32>,
    %231 = arith.mulf %8, %225 : vector<4x32xf32>
    %cst_93 = arith.constant dense<0.000000e+00> : vector<32xf32>
    %232 = vector.multi_reduction <add>, %231, %cst_93 [0] : vector<4x32xf32> to vector<32xf32>
    %233 = vector.shape_cast %232 : vector<32xf32> to vector<1x32xf32>
    %234 = arith.index_cast %211 : i32 to index
    %c0_94 = arith.constant 0 : index
    %235 = vector.load %arg36[%234, %c0_94] : memref<16x32xf32, #tpu.memory_space<vmem>>, vector<1x32xf32>
    tpu.vector_store %arg36[%234, %c0_94], %233 {strides = array<i32>} : memref<16x32xf32, #tpu.memory_space<vmem>>, vector<1x32xf32>,
    %c9_i32 = arith.constant 9 : i32
    %c15_i32_95 = arith.constant 15 : i32
    %236 = arith.subi %c15_i32_95, %c9_i32 : i32
    %c0_96 = arith.constant 0 : index
    %237 = arith.index_cast %c9_i32 : i32 to index
    %c0_97 = arith.constant 0 : index
    %238 = vector.load %arg1[%c0_96, %237, %c0_97] : memref<1x16x32xf32, #tpu.memory_space<vmem>>, vector<1x1x32xf32>
    %239 = vector.shape_cast %238 : vector<1x1x32xf32> to vector<1x32xf32>
    %c0_98 = arith.constant 0 : index
    %240 = arith.index_cast %236 : i32 to index
    %c0_99 = arith.constant 0 : index
    %241 = vector.load %arg1[%c0_98, %240, %c0_99] : memref<1x16x32xf32, #tpu.memory_space<vmem>>, vector<1x1x32xf32>
    %242 = vector.shape_cast %241 : vector<1x1x32xf32> to vector<1x32xf32>
    %243 = arith.mulf %3, %221 : vector<4x32xf32>
    %244 = vector.broadcast %239 : vector<1x32xf32> to vector<4x32xf32>
    %245 = arith.mulf %4, %244 : vector<4x32xf32>
    %246 = arith.addf %243, %245 : vector<4x32xf32>
    %247 = arith.mulf %6, %225 : vector<4x32xf32>
    %248 = vector.broadcast %242 : vector<1x32xf32> to vector<4x32xf32>
    %249 = arith.mulf %7, %248 : vector<4x32xf32>
    %250 = arith.addf %247, %249 : vector<4x32xf32>
    %251 = arith.mulf %5, %246 : vector<4x32xf32>
    %cst_100 = arith.constant dense<0.000000e+00> : vector<32xf32>
    %252 = vector.multi_reduction <add>, %251, %cst_100 [0] : vector<4x32xf32> to vector<32xf32>
    %253 = vector.shape_cast %252 : vector<32xf32> to vector<1x32xf32>
    %254 = arith.index_cast %c9_i32 : i32 to index
    %c0_101 = arith.constant 0 : index
    %255 = vector.load %arg35[%254, %c0_101] : memref<16x32xf32, #tpu.memory_space<vmem>>, vector<1x32xf32>
    tpu.vector_store %arg35[%254, %c0_101], %253 {strides = array<i32>} : memref<16x32xf32, #tpu.memory_space<vmem>>, vector<1x32xf32>,
    %256 = arith.mulf %8, %250 : vector<4x32xf32>
    %cst_102 = arith.constant dense<0.000000e+00> : vector<32xf32>
    %257 = vector.multi_reduction <add>, %256, %cst_102 [0] : vector<4x32xf32> to vector<32xf32>
    %258 = vector.shape_cast %257 : vector<32xf32> to vector<1x32xf32>
    %259 = arith.index_cast %236 : i32 to index
    %c0_103 = arith.constant 0 : index
    %260 = vector.load %arg36[%259, %c0_103] : memref<16x32xf32, #tpu.memory_space<vmem>>, vector<1x32xf32>
    tpu.vector_store %arg36[%259, %c0_103], %258 {strides = array<i32>} : memref<16x32xf32, #tpu.memory_space<vmem>>, vector<1x32xf32>,
    %c10_i32 = arith.constant 10 : i32
    %c15_i32_104 = arith.constant 15 : i32
    %261 = arith.subi %c15_i32_104, %c10_i32 : i32
    %c0_105 = arith.constant 0 : index
    %262 = arith.index_cast %c10_i32 : i32 to index
    %c0_106 = arith.constant 0 : index
    %263 = vector.load %arg1[%c0_105, %262, %c0_106] : memref<1x16x32xf32, #tpu.memory_space<vmem>>, vector<1x1x32xf32>
    %264 = vector.shape_cast %263 : vector<1x1x32xf32> to vector<1x32xf32>
    %c0_107 = arith.constant 0 : index
    %265 = arith.index_cast %261 : i32 to index
    %c0_108 = arith.constant 0 : index
    %266 = vector.load %arg1[%c0_107, %265, %c0_108] : memref<1x16x32xf32, #tpu.memory_space<vmem>>, vector<1x1x32xf32>
    %267 = vector.shape_cast %266 : vector<1x1x32xf32> to vector<1x32xf32>
    %268 = arith.mulf %3, %246 : vector<4x32xf32>
    %269 = vector.broadcast %264 : vector<1x32xf32> to vector<4x32xf32>
    %270 = arith.mulf %4, %269 : vector<4x32xf32>
    %271 = arith.addf %268, %270 : vector<4x32xf32>
    %272 = arith.mulf %6, %250 : vector<4x32xf32>
    %273 = vector.broadcast %267 : vector<1x32xf32> to vector<4x32xf32>
    %274 = arith.mulf %7, %273 : vector<4x32xf32>
    %275 = arith.addf %272, %274 : vector<4x32xf32>
    %276 = arith.mulf %5, %271 : vector<4x32xf32>
    %cst_109 = arith.constant dense<0.000000e+00> : vector<32xf32>
    %277 = vector.multi_reduction <add>, %276, %cst_109 [0] : vector<4x32xf32> to vector<32xf32>
    %278 = vector.shape_cast %277 : vector<32xf32> to vector<1x32xf32>
    %279 = arith.index_cast %c10_i32 : i32 to index
    %c0_110 = arith.constant 0 : index
    %280 = vector.load %arg35[%279, %c0_110] : memref<16x32xf32, #tpu.memory_space<vmem>>, vector<1x32xf32>
    tpu.vector_store %arg35[%279, %c0_110], %278 {strides = array<i32>} : memref<16x32xf32, #tpu.memory_space<vmem>>, vector<1x32xf32>,
    %281 = arith.mulf %8, %275 : vector<4x32xf32>
    %cst_111 = arith.constant dense<0.000000e+00> : vector<32xf32>
    %282 = vector.multi_reduction <add>, %281, %cst_111 [0] : vector<4x32xf32> to vector<32xf32>
    %283 = vector.shape_cast %282 : vector<32xf32> to vector<1x32xf32>
    %284 = arith.index_cast %261 : i32 to index
    %c0_112 = arith.constant 0 : index
    %285 = vector.load %arg36[%284, %c0_112] : memref<16x32xf32, #tpu.memory_space<vmem>>, vector<1x32xf32>
    tpu.vector_store %arg36[%284, %c0_112], %283 {strides = array<i32>} : memref<16x32xf32, #tpu.memory_space<vmem>>, vector<1x32xf32>,
    %c11_i32 = arith.constant 11 : i32
    %c15_i32_113 = arith.constant 15 : i32
    %286 = arith.subi %c15_i32_113, %c11_i32 : i32
    %c0_114 = arith.constant 0 : index
    %287 = arith.index_cast %c11_i32 : i32 to index
    %c0_115 = arith.constant 0 : index
    %288 = vector.load %arg1[%c0_114, %287, %c0_115] : memref<1x16x32xf32, #tpu.memory_space<vmem>>, vector<1x1x32xf32>
    %289 = vector.shape_cast %288 : vector<1x1x32xf32> to vector<1x32xf32>
    %c0_116 = arith.constant 0 : index
    %290 = arith.index_cast %286 : i32 to index
    %c0_117 = arith.constant 0 : index
    %291 = vector.load %arg1[%c0_116, %290, %c0_117] : memref<1x16x32xf32, #tpu.memory_space<vmem>>, vector<1x1x32xf32>
    %292 = vector.shape_cast %291 : vector<1x1x32xf32> to vector<1x32xf32>
    %293 = arith.mulf %3, %271 : vector<4x32xf32>
    %294 = vector.broadcast %289 : vector<1x32xf32> to vector<4x32xf32>
    %295 = arith.mulf %4, %294 : vector<4x32xf32>
    %296 = arith.addf %293, %295 : vector<4x32xf32>
    %297 = arith.mulf %6, %275 : vector<4x32xf32>
    %298 = vector.broadcast %292 : vector<1x32xf32> to vector<4x32xf32>
    %299 = arith.mulf %7, %298 : vector<4x32xf32>
    %300 = arith.addf %297, %299 : vector<4x32xf32>
    %301 = arith.mulf %5, %296 : vector<4x32xf32>
    %cst_118 = arith.constant dense<0.000000e+00> : vector<32xf32>
    %302 = vector.multi_reduction <add>, %301, %cst_118 [0] : vector<4x32xf32> to vector<32xf32>
    %303 = vector.shape_cast %302 : vector<32xf32> to vector<1x32xf32>
    %304 = arith.index_cast %c11_i32 : i32 to index
    %c0_119 = arith.constant 0 : index
    %305 = vector.load %arg35[%304, %c0_119] : memref<16x32xf32, #tpu.memory_space<vmem>>, vector<1x32xf32>
    tpu.vector_store %arg35[%304, %c0_119], %303 {strides = array<i32>} : memref<16x32xf32, #tpu.memory_space<vmem>>, vector<1x32xf32>,
    %306 = arith.mulf %8, %300 : vector<4x32xf32>
    %cst_120 = arith.constant dense<0.000000e+00> : vector<32xf32>
    %307 = vector.multi_reduction <add>, %306, %cst_120 [0] : vector<4x32xf32> to vector<32xf32>
    %308 = vector.shape_cast %307 : vector<32xf32> to vector<1x32xf32>
    %309 = arith.index_cast %286 : i32 to index
    %c0_121 = arith.constant 0 : index
    %310 = vector.load %arg36[%309, %c0_121] : memref<16x32xf32, #tpu.memory_space<vmem>>, vector<1x32xf32>
    tpu.vector_store %arg36[%309, %c0_121], %308 {strides = array<i32>} : memref<16x32xf32, #tpu.memory_space<vmem>>, vector<1x32xf32>,
    %c12_i32 = arith.constant 12 : i32
    %c15_i32_122 = arith.constant 15 : i32
    %311 = arith.subi %c15_i32_122, %c12_i32 : i32
    %c0_123 = arith.constant 0 : index
    %312 = arith.index_cast %c12_i32 : i32 to index
    %c0_124 = arith.constant 0 : index
    %313 = vector.load %arg1[%c0_123, %312, %c0_124] : memref<1x16x32xf32, #tpu.memory_space<vmem>>, vector<1x1x32xf32>
    %314 = vector.shape_cast %313 : vector<1x1x32xf32> to vector<1x32xf32>
    %c0_125 = arith.constant 0 : index
    %315 = arith.index_cast %311 : i32 to index
    %c0_126 = arith.constant 0 : index
    %316 = vector.load %arg1[%c0_125, %315, %c0_126] : memref<1x16x32xf32, #tpu.memory_space<vmem>>, vector<1x1x32xf32>
    %317 = vector.shape_cast %316 : vector<1x1x32xf32> to vector<1x32xf32>
    %318 = arith.mulf %3, %296 : vector<4x32xf32>
    %319 = vector.broadcast %314 : vector<1x32xf32> to vector<4x32xf32>
    %320 = arith.mulf %4, %319 : vector<4x32xf32>
    %321 = arith.addf %318, %320 : vector<4x32xf32>
    %322 = arith.mulf %6, %300 : vector<4x32xf32>
    %323 = vector.broadcast %317 : vector<1x32xf32> to vector<4x32xf32>
    %324 = arith.mulf %7, %323 : vector<4x32xf32>
    %325 = arith.addf %322, %324 : vector<4x32xf32>
    %326 = arith.mulf %5, %321 : vector<4x32xf32>
    %cst_127 = arith.constant dense<0.000000e+00> : vector<32xf32>
    %327 = vector.multi_reduction <add>, %326, %cst_127 [0] : vector<4x32xf32> to vector<32xf32>
    %328 = vector.shape_cast %327 : vector<32xf32> to vector<1x32xf32>
    %329 = arith.index_cast %c12_i32 : i32 to index
    %c0_128 = arith.constant 0 : index
    %330 = vector.load %arg35[%329, %c0_128] : memref<16x32xf32, #tpu.memory_space<vmem>>, vector<1x32xf32>
    tpu.vector_store %arg35[%329, %c0_128], %328 {strides = array<i32>} : memref<16x32xf32, #tpu.memory_space<vmem>>, vector<1x32xf32>,
    %331 = arith.mulf %8, %325 : vector<4x32xf32>
    %cst_129 = arith.constant dense<0.000000e+00> : vector<32xf32>
    %332 = vector.multi_reduction <add>, %331, %cst_129 [0] : vector<4x32xf32> to vector<32xf32>
    %333 = vector.shape_cast %332 : vector<32xf32> to vector<1x32xf32>
    %334 = arith.index_cast %311 : i32 to index
    %c0_130 = arith.constant 0 : index
    %335 = vector.load %arg36[%334, %c0_130] : memref<16x32xf32, #tpu.memory_space<vmem>>, vector<1x32xf32>
    tpu.vector_store %arg36[%334, %c0_130], %333 {strides = array<i32>} : memref<16x32xf32, #tpu.memory_space<vmem>>, vector<1x32xf32>,
    %c13_i32 = arith.constant 13 : i32
    %c15_i32_131 = arith.constant 15 : i32
    %336 = arith.subi %c15_i32_131, %c13_i32 : i32
    %c0_132 = arith.constant 0 : index
    %337 = arith.index_cast %c13_i32 : i32 to index
    %c0_133 = arith.constant 0 : index
    %338 = vector.load %arg1[%c0_132, %337, %c0_133] : memref<1x16x32xf32, #tpu.memory_space<vmem>>, vector<1x1x32xf32>
    %339 = vector.shape_cast %338 : vector<1x1x32xf32> to vector<1x32xf32>
    %c0_134 = arith.constant 0 : index
    %340 = arith.index_cast %336 : i32 to index
    %c0_135 = arith.constant 0 : index
    %341 = vector.load %arg1[%c0_134, %340, %c0_135] : memref<1x16x32xf32, #tpu.memory_space<vmem>>, vector<1x1x32xf32>
    %342 = vector.shape_cast %341 : vector<1x1x32xf32> to vector<1x32xf32>
    %343 = arith.mulf %3, %321 : vector<4x32xf32>
    %344 = vector.broadcast %339 : vector<1x32xf32> to vector<4x32xf32>
    %345 = arith.mulf %4, %344 : vector<4x32xf32>
    %346 = arith.addf %343, %345 : vector<4x32xf32>
    %347 = arith.mulf %6, %325 : vector<4x32xf32>
    %348 = vector.broadcast %342 : vector<1x32xf32> to vector<4x32xf32>
    %349 = arith.mulf %7, %348 : vector<4x32xf32>
    %350 = arith.addf %347, %349 : vector<4x32xf32>
    %351 = arith.mulf %5, %346 : vector<4x32xf32>
    %cst_136 = arith.constant dense<0.000000e+00> : vector<32xf32>
    %352 = vector.multi_reduction <add>, %351, %cst_136 [0] : vector<4x32xf32> to vector<32xf32>
    %353 = vector.shape_cast %352 : vector<32xf32> to vector<1x32xf32>
    %354 = arith.index_cast %c13_i32 : i32 to index
    %c0_137 = arith.constant 0 : index
    %355 = vector.load %arg35[%354, %c0_137] : memref<16x32xf32, #tpu.memory_space<vmem>>, vector<1x32xf32>
    tpu.vector_store %arg35[%354, %c0_137], %353 {strides = array<i32>} : memref<16x32xf32, #tpu.memory_space<vmem>>, vector<1x32xf32>,
    %356 = arith.mulf %8, %350 : vector<4x32xf32>
    %cst_138 = arith.constant dense<0.000000e+00> : vector<32xf32>
    %357 = vector.multi_reduction <add>, %356, %cst_138 [0] : vector<4x32xf32> to vector<32xf32>
    %358 = vector.shape_cast %357 : vector<32xf32> to vector<1x32xf32>
    %359 = arith.index_cast %336 : i32 to index
    %c0_139 = arith.constant 0 : index
    %360 = vector.load %arg36[%359, %c0_139] : memref<16x32xf32, #tpu.memory_space<vmem>>, vector<1x32xf32>
    tpu.vector_store %arg36[%359, %c0_139], %358 {strides = array<i32>} : memref<16x32xf32, #tpu.memory_space<vmem>>, vector<1x32xf32>,
    %c14_i32 = arith.constant 14 : i32
    %c15_i32_140 = arith.constant 15 : i32
    %361 = arith.subi %c15_i32_140, %c14_i32 : i32
    %c0_141 = arith.constant 0 : index
    %362 = arith.index_cast %c14_i32 : i32 to index
    %c0_142 = arith.constant 0 : index
    %363 = vector.load %arg1[%c0_141, %362, %c0_142] : memref<1x16x32xf32, #tpu.memory_space<vmem>>, vector<1x1x32xf32>
    %364 = vector.shape_cast %363 : vector<1x1x32xf32> to vector<1x32xf32>
    %c0_143 = arith.constant 0 : index
    %365 = arith.index_cast %361 : i32 to index
    %c0_144 = arith.constant 0 : index
    %366 = vector.load %arg1[%c0_143, %365, %c0_144] : memref<1x16x32xf32, #tpu.memory_space<vmem>>, vector<1x1x32xf32>
    %367 = vector.shape_cast %366 : vector<1x1x32xf32> to vector<1x32xf32>
    %368 = arith.mulf %3, %346 : vector<4x32xf32>
    %369 = vector.broadcast %364 : vector<1x32xf32> to vector<4x32xf32>
    %370 = arith.mulf %4, %369 : vector<4x32xf32>
    %371 = arith.addf %368, %370 : vector<4x32xf32>
    %372 = arith.mulf %6, %350 : vector<4x32xf32>
    %373 = vector.broadcast %367 : vector<1x32xf32> to vector<4x32xf32>
    %374 = arith.mulf %7, %373 : vector<4x32xf32>
    %375 = arith.addf %372, %374 : vector<4x32xf32>
    %376 = arith.mulf %5, %371 : vector<4x32xf32>
    %cst_145 = arith.constant dense<0.000000e+00> : vector<32xf32>
    %377 = vector.multi_reduction <add>, %376, %cst_145 [0] : vector<4x32xf32> to vector<32xf32>
    %378 = vector.shape_cast %377 : vector<32xf32> to vector<1x32xf32>
    %379 = arith.index_cast %c14_i32 : i32 to index
    %c0_146 = arith.constant 0 : index
    %380 = vector.load %arg35[%379, %c0_146] : memref<16x32xf32, #tpu.memory_space<vmem>>, vector<1x32xf32>
    tpu.vector_store %arg35[%379, %c0_146], %378 {strides = array<i32>} : memref<16x32xf32, #tpu.memory_space<vmem>>, vector<1x32xf32>,
    %381 = arith.mulf %8, %375 : vector<4x32xf32>
    %cst_147 = arith.constant dense<0.000000e+00> : vector<32xf32>
    %382 = vector.multi_reduction <add>, %381, %cst_147 [0] : vector<4x32xf32> to vector<32xf32>
    %383 = vector.shape_cast %382 : vector<32xf32> to vector<1x32xf32>
    %384 = arith.index_cast %361 : i32 to index
    %c0_148 = arith.constant 0 : index
    %385 = vector.load %arg36[%384, %c0_148] : memref<16x32xf32, #tpu.memory_space<vmem>>, vector<1x32xf32>
    tpu.vector_store %arg36[%384, %c0_148], %383 {strides = array<i32>} : memref<16x32xf32, #tpu.memory_space<vmem>>, vector<1x32xf32>,
    %c15_i32_149 = arith.constant 15 : i32
    %c15_i32_150 = arith.constant 15 : i32
    %386 = arith.subi %c15_i32_150, %c15_i32_149 : i32
    %c0_151 = arith.constant 0 : index
    %387 = arith.index_cast %c15_i32_149 : i32 to index
    %c0_152 = arith.constant 0 : index
    %388 = vector.load %arg1[%c0_151, %387, %c0_152] : memref<1x16x32xf32, #tpu.memory_space<vmem>>, vector<1x1x32xf32>
    %389 = vector.shape_cast %388 : vector<1x1x32xf32> to vector<1x32xf32>
    %c0_153 = arith.constant 0 : index
    %390 = arith.index_cast %386 : i32 to index
    %c0_154 = arith.constant 0 : index
    %391 = vector.load %arg1[%c0_153, %390, %c0_154] : memref<1x16x32xf32, #tpu.memory_space<vmem>>, vector<1x1x32xf32>
    %392 = vector.shape_cast %391 : vector<1x1x32xf32> to vector<1x32xf32>
    %393 = arith.mulf %3, %371 : vector<4x32xf32>
    %394 = vector.broadcast %389 : vector<1x32xf32> to vector<4x32xf32>
    %395 = arith.mulf %4, %394 : vector<4x32xf32>
    %396 = arith.addf %393, %395 : vector<4x32xf32>
    %397 = arith.mulf %6, %375 : vector<4x32xf32>
    %398 = vector.broadcast %392 : vector<1x32xf32> to vector<4x32xf32>
    %399 = arith.mulf %7, %398 : vector<4x32xf32>
    %400 = arith.addf %397, %399 : vector<4x32xf32>
    %401 = arith.mulf %5, %396 : vector<4x32xf32>
    %cst_155 = arith.constant dense<0.000000e+00> : vector<32xf32>
    %402 = vector.multi_reduction <add>, %401, %cst_155 [0] : vector<4x32xf32> to vector<32xf32>
    %403 = vector.shape_cast %402 : vector<32xf32> to vector<1x32xf32>
    %404 = arith.index_cast %c15_i32_149 : i32 to index
    %c0_156 = arith.constant 0 : index
    %405 = vector.load %arg35[%404, %c0_156] : memref<16x32xf32, #tpu.memory_space<vmem>>, vector<1x32xf32>
    tpu.vector_store %arg35[%404, %c0_156], %403 {strides = array<i32>} : memref<16x32xf32, #tpu.memory_space<vmem>>, vector<1x32xf32>,
    %406 = arith.mulf %8, %400 : vector<4x32xf32>
    %cst_157 = arith.constant dense<0.000000e+00> : vector<32xf32>
    %407 = vector.multi_reduction <add>, %406, %cst_157 [0] : vector<4x32xf32> to vector<32xf32>
    %408 = vector.shape_cast %407 : vector<32xf32> to vector<1x32xf32>
    %409 = arith.index_cast %386 : i32 to index
    %c0_158 = arith.constant 0 : index
    %410 = vector.load %arg36[%409, %c0_158] : memref<16x32xf32, #tpu.memory_space<vmem>>, vector<1x32xf32>
    tpu.vector_store %arg36[%409, %c0_158], %408 {strides = array<i32>} : memref<16x32xf32, #tpu.memory_space<vmem>>, vector<1x32xf32>,
    %c16_i32 = arith.constant 16 : i32
    %c0_159 = arith.constant 0 : index
    %c0_160 = arith.constant 0 : index
    %411 = vector.load %arg35[%c0_159, %c0_160] : memref<16x32xf32, #tpu.memory_space<vmem>>, vector<16x32xf32>
    %c0_161 = arith.constant 0 : index
    %c0_162 = arith.constant 0 : index
    %412 = vector.load %arg36[%c0_161, %c0_162] : memref<16x32xf32, #tpu.memory_space<vmem>>, vector<16x32xf32>
    %413 = arith.addf %411, %412 : vector<16x32xf32>
    %c0_163 = arith.constant 0 : index
    %c0_164 = arith.constant 0 : index
    %414 = vector.load %arg2[%c0_163, %c0_164] : memref<1x32xf32, #tpu.memory_space<vmem>>, vector<1x32xf32>
    %415 = vector.broadcast %414 : vector<1x32xf32> to vector<16x32xf32>
    %416 = arith.mulf %1, %415 : vector<16x32xf32>
    %417 = arith.addf %413, %416 : vector<16x32xf32>
    %418 = arith.negf %417 : vector<16x32xf32>
    %419 = math.exp %418 : vector<16x32xf32>
    %cst_165 = arith.constant 1.000000e+00 : f32
    %420 = vector.broadcast %cst_165 : f32 to vector<16x32xf32>
    %421 = arith.addf %420, %419 : vector<16x32xf32>
    %422 = arith.divf %420, %421 : vector<16x32xf32>
    %423 = arith.mulf %417, %422 : vector<16x32xf32>
    %424 = arith.truncf %423 : vector<16x32xf32> to vector<16x32xbf16>
    %c0_166 = arith.constant 0 : index
    %c0_167 = arith.constant 0 : index
    %425 = vector.load %arg9[%c0_166, %c0_167] : memref<32x64xbf16, #tpu.memory_space<vmem>>, vector<32x64xbf16>
    %cst_168 = arith.constant dense<0.000000e+00> : vector<16x64xf32>
    %426 = tpu.matmul %2, %425, %cst_168 {dimension_numbers = #tpu.dot_dimension_numbers<[1], [0], [0], [1], [0, 0, 1, 1], [], []>} : vector<16x32xbf16>, vector<32x64xbf16>, vector<16x64xf32> -> vector<16x64xf32>
    %c0_169 = arith.constant 0 : index
    %c0_170 = arith.constant 0 : index
    %427 = vector.load %arg10[%c0_169, %c0_170] : memref<1x64xf32, #tpu.memory_space<vmem>>, vector<1x64xf32>
    %428 = vector.broadcast %427 : vector<1x64xf32> to vector<16x64xf32>
    %429 = arith.addf %426, %428 : vector<16x64xf32>
    %430 = arith.negf %429 : vector<16x64xf32>
    %431 = math.exp %430 : vector<16x64xf32>
    %cst_171 = arith.constant 1.000000e+00 : f32
    %432 = vector.broadcast %cst_171 : f32 to vector<16x64xf32>
    %433 = arith.addf %432, %431 : vector<16x64xf32>
    %434 = arith.divf %432, %433 : vector<16x64xf32>
    %435 = arith.mulf %429, %434 : vector<16x64xf32>
    %c0_172 = arith.constant 0 : index
    %c0_173 = arith.constant 0 : index
    %436 = vector.load %arg11[%c0_172, %c0_173] : memref<32x32xbf16, #tpu.memory_space<vmem>>, vector<32x32xbf16>
    %cst_174 = arith.constant dense<0.000000e+00> : vector<16x32xf32>
    %437 = tpu.matmul %424, %436, %cst_174 {dimension_numbers = #tpu.dot_dimension_numbers<[1], [0], [0], [1], [0, 0, 1, 1], [], []>} : vector<16x32xbf16>, vector<32x32xbf16>, vector<16x32xf32> -> vector<16x32xf32>
    %c0_175 = arith.constant 0 : index
    %c0_176 = arith.constant 0 : index
    %438 = vector.load %arg12[%c0_175, %c0_176] : memref<1x32xf32, #tpu.memory_space<vmem>>, vector<1x32xf32>
    %439 = vector.broadcast %438 : vector<1x32xf32> to vector<16x32xf32>
    %440 = arith.addf %437, %439 : vector<16x32xf32>
    %441 = arith.negf %440 : vector<16x32xf32>
    %442 = math.exp %441 : vector<16x32xf32>
    %cst_177 = arith.constant 1.000000e+00 : f32
    %443 = vector.broadcast %cst_177 : f32 to vector<16x32xf32>
    %444 = arith.addf %443, %442 : vector<16x32xf32>
    %445 = arith.divf %443, %444 : vector<16x32xf32>
    %c0_178 = arith.constant 0 : index
    %c0_179 = arith.constant 0 : index
    %446 = vector.load %arg13[%c0_178, %c0_179] : memref<32x16xbf16, #tpu.memory_space<vmem>>, vector<32x16xbf16>
    %cst_180 = arith.constant dense<0.000000e+00> : vector<16x16xf32>
    %447 = tpu.matmul %424, %446, %cst_180 {dimension_numbers = #tpu.dot_dimension_numbers<[1], [0], [0], [1], [0, 0, 1, 1], [], []>} : vector<16x32xbf16>, vector<32x16xbf16>, vector<16x16xf32> -> vector<16x16xf32>
    %c0_181 = arith.constant 0 : index
    %c0_182 = arith.constant 0 : index
    %448 = vector.load %arg14[%c0_181, %c0_182] : memref<1x16xf32, #tpu.memory_space<vmem>>, vector<1x16xf32>
    %449 = vector.broadcast %448 : vector<1x16xf32> to vector<16x16xf32>
    %450 = arith.addf %447, %449 : vector<16x16xf32>
    %451 = arith.negf %450 : vector<16x16xf32>
    %452 = math.exp %451 : vector<16x16xf32>
    %cst_183 = arith.constant 1.000000e+00 : f32
    %453 = vector.broadcast %cst_183 : f32 to vector<16x16xf32>
    %454 = arith.addf %453, %452 : vector<16x16xf32>
    %455 = arith.divf %453, %454 : vector<16x16xf32>
    %456 = arith.mulf %450, %455 : vector<16x16xf32>
    %c0_184 = arith.constant 0 : index
    %c0_185 = arith.constant 0 : index
    %457 = vector.load %arg15[%c0_184, %c0_185] : memref<32x64xbf16, #tpu.memory_space<vmem>>, vector<32x64xbf16>
    %cst_186 = arith.constant dense<0.000000e+00> : vector<16x64xf32>
    %458 = tpu.matmul %424, %457, %cst_186 {dimension_numbers = #tpu.dot_dimension_numbers<[1], [0], [0], [1], [0, 0, 1, 1], [], []>} : vector<16x32xbf16>, vector<32x64xbf16>, vector<16x64xf32> -> vector<16x64xf32>
    %c0_187 = arith.constant 0 : index
    %c0_188 = arith.constant 0 : index
    %459 = vector.load %arg16[%c0_187, %c0_188] : memref<1x64xf32, #tpu.memory_space<vmem>>, vector<1x64xf32>
    %460 = vector.broadcast %459 : vector<1x64xf32> to vector<16x64xf32>
    %461 = arith.addf %458, %460 : vector<16x64xf32>
    %462 = arith.negf %461 : vector<16x64xf32>
    %463 = math.exp %462 : vector<16x64xf32>
    %cst_189 = arith.constant 1.000000e+00 : f32
    %464 = vector.broadcast %cst_189 : f32 to vector<16x64xf32>
    %465 = arith.addf %464, %463 : vector<16x64xf32>
    %466 = arith.divf %464, %465 : vector<16x64xf32>
    %467 = arith.mulf %461, %466 : vector<16x64xf32>
    %c0_190 = arith.constant 0 : index
    %c0_191 = arith.constant 0 : index
    %468 = vector.load %arg17[%c0_190, %c0_191] : memref<32x32xbf16, #tpu.memory_space<vmem>>, vector<32x32xbf16>
    %cst_192 = arith.constant dense<0.000000e+00> : vector<16x32xf32>
    %469 = tpu.matmul %424, %468, %cst_192 {dimension_numbers = #tpu.dot_dimension_numbers<[1], [0], [0], [1], [0, 0, 1, 1], [], []>} : vector<16x32xbf16>, vector<32x32xbf16>, vector<16x32xf32> -> vector<16x32xf32>
    %c0_193 = arith.constant 0 : index
    %c0_194 = arith.constant 0 : index
    %470 = vector.load %arg18[%c0_193, %c0_194] : memref<1x32xf32, #tpu.memory_space<vmem>>, vector<1x32xf32>
    %471 = vector.broadcast %470 : vector<1x32xf32> to vector<16x32xf32>
    %472 = arith.addf %469, %471 : vector<16x32xf32>
    %c0_195 = arith.constant 0 : index
    %c0_196 = arith.constant 0 : index
    %473 = vector.load %arg19[%c0_195, %c0_196] : memref<1x16xf32, #tpu.memory_space<vmem>>, vector<1x16xf32>
    %474 = vector.broadcast %473 : vector<1x16xf32> to vector<16x16xf32>
    %475 = arith.mulf %456, %474 : vector<16x16xf32>
    %c0_197 = arith.constant 0 : index
    %c0_198 = arith.constant 0 : index
    %476 = vector.load %arg20[%c0_197, %c0_198] : memref<1x16xf32, #tpu.memory_space<vmem>>, vector<1x16xf32>
    %477 = vector.broadcast %476 : vector<1x16xf32> to vector<16x16xf32>
    %478 = arith.addf %475, %477 : vector<16x16xf32>
    %c0_199 = arith.constant 0 : index
    %c0_200 = arith.constant 0 : index
    %479 = vector.load %arg21[%c0_199, %c0_200] : memref<1x16xf32, #tpu.memory_space<vmem>>, vector<1x16xf32>
    %480 = vector.broadcast %479 : vector<1x16xf32> to vector<16x16xf32>
    %481 = arith.mulf %456, %480 : vector<16x16xf32>
    %c0_201 = arith.constant 0 : index
    %c0_202 = arith.constant 0 : index
    %482 = vector.load %arg22[%c0_201, %c0_202] : memref<1x16xf32, #tpu.memory_space<vmem>>, vector<1x16xf32>
    %483 = vector.broadcast %482 : vector<1x16xf32> to vector<16x16xf32>
    %484 = arith.addf %481, %483 : vector<16x16xf32>
    %485 = arith.truncf %478 : vector<16x16xf32> to vector<16x16xbf16>
    %486 = arith.truncf %484 : vector<16x16xf32> to vector<16x16xbf16>
    %cst_203 = arith.constant dense<0.000000e+00> : vector<16x16xf32>
    %487 = tpu.matmul %485, %486, %cst_203 {dimension_numbers = #tpu.dot_dimension_numbers<[1], [1], [0], [0], [0, 0, 1, 0], [], []>} : vector<16x16xbf16>, vector<16x16xbf16>, vector<16x16xf32> -> vector<16x16xf32>
    %c0_204 = arith.constant 0 : index
    %c0_205 = arith.constant 0 : index
    %488 = vector.load %arg23[%c0_204, %c0_205] : memref<16x16xf32, #tpu.memory_space<vmem>>, vector<16x16xf32>
    %489 = arith.addf %487, %488 : vector<16x16xf32>
    %cst_206 = arith.constant dense<0xFF800000> : vector<16xf32>
    %490 = vector.multi_reduction <maximumf>, %489, %cst_206 [1] : vector<16x16xf32> to vector<16xf32>
    %491 = vector.shape_cast %490 : vector<16xf32> to vector<16x1xf32>
    %492 = vector.broadcast %491 : vector<16x1xf32> to vector<16x16xf32>
    %493 = arith.subf %489, %492 : vector<16x16xf32>
    %494 = math.exp %493 : vector<16x16xf32>
    %cst_207 = arith.constant dense<0.000000e+00> : vector<16xf32>
    %495 = vector.multi_reduction <add>, %494, %cst_207 [1] : vector<16x16xf32> to vector<16xf32>
    %496 = vector.shape_cast %495 : vector<16xf32> to vector<16x1xf32>
    %497 = tpu.reciprocal %496 {approx = true} : vector<16x1xf32> -> vector<16x1xf32>
    %498 = vector.broadcast %497 : vector<16x1xf32> to vector<16x16xf32>
    %499 = arith.mulf %494, %498 : vector<16x16xf32>
    %500 = arith.truncf %499 : vector<16x16xf32> to vector<16x16xbf16>
    %501 = arith.truncf %435 : vector<16x64xf32> to vector<16x64xbf16>
    %cst_208 = arith.constant dense<0.000000e+00> : vector<16x64xf32>
    %502 = tpu.matmul %500, %501, %cst_208 {dimension_numbers = #tpu.dot_dimension_numbers<[1], [0], [0], [1], [0, 0, 1, 1], [], []>} : vector<16x16xbf16>, vector<16x64xbf16>, vector<16x64xf32> -> vector<16x64xf32>
    %503 = arith.mulf %502, %467 : vector<16x64xf32>
    %504 = arith.truncf %503 : vector<16x64xf32> to vector<16x64xbf16>
    %c0_209 = arith.constant 0 : index
    %c0_210 = arith.constant 0 : index
    %505 = vector.load %arg24[%c0_209, %c0_210] : memref<64x32xbf16, #tpu.memory_space<vmem>>, vector<64x32xbf16>
    %cst_211 = arith.constant dense<0.000000e+00> : vector<16x32xf32>
    %506 = tpu.matmul %504, %505, %cst_211 {dimension_numbers = #tpu.dot_dimension_numbers<[1], [0], [0], [1], [0, 0, 1, 1], [], []>} : vector<16x64xbf16>, vector<64x32xbf16>, vector<16x32xf32> -> vector<16x32xf32>
    %c0_212 = arith.constant 0 : index
    %c0_213 = arith.constant 0 : index
    %507 = vector.load %arg25[%c0_212, %c0_213] : memref<1x32xf32, #tpu.memory_space<vmem>>, vector<1x32xf32>
    %508 = vector.broadcast %507 : vector<1x32xf32> to vector<16x32xf32>
    %509 = arith.addf %506, %508 : vector<16x32xf32>
    %510 = arith.addf %472, %509 : vector<16x32xf32>
    %511 = arith.negf %510 : vector<16x32xf32>
    %512 = math.exp %511 : vector<16x32xf32>
    %cst_214 = arith.constant 1.000000e+00 : f32
    %513 = vector.broadcast %cst_214 : f32 to vector<16x32xf32>
    %514 = arith.addf %513, %512 : vector<16x32xf32>
    %515 = arith.divf %513, %514 : vector<16x32xf32>
    %516 = arith.mulf %510, %515 : vector<16x32xf32>
    %517 = arith.subf %516, %1 : vector<16x32xf32>
    %518 = arith.mulf %445, %517 : vector<16x32xf32>
    %519 = arith.addf %1, %518 : vector<16x32xf32>
    %c0_215 = arith.constant 0 : index
    %c0_216 = arith.constant 0 : index
    %520 = vector.load %arg26[%c0_215, %c0_216] : memref<1x32xf32, #tpu.memory_space<vmem>>, vector<1x32xf32>
    %c0_217 = arith.constant 0 : index
    %c0_218 = arith.constant 0 : index
    %521 = vector.load %arg27[%c0_217, %c0_218] : memref<1x32xf32, #tpu.memory_space<vmem>>, vector<1x32xf32>
    %cst_219 = arith.constant dense<0.000000e+00> : vector<16xf32>
    %522 = vector.multi_reduction <add>, %519, %cst_219 [1] : vector<16x32xf32> to vector<16xf32>
    %523 = vector.shape_cast %522 : vector<16xf32> to vector<16x1xf32>
    %cst_220 = arith.constant 3.200000e+01 : f32
    %524 = vector.broadcast %cst_220 : f32 to vector<16x1xf32>
    %525 = arith.divf %523, %524 : vector<16x1xf32>
    %526 = vector.broadcast %525 : vector<16x1xf32> to vector<16x32xf32>
    %527 = arith.subf %519, %526 : vector<16x32xf32>
    %528 = arith.mulf %527, %527 : vector<16x32xf32>
    %cst_221 = arith.constant dense<0.000000e+00> : vector<16xf32>
    %529 = vector.multi_reduction <add>, %528, %cst_221 [1] : vector<16x32xf32> to vector<16xf32>
    %530 = vector.shape_cast %529 : vector<16xf32> to vector<16x1xf32>
    %cst_222 = arith.constant 3.200000e+01 : f32
    %531 = vector.broadcast %cst_222 : f32 to vector<16x1xf32>
    %532 = arith.divf %530, %531 : vector<16x1xf32>
    %533 = vector.broadcast %525 : vector<16x1xf32> to vector<16x32xf32>
    %534 = arith.subf %519, %533 : vector<16x32xf32>
    %cst_223 = arith.constant 9.99999974E-6 : f32
    %535 = vector.broadcast %cst_223 : f32 to vector<16x1xf32>
    %536 = arith.addf %532, %535 : vector<16x1xf32>
    %537 = math.rsqrt %536 : vector<16x1xf32>
    %538 = vector.broadcast %537 : vector<16x1xf32> to vector<16x32xf32>
    %539 = arith.mulf %534, %538 : vector<16x32xf32>
    %540 = vector.broadcast %520 : vector<1x32xf32> to vector<16x32xf32>
    %541 = arith.mulf %539, %540 : vector<16x32xf32>
    %542 = vector.broadcast %521 : vector<1x32xf32> to vector<16x32xf32>
    %543 = arith.addf %541, %542 : vector<16x32xf32>
    %544 = arith.truncf %543 : vector<16x32xf32> to vector<16x32xbf16>
    %c0_224 = arith.constant 0 : index
    %c0_225 = arith.constant 0 : index
    %545 = vector.load %arg28[%c0_224, %c0_225] : memref<32x64xbf16, #tpu.memory_space<vmem>>, vector<32x64xbf16>
    %cst_226 = arith.constant dense<0.000000e+00> : vector<16x64xf32>
    %546 = tpu.matmul %544, %545, %cst_226 {dimension_numbers = #tpu.dot_dimension_numbers<[1], [0], [0], [1], [0, 0, 1, 1], [], []>} : vector<16x32xbf16>, vector<32x64xbf16>, vector<16x64xf32> -> vector<16x64xf32>
    %c0_227 = arith.constant 0 : index
    %c0_228 = arith.constant 0 : index
    %547 = vector.load %arg29[%c0_227, %c0_228] : memref<1x64xf32, #tpu.memory_space<vmem>>, vector<1x64xf32>
    %548 = vector.broadcast %547 : vector<1x64xf32> to vector<16x64xf32>
    %549 = arith.addf %546, %548 : vector<16x64xf32>
    %550 = arith.negf %549 : vector<16x64xf32>
    %551 = math.exp %550 : vector<16x64xf32>
    %cst_229 = arith.constant 1.000000e+00 : f32
    %552 = vector.broadcast %cst_229 : f32 to vector<16x64xf32>
    %553 = arith.addf %552, %551 : vector<16x64xf32>
    %554 = arith.divf %552, %553 : vector<16x64xf32>
    %555 = arith.mulf %549, %554 : vector<16x64xf32>
    %556 = arith.truncf %555 : vector<16x64xf32> to vector<16x64xbf16>
    %c0_230 = arith.constant 0 : index
    %c0_231 = arith.constant 0 : index
    %557 = vector.load %arg30[%c0_230, %c0_231] : memref<64x32xbf16, #tpu.memory_space<vmem>>, vector<64x32xbf16>
    %cst_232 = arith.constant dense<0.000000e+00> : vector<16x32xf32>
    %558 = tpu.matmul %556, %557, %cst_232 {dimension_numbers = #tpu.dot_dimension_numbers<[1], [0], [0], [1], [0, 0, 1, 1], [], []>} : vector<16x64xbf16>, vector<64x32xbf16>, vector<16x32xf32> -> vector<16x32xf32>
    %c0_233 = arith.constant 0 : index
    %c0_234 = arith.constant 0 : index
    %559 = vector.load %arg31[%c0_233, %c0_234] : memref<1x32xf32, #tpu.memory_space<vmem>>, vector<1x32xf32>
    %560 = vector.broadcast %559 : vector<1x32xf32> to vector<16x32xf32>
    %561 = arith.addf %558, %560 : vector<16x32xf32>
    %562 = arith.addf %561, %543 : vector<16x32xf32>
    %c0_235 = arith.constant 0 : index
    %c0_236 = arith.constant 0 : index
    %563 = vector.load %arg32[%c0_235, %c0_236] : memref<1x32xf32, #tpu.memory_space<vmem>>, vector<1x32xf32>
    %c0_237 = arith.constant 0 : index
    %c0_238 = arith.constant 0 : index
    %564 = vector.load %arg33[%c0_237, %c0_238] : memref<1x32xf32, #tpu.memory_space<vmem>>, vector<1x32xf32>
    %cst_239 = arith.constant dense<0.000000e+00> : vector<16xf32>
    %565 = vector.multi_reduction <add>, %562, %cst_239 [1] : vector<16x32xf32> to vector<16xf32>
    %566 = vector.shape_cast %565 : vector<16xf32> to vector<16x1xf32>
    %cst_240 = arith.constant 3.200000e+01 : f32
    %567 = vector.broadcast %cst_240 : f32 to vector<16x1xf32>
    %568 = arith.divf %566, %567 : vector<16x1xf32>
    %569 = vector.broadcast %568 : vector<16x1xf32> to vector<16x32xf32>
    %570 = arith.subf %562, %569 : vector<16x32xf32>
    %571 = arith.mulf %570, %570 : vector<16x32xf32>
    %cst_241 = arith.constant dense<0.000000e+00> : vector<16xf32>
    %572 = vector.multi_reduction <add>, %571, %cst_241 [1] : vector<16x32xf32> to vector<16xf32>
    %573 = vector.shape_cast %572 : vector<16xf32> to vector<16x1xf32>
    %cst_242 = arith.constant 3.200000e+01 : f32
    %574 = vector.broadcast %cst_242 : f32 to vector<16x1xf32>
    %575 = arith.divf %573, %574 : vector<16x1xf32>
    %576 = vector.broadcast %568 : vector<16x1xf32> to vector<16x32xf32>
    %577 = arith.subf %562, %576 : vector<16x32xf32>
    %cst_243 = arith.constant 9.99999974E-6 : f32
    %578 = vector.broadcast %cst_243 : f32 to vector<16x1xf32>
    %579 = arith.addf %575, %578 : vector<16x1xf32>
    %580 = math.rsqrt %579 : vector<16x1xf32>
    %581 = vector.broadcast %580 : vector<16x1xf32> to vector<16x32xf32>
    %582 = arith.mulf %577, %581 : vector<16x32xf32>
    %583 = vector.broadcast %563 : vector<1x32xf32> to vector<16x32xf32>
    %584 = arith.mulf %582, %583 : vector<16x32xf32>
    %585 = vector.broadcast %564 : vector<1x32xf32> to vector<16x32xf32>
    %586 = arith.addf %584, %585 : vector<16x32xf32>
    %c0_244 = arith.constant 0 : index
    %c0_245 = arith.constant 0 : index
    %c0_246 = arith.constant 0 : index
    %587 = vector.load %arg34[%c0_244, %c0_245, %c0_246] : memref<1x16x32xf32, #tpu.memory_space<vmem>>, vector<1x16x32xf32>
    %588 = vector.shape_cast %587 : vector<1x16x32xf32> to vector<16x32xf32>
    %589 = vector.shape_cast %586 : vector<16x32xf32> to vector<1x16x32xf32>
    tpu.vector_store %arg34[%c0_244, %c0_245, %c0_246], %589 {strides = array<i32>} : memref<1x16x32xf32, #tpu.memory_space<vmem>>, vector<1x16x32xf32>,
    return
  }
  func.func @transform_0(%arg0: i32) -> (i32, i32, i32) {
    %c0_i32 = arith.constant 0 : i32
    %c0_i32_0 = arith.constant 0 : i32
    %c0_i32_1 = arith.constant 0 : i32
    return %arg0, %c0_i32, %c0_i32_0 : i32, i32, i32
  }
  func.func @transform_1(%arg0: i32) -> (i32, i32) {
    %c0_i32 = arith.constant 0 : i32
    %c0_i32_0 = arith.constant 0 : i32
    %c0_i32_1 = arith.constant 0 : i32
    return %c0_i32, %c0_i32_0 : i32, i32
  }
  func.func @transform_2(%arg0: i32) -> (i32, i32) {
    %c0_i32 = arith.constant 0 : i32
    %c0_i32_0 = arith.constant 0 : i32
    %c0_i32_1 = arith.constant 0 : i32
    return %c0_i32, %c0_i32_0 : i32, i32
  }
  func.func @transform_3(%arg0: i32) -> (i32, i32) {
    %c0_i32 = arith.constant 0 : i32
    %c0_i32_0 = arith.constant 0 : i32
    %c0_i32_1 = arith.constant 0 : i32
    return %c0_i32, %c0_i32_0 : i32, i32
  }
  func.func @transform_4(%arg0: i32) -> (i32, i32) {
    %c0_i32 = arith.constant 0 : i32
    %c0_i32_0 = arith.constant 0 : i32
    %c0_i32_1 = arith.constant 0 : i32
    return %c0_i32, %c0_i32_0 : i32, i32
  }
  func.func @transform_5(%arg0: i32) -> (i32, i32) {
    %c0_i32 = arith.constant 0 : i32
    %c0_i32_0 = arith.constant 0 : i32
    %c0_i32_1 = arith.constant 0 : i32
    return %c0_i32, %c0_i32_0 : i32, i32
  }
  func.func @transform_6(%arg0: i32) -> (i32, i32) {
    %c0_i32 = arith.constant 0 : i32
    %c0_i32_0 = arith.constant 0 : i32
    %c0_i32_1 = arith.constant 0 : i32
    return %c0_i32, %c0_i32_0 : i32, i32
  }
  func.func @transform_7(%arg0: i32) -> (i32, i32) {
    %c0_i32 = arith.constant 0 : i32
    %c0_i32_0 = arith.constant 0 : i32
    %c0_i32_1 = arith.constant 0 : i32
    return %c0_i32, %c0_i32_0 : i32, i32
  }
  func.func @transform_8(%arg0: i32) -> (i32, i32) {
    %c0_i32 = arith.constant 0 : i32
    %c0_i32_0 = arith.constant 0 : i32
    %c0_i32_1 = arith.constant 0 : i32
    return %c0_i32, %c0_i32_0 : i32, i32
  }
  func.func @transform_9(%arg0: i32) -> (i32, i32) {
    %c0_i32 = arith.constant 0 : i32
    %c0_i32_0 = arith.constant 0 : i32
    %c0_i32_1 = arith.constant 0 : i32
    return %c0_i32, %c0_i32_0 : i32, i32
  }
  func.func @transform_10(%arg0: i32) -> (i32, i32) {
    %c0_i32 = arith.constant 0 : i32
    %c0_i32_0 = arith.constant 0 : i32
    %c0_i32_1 = arith.constant 0 : i32
    return %c0_i32, %c0_i32_0 : i32, i32
  }
  func.func @transform_11(%arg0: i32) -> (i32, i32) {
    %c0_i32 = arith.constant 0 : i32
    %c0_i32_0 = arith.constant 0 : i32
    %c0_i32_1 = arith.constant 0 : i32
    return %c0_i32, %c0_i32_0 : i32, i32
  }
  func.func @transform_12(%arg0: i32) -> (i32, i32) {
    %c0_i32 = arith.constant 0 : i32
    %c0_i32_0 = arith.constant 0 : i32
    %c0_i32_1 = arith.constant 0 : i32
    return %c0_i32, %c0_i32_0 : i32, i32
  }
  func.func @transform_13(%arg0: i32) -> (i32, i32) {
    %c0_i32 = arith.constant 0 : i32
    %c0_i32_0 = arith.constant 0 : i32
    %c0_i32_1 = arith.constant 0 : i32
    return %c0_i32, %c0_i32_0 : i32, i32
  }
  func.func @transform_14(%arg0: i32) -> (i32, i32) {
    %c0_i32 = arith.constant 0 : i32
    %c0_i32_0 = arith.constant 0 : i32
    %c0_i32_1 = arith.constant 0 : i32
    return %c0_i32, %c0_i32_0 : i32, i32
  }
  func.func @transform_15(%arg0: i32) -> (i32, i32) {
    %c0_i32 = arith.constant 0 : i32
    %c0_i32_0 = arith.constant 0 : i32
    %c0_i32_1 = arith.constant 0 : i32
    return %c0_i32, %c0_i32_0 : i32, i32
  }
  func.func @transform_16(%arg0: i32) -> (i32, i32) {
    %c0_i32 = arith.constant 0 : i32
    %c0_i32_0 = arith.constant 0 : i32
    %c0_i32_1 = arith.constant 0 : i32
    return %c0_i32, %c0_i32_0 : i32, i32
  }
  func.func @transform_17(%arg0: i32) -> (i32, i32) {
    %c0_i32 = arith.constant 0 : i32
    %c0_i32_0 = arith.constant 0 : i32
    %c0_i32_1 = arith.constant 0 : i32
    return %c0_i32, %c0_i32_0 : i32, i32
  }
  func.func @transform_18(%arg0: i32) -> (i32, i32) {
    %c0_i32 = arith.constant 0 : i32
    %c0_i32_0 = arith.constant 0 : i32
    %c0_i32_1 = arith.constant 0 : i32
    return %c0_i32, %c0_i32_0 : i32, i32
  }
  func.func @transform_19(%arg0: i32) -> (i32, i32) {
    %c0_i32 = arith.constant 0 : i32
    %c0_i32_0 = arith.constant 0 : i32
    %c0_i32_1 = arith.constant 0 : i32
    return %c0_i32, %c0_i32_0 : i32, i32
  }
  func.func @transform_20(%arg0: i32) -> (i32, i32) {
    %c0_i32 = arith.constant 0 : i32
    %c0_i32_0 = arith.constant 0 : i32
    %c0_i32_1 = arith.constant 0 : i32
    return %c0_i32, %c0_i32_0 : i32, i32
  }
  func.func @transform_21(%arg0: i32) -> (i32, i32) {
    %c0_i32 = arith.constant 0 : i32
    %c0_i32_0 = arith.constant 0 : i32
    %c0_i32_1 = arith.constant 0 : i32
    return %c0_i32, %c0_i32_0 : i32, i32
  }
  func.func @transform_22(%arg0: i32) -> (i32, i32) {
    %c0_i32 = arith.constant 0 : i32
    %c0_i32_0 = arith.constant 0 : i32
    %c0_i32_1 = arith.constant 0 : i32
    return %c0_i32, %c0_i32_0 : i32, i32
  }
  func.func @transform_23(%arg0: i32) -> (i32, i32) {
    %c0_i32 = arith.constant 0 : i32
    %c0_i32_0 = arith.constant 0 : i32
    %c0_i32_1 = arith.constant 0 : i32
    return %c0_i32, %c0_i32_0 : i32, i32
  }
  func.func @transform_24(%arg0: i32) -> (i32, i32) {
    %c0_i32 = arith.constant 0 : i32
    %c0_i32_0 = arith.constant 0 : i32
    %c0_i32_1 = arith.constant 0 : i32
    return %c0_i32, %c0_i32_0 : i32, i32
  }
  func.func @transform_25(%arg0: i32) -> (i32, i32) {
    %c0_i32 = arith.constant 0 : i32
    %c0_i32_0 = arith.constant 0 : i32
    %c0_i32_1 = arith.constant 0 : i32
    return %c0_i32, %c0_i32_0 : i32, i32
  }
  func.func @transform_26(%arg0: i32) -> (i32, i32) {
    %c0_i32 = arith.constant 0 : i32
    %c0_i32_0 = arith.constant 0 : i32
    %c0_i32_1 = arith.constant 0 : i32
    return %c0_i32, %c0_i32_0 : i32, i32
  }
  func.func @transform_27(%arg0: i32) -> (i32, i32) {
    %c0_i32 = arith.constant 0 : i32
    %c0_i32_0 = arith.constant 0 : i32
    %c0_i32_1 = arith.constant 0 : i32
    return %c0_i32, %c0_i32_0 : i32, i32
  }
  func.func @transform_28(%arg0: i32) -> (i32, i32) {
    %c0_i32 = arith.constant 0 : i32
    %c0_i32_0 = arith.constant 0 : i32
    %c0_i32_1 = arith.constant 0 : i32
    return %c0_i32, %c0_i32_0 : i32, i32
  }
  func.func @transform_29(%arg0: i32) -> (i32, i32) {
    %c0_i32 = arith.constant 0 : i32
    %c0_i32_0 = arith.constant 0 : i32
    %c0_i32_1 = arith.constant 0 : i32
    return %c0_i32, %c0_i32_0 : i32, i32
  }
  func.func @transform_30(%arg0: i32) -> (i32, i32) {
    %c0_i32 = arith.constant 0 : i32
    %c0_i32_0 = arith.constant 0 : i32
    %c0_i32_1 = arith.constant 0 : i32
    return %c0_i32, %c0_i32_0 : i32, i32
  }
  func.func @transform_31(%arg0: i32) -> (i32, i32) {
    %c0_i32 = arith.constant 0 : i32
    %c0_i32_0 = arith.constant 0 : i32
    %c0_i32_1 = arith.constant 0 : i32
    return %c0_i32, %c0_i32_0 : i32, i32
  }
  func.func @transform_32(%arg0: i32) -> (i32, i32) {
    %c0_i32 = arith.constant 0 : i32
    %c0_i32_0 = arith.constant 0 : i32
    %c0_i32_1 = arith.constant 0 : i32
    return %c0_i32, %c0_i32_0 : i32, i32
  }
  func.func @transform_33(%arg0: i32) -> (i32, i32, i32) {
    %c0_i32 = arith.constant 0 : i32
    %c0_i32_0 = arith.constant 0 : i32
    %c0_i32_1 = arith.constant 0 : i32
    return %arg0, %c0_i32, %c0_i32_0 : i32, i32, i32
  }
}

</mosaic_0001>

<llo_original>
// kernel: tpu_custom_call.1
$region0: #{tpu_custom_call.1}
  #allocation0 [shape = 'u32[]', space=smem, size = 0x4, offset = 0x4, fixed_abs, tag = 'smem constant byte address 0x4 - core index']
  #allocation1 [shape = 'u32[144,128]{1,0:T(1,128)}', space=vmem, size = 0x12000, scoped, tag = 'internal scratch']
  #allocation2 [shape = 'f32[16,32]{1,0:T(8,128)}', space=vmem, size = 0x2000, scoped, tag = 'scratch operand']
  #allocation3 [shape = 'f32[16,32]{1,0:T(8,128)}', space=vmem, size = 0x2000, scoped, tag = 'scratch operand']
  %s0 = inlined_call_operand.smem [shape: u32[34], index: -1, kind: input, shape index: {}]
  %s1 = sld [smem:[%s0]]
  %s2 = scalar_lea.smem %s0, 1
  %s3 = sld [smem:[%s2]]
  %s4 = scalar_lea.smem %s0, 2
  %s5 = sld [smem:[%s4]]
  %s6 = scalar_lea.smem %s0, 3
  %s7 = sld [smem:[%s6]]
  %s8 = scalar_lea.smem %s0, 4
  %s9 = sld [smem:[%s8]]
  %s10 = scalar_lea.smem %s0, 5
  %s11 = sld [smem:[%s10]]
  %s12 = scalar_lea.smem %s0, 6
  %s13 = sld [smem:[%s12]]
  %s14 = scalar_lea.smem %s0, 7
  %s15 = sld [smem:[%s14]]
  %s16 = scalar_lea.smem %s0, 8
  %s17 = sld [smem:[%s16]]
  %s18 = scalar_lea.smem %s0, 9
  %s19 = sld [smem:[%s18]]
  %s20 = scalar_lea.smem %s0, 10
  %s21 = sld [smem:[%s20]]
  %s22 = scalar_lea.smem %s0, 11
  %s23 = sld [smem:[%s22]]
  %s24 = scalar_lea.smem %s0, 12
  %s25 = sld [smem:[%s24]]
  %s26 = scalar_lea.smem %s0, 13
  %s27 = sld [smem:[%s26]]
  %s28 = scalar_lea.smem %s0, 14
  %s29 = sld [smem:[%s28]]
  %s30 = scalar_lea.smem %s0, 15
  %s31 = sld [smem:[%s30]]
  %s32 = scalar_lea.smem %s0, 16
  %s33 = sld [smem:[%s32]]
  %s34 = scalar_lea.smem %s0, 17
  %s35 = sld [smem:[%s34]]
  %s36 = scalar_lea.smem %s0, 18
  %s37 = sld [smem:[%s36]]
  %s38 = scalar_lea.smem %s0, 19
  %s39 = sld [smem:[%s38]]
  %s40 = scalar_lea.smem %s0, 20
  %s41 = sld [smem:[%s40]]
  %s42 = scalar_lea.smem %s0, 21
  %s43 = sld [smem:[%s42]]
  %s44 = scalar_lea.smem %s0, 22
  %s45 = sld [smem:[%s44]]
  %s46 = scalar_lea.smem %s0, 23
  %s47 = sld [smem:[%s46]]
  %s48 = scalar_lea.smem %s0, 24
  %s49 = sld [smem:[%s48]]
  %s50 = scalar_lea.smem %s0, 25
  %s51 = sld [smem:[%s50]]
  %s52 = scalar_lea.smem %s0, 26
  %s53 = sld [smem:[%s52]]
  %s54 = scalar_lea.smem %s0, 27
  %s55 = sld [smem:[%s54]]
  %s56 = scalar_lea.smem %s0, 28
  %s57 = sld [smem:[%s56]]
  %s58 = scalar_lea.smem %s0, 29
  %s59 = sld [smem:[%s58]]
  %s60 = scalar_lea.smem %s0, 30
  %s61 = sld [smem:[%s60]]
  %s62 = scalar_lea.smem %s0, 31
  %s63 = sld [smem:[%s62]]
  %s64 = scalar_lea.smem %s0, 32
  %s65 = sld [smem:[%s64]]
  %s66 = scalar_lea.smem %s0, 33
  %s67 = sld [smem:[%s66]]
  %s68 = sld [smem:[#allocation0]]
  $region197: #{tpu_custom_call.1} parent=0
    _
  %s70 = ssub.s32 1, %s68
  %s71 = scalar_select 0, %s70, %s68
  $region1: #{tpu_custom_call.1} parent=0
    #allocation4 [shape = 'u8[2048]{0}', space=vmem, size = 0x800, scoped, tag = 'input window, operand 2, single buffered']
    #allocation5 [shape = 's32[2]{0}', space=sflag, size = 0x8, scoped, tag = 'scoped memory for tpu_custom_call.1']
    #allocation6 [shape = 's32[2]{0}', space=sflag, size = 0x8, scoped, tag = 'scoped memory for tpu_custom_call.1']
    #allocation7 [shape = 'u8[2048]{0}', space=vmem, size = 0x800, scoped, tag = 'input window, operand 3, single buffered']
    #allocation8 [shape = 's32[1]{0}', space=sflag, size = 0x4, scoped, tag = 'scoped memory for tpu_custom_call.1']
    #allocation9 [shape = 'u8[2048]{0}', space=vmem, size = 0x800, scoped, tag = 'input window, operand 4, single buffered']
    #allocation10 [shape = 'u8[2048]{0}', space=vmem, size = 0x800, scoped, tag = 'input window, operand 5, single buffered']
    #allocation11 [shape = 's32[1]{0}', space=sflag, size = 0x4, scoped, tag = 'scoped memory for tpu_custom_call.1']
    #allocation12 [shape = 'u8[2048]{0}', space=vmem, size = 0x800, scoped, tag = 'input window, operand 6, single buffered']
    #allocation13 [shape = 'u8[2048]{0}', space=vmem, size = 0x800, scoped, tag = 'input window, operand 7, single buffered']
    #allocation14 [shape = 's32[1]{0}', space=sflag, size = 0x4, scoped, tag = 'scoped memory for tpu_custom_call.1']
    #allocation15 [shape = 'u8[512]{0}', space=vmem, size = 0x400, scoped, tag = 'input window, operand 9, single buffered']
    #allocation16 [shape = 'u8[512]{0}', space=vmem, size = 0x400, scoped, tag = 'input window, operand 11, single buffered']
    #allocation17 [shape = 's32[1]{0}', space=sflag, size = 0x4, scoped, tag = 'scoped memory for tpu_custom_call.1']
    #allocation18 [shape = 'u8[16384]{0}', space=vmem, size = 0x4000, scoped, tag = 'output window, operand 0']
    %72 = vsyncpa [#allocation5], 0
    %73 = vsyncpa [#allocation8], 0
    %74 = vsyncpa [#allocation11], 0
    %75 = vsyncpa [#allocation14], 0
    %76 = vsyncpa [#allocation17], 0
    %77 = vsyncpa [#allocation6], 0
    %s78 = scalar_lea.sflag [#allocation6], 1
    %79 = vsyncpa %s78, 0
    loop: start=0, step=1, limit=4
    $region2: #{tpu_custom_call.1} parent=1 // loop_pre_header
      _
    $region3: #{tpu_custom_call.1} parent=1 // loop_header
      %s81 = sphi 0, %s85
      %p82 = scmp.ge.s32.totalorder %s81, 4
      %s91 = sphi 0, %s93
      %s94 = sphi 0, %s91
      %s95 = sphi 0, %s94
      %s111 = sphi 0, %s95
      %s115 = sphi 0, %s115
      %s117 = sphi 0, %s115
      %s118 = sphi 0, %s117
      %s132 = sphi 0, %s118
      %s136 = sphi 0, %s136
      %s138 = sphi 0, %s136
      %s139 = sphi 0, %s138
      %s153 = sphi 0, %s139
      %s157 = sphi 0, %s157
      %s159 = sphi 0, %s157
      %s160 = sphi 0, %s159
      %s174 = sphi 0, %s160
      %s178 = sphi 0, %s178
      %s180 = sphi 0, %s178
      %s181 = sphi 0, %s180
      %s195 = sphi 0, %s181
      %s199 = sphi 0, %s199
      %s201 = sphi 0, %s199
      %s202 = sphi 0, %s201
      %s216 = sphi 0, %s202
      %s220 = sphi 0, %s220
      %s222 = sphi 0, %s220
      %s223 = sphi 0, %s222
      %s237 = sphi 0, %s223
      %s241 = sphi 0, %s241
      %s243 = sphi 0, %s241
      %s244 = sphi 0, %s243
      %s258 = sphi 0, %s244
      %s262 = sphi 0, %s262
      %s264 = sphi 0, %s262
      %s265 = sphi 0, %s264
      %s279 = sphi 0, %s265
      %s283 = sphi 0, %s283
      %s285 = sphi 0, %s283
      %s286 = sphi 0, %s285
      %s300 = sphi 0, %s286
      %s304 = sphi 0, %s304
      %s306 = sphi 0, %s304
      %s307 = sphi 0, %s306
      %s321 = sphi 0, %s307
      %s325 = sphi 0, %s325
      %s327 = sphi 0, %s325
      %s328 = sphi 0, %s327
      %s342 = sphi 0, %s328
      %s346 = sphi 0, %s346
      %s348 = sphi 0, %s346
      %s349 = sphi 0, %s348
      %s363 = sphi 0, %s349
      %s367 = sphi 0, %s367
      %s369 = sphi 0, %s367
      %s370 = sphi 0, %s369
      %s384 = sphi 0, %s370
      %s388 = sphi 0, %s388
      %s390 = sphi 0, %s388
      %s391 = sphi 0, %s390
      %s405 = sphi 0, %s391
      %s409 = sphi 0, %s409
      %s411 = sphi 0, %s409
      %s412 = sphi 0, %s411
      %s426 = sphi 0, %s412
      %s430 = sphi 0, %s430
      %s432 = sphi 0, %s430
      %s433 = sphi 0, %s432
      %s447 = sphi 0, %s433
      %s451 = sphi 0, %s451
      %s453 = sphi 0, %s451
      %s454 = sphi 0, %s453
      %s468 = sphi 0, %s454
      %s472 = sphi 0, %s472
      %s474 = sphi 0, %s472
      %s475 = sphi 0, %s474
      %s489 = sphi 0, %s475
      %s493 = sphi 0, %s493
      %s495 = sphi 0, %s493
      %s496 = sphi 0, %s495
      %s510 = sphi 0, %s496
      %s514 = sphi 0, %s514
      %s516 = sphi 0, %s514
      %s517 = sphi 0, %s516
      %s531 = sphi 0, %s517
      %s535 = sphi 0, %s535
      %s537 = sphi 0, %s535
      %s538 = sphi 0, %s537
      %s552 = sphi 0, %s538
      %s556 = sphi 0, %s556
      %s558 = sphi 0, %s556
      %s559 = sphi 0, %s558
      %s573 = sphi 0, %s559
      %s577 = sphi 0, %s577
      %s579 = sphi 0, %s577
      %s580 = sphi 0, %s579
      %s594 = sphi 0, %s580
      %s598 = sphi 0, %s598
      %s600 = sphi 0, %s598
      %s601 = sphi 0, %s600
      %s615 = sphi 0, %s601
      %s619 = sphi 0, %s619
      %s621 = sphi 0, %s619
      %s622 = sphi 0, %s621
      %s636 = sphi 0, %s622
      %s640 = sphi 0, %s640
      %s642 = sphi 0, %s640
      %s643 = sphi 0, %s642
      %s657 = sphi 0, %s643
      %s661 = sphi 0, %s661
      %s663 = sphi 0, %s661
      %s664 = sphi 0, %s663
      %s678 = sphi 0, %s664
      %s682 = sphi 0, %s682
      %s684 = sphi 0, %s682
      %s685 = sphi 0, %s684
      %s699 = sphi 0, %s685
      %s703 = sphi 0, %s703
      %s705 = sphi 0, %s703
      %s706 = sphi 0, %s705
      %s720 = sphi 0, %s706
      %s724 = sphi 0, %s724
      %s726 = sphi 0, %s724
      %s727 = sphi 0, %s726
      %s741 = sphi 0, %s727
      %s745 = sphi 0, %s745
      %s747 = sphi 0, %s745
      %s748 = sphi 0, %s747
      %s762 = sphi 0, %s748
      %s766 = sphi 0, %s766
      %s768 = sphi 0, %s766
      %s769 = sphi 0, %s768
      %s783 = sphi 0, %s769
      %s789 = sphi 0, %s791
      %s792 = sphi 0, %s789
      %s793 = sphi 0, %s792
      %s809 = sphi 0, %s793
    $region4: #{tpu_custom_call.1} parent=1 // loop_header_branch
      %84 = sbr.rel (%p82) target = $region8
    $region5: #{tpu_custom_call.1} parent=1 // loop_body
      %s86 = ssub.s32 %s81, 1
      %s87 = ssub.s32 %s81, 2
      %s88 = sadd.s32 %s81, 1
      %s89 = ssub.s32 %s81, %s88
      %p90 = scmp.eq.s32.totalorder %s89, 0
      %s92 = sadd.s32 %s91, 1
      %s93 = scalar_select %p90, %s91, %s92
      %p96 = pneg %p90
      %p97 = scmp.eq.s32.totalorder %s81, 1
      %p98 = por %p96, %p97
      %p99 = scmp.ne.s32.totalorder %s91, %s94
      %p100 = scmp.eq.s32.totalorder %s81, 0
      %p101 = por %p99, %p100
      %p102 = scmp.ne.s32.totalorder %s91, %s94
      %p103 = scmp.eq.s32.totalorder %s86, 1
      %p104 = por %p102, %p103
      %p105 = scmp.ne.s32.totalorder %s94, %s95
      %p106 = scmp.eq.s32.totalorder %s86, 0
      %p107 = por %p105, %p106
      %p108 = scmp.ne.s32.totalorder %s94, %s95
      %p109 = scmp.eq.s32.totalorder %s87, 1
      %p110 = por %p108, %p109
      %p112 = scmp.ne.s32.totalorder %s95, %s111
      %p113 = scmp.eq.s32.totalorder %s87, 0
      %p114 = por %p112, %p113
      %s116 = sadd.s32 %s115, 1
      %p119 = scmp.eq.s32.totalorder %s81, 1
      %p120 = scmp.ne.s32.totalorder %s115, %s117
      %p121 = scmp.eq.s32.totalorder %s81, 0
      %p122 = por %p120, %p121
      %p123 = scmp.ne.s32.totalorder %s115, %s117
      %p124 = scmp.eq.s32.totalorder %s86, 1
      %p125 = por %p123, %p124
      %p126 = scmp.ne.s32.totalorder %s117, %s118
      %p127 = scmp.eq.s32.totalorder %s86, 0
      %p128 = por %p126, %p127
      %p129 = scmp.ne.s32.totalorder %s117, %s118
      %p130 = scmp.eq.s32.totalorder %s87, 1
      %p131 = por %p129, %p130
      %p133 = scmp.ne.s32.totalorder %s118, %s132
      %p134 = scmp.eq.s32.totalorder %s87, 0
      %p135 = por %p133, %p134
      %s137 = sadd.s32 %s136, 1
      %p140 = scmp.eq.s32.totalorder %s81, 1
      %p141 = scmp.ne.s32.totalorder %s136, %s138
      %p142 = scmp.eq.s32.totalorder %s81, 0
      %p143 = por %p141, %p142
      %p144 = scmp.ne.s32.totalorder %s136, %s138
      %p145 = scmp.eq.s32.totalorder %s86, 1
      %p146 = por %p144, %p145
      %p147 = scmp.ne.s32.totalorder %s138, %s139
      %p148 = scmp.eq.s32.totalorder %s86, 0
      %p149 = por %p147, %p148
      %p150 = scmp.ne.s32.totalorder %s138, %s139
      %p151 = scmp.eq.s32.totalorder %s87, 1
      %p152 = por %p150, %p151
      %p154 = scmp.ne.s32.totalorder %s139, %s153
      %p155 = scmp.eq.s32.totalorder %s87, 0
      %p156 = por %p154, %p155
      %s158 = sadd.s32 %s157, 1
      %p161 = scmp.eq.s32.totalorder %s81, 1
      %p162 = scmp.ne.s32.totalorder %s157, %s159
      %p163 = scmp.eq.s32.totalorder %s81, 0
      %p164 = por %p162, %p163
      %p165 = scmp.ne.s32.totalorder %s157, %s159
      %p166 = scmp.eq.s32.totalorder %s86, 1
      %p167 = por %p165, %p166
      %p168 = scmp.ne.s32.totalorder %s159, %s160
      %p169 = scmp.eq.s32.totalorder %s86, 0
      %p170 = por %p168, %p169
      %p171 = scmp.ne.s32.totalorder %s159, %s160
      %p172 = scmp.eq.s32.totalorder %s87, 1
      %p173 = por %p171, %p172
      %p175 = scmp.ne.s32.totalorder %s160, %s174
      %p176 = scmp.eq.s32.totalorder %s87, 0
      %p177 = por %p175, %p176
      %s179 = sadd.s32 %s178, 1
      %p182 = scmp.eq.s32.totalorder %s81, 1
      %p183 = scmp.ne.s32.totalorder %s178, %s180
      %p184 = scmp.eq.s32.totalorder %s81, 0
      %p185 = por %p183, %p184
      %p186 = scmp.ne.s32.totalorder %s178, %s180
      %p187 = scmp.eq.s32.totalorder %s86, 1
      %p188 = por %p186, %p187
      %p189 = scmp.ne.s32.totalorder %s180, %s181
      %p190 = scmp.eq.s32.totalorder %s86, 0
      %p191 = por %p189, %p190
      %p192 = scmp.ne.s32.totalorder %s180, %s181
      %p193 = scmp.eq.s32.totalorder %s87, 1
      %p194 = por %p192, %p193
      %p196 = scmp.ne.s32.totalorder %s181, %s195
      %p197 = scmp.eq.s32.totalorder %s87, 0
      %p198 = por %p196, %p197
      %s200 = sadd.s32 %s199, 1
      %p203 = scmp.eq.s32.totalorder %s81, 1
      %p204 = scmp.ne.s32.totalorder %s199, %s201
      %p205 = scmp.eq.s32.totalorder %s81, 0
      %p206 = por %p204, %p205
      %p207 = scmp.ne.s32.totalorder %s199, %s201
      %p208 = scmp.eq.s32.totalorder %s86, 1
      %p209 = por %p207, %p208
      %p210 = scmp.ne.s32.totalorder %s201, %s202
      %p211 = scmp.eq.s32.totalorder %s86, 0
      %p212 = por %p210, %p211
      %p213 = scmp.ne.s32.totalorder %s201, %s202
      %p214 = scmp.eq.s32.totalorder %s87, 1
      %p215 = por %p213, %p214
      %p217 = scmp.ne.s32.totalorder %s202, %s216
      %p218 = scmp.eq.s32.totalorder %s87, 0
      %p219 = por %p217, %p218
      %s221 = sadd.s32 %s220, 1
      %p224 = scmp.eq.s32.totalorder %s81, 1
      %p225 = scmp.ne.s32.totalorder %s220, %s222
      %p226 = scmp.eq.s32.totalorder %s81, 0
      %p227 = por %p225, %p226
      %p228 = scmp.ne.s32.totalorder %s220, %s222
      %p229 = scmp.eq.s32.totalorder %s86, 1
      %p230 = por %p228, %p229
      %p231 = scmp.ne.s32.totalorder %s222, %s223
      %p232 = scmp.eq.s32.totalorder %s86, 0
      %p233 = por %p231, %p232
      %p234 = scmp.ne.s32.totalorder %s222, %s223
      %p235 = scmp.eq.s32.totalorder %s87, 1
      %p236 = por %p234, %p235
      %p238 = scmp.ne.s32.totalorder %s223, %s237
      %p239 = scmp.eq.s32.totalorder %s87, 0
      %p240 = por %p238, %p239
      %s242 = sadd.s32 %s241, 1
      %p245 = scmp.eq.s32.totalorder %s81, 1
      %p246 = scmp.ne.s32.totalorder %s241, %s243
      %p247 = scmp.eq.s32.totalorder %s81, 0
      %p248 = por %p246, %p247
      %p249 = scmp.ne.s32.totalorder %s241, %s243
      %p250 = scmp.eq.s32.totalorder %s86, 1
      %p251 = por %p249, %p250
      %p252 = scmp.ne.s32.totalorder %s243, %s244
      %p253 = scmp.eq.s32.totalorder %s86, 0
      %p254 = por %p252, %p253
      %p255 = scmp.ne.s32.totalorder %s243, %s244
      %p256 = scmp.eq.s32.totalorder %s87, 1
      %p257 = por %p255, %p256
      %p259 = scmp.ne.s32.totalorder %s244, %s258
      %p260 = scmp.eq.s32.totalorder %s87, 0
      %p261 = por %p259, %p260
      %s263 = sadd.s32 %s262, 1
      %p266 = scmp.eq.s32.totalorder %s81, 1
      %p267 = scmp.ne.s32.totalorder %s262, %s264
      %p268 = scmp.eq.s32.totalorder %s81, 0
      %p269 = por %p267, %p268
      %p270 = scmp.ne.s32.totalorder %s262, %s264
      %p271 = scmp.eq.s32.totalorder %s86, 1
      %p272 = por %p270, %p271
      %p273 = scmp.ne.s32.totalorder %s264, %s265
      %p274 = scmp.eq.s32.totalorder %s86, 0
      %p275 = por %p273, %p274
      %p276 = scmp.ne.s32.totalorder %s264, %s265
      %p277 = scmp.eq.s32.totalorder %s87, 1
      %p278 = por %p276, %p277
      %p280 = scmp.ne.s32.totalorder %s265, %s279
      %p281 = scmp.eq.s32.totalorder %s87, 0
      %p282 = por %p280, %p281
      %s284 = sadd.s32 %s283, 1
      %p287 = scmp.eq.s32.totalorder %s81, 1
      %p288 = scmp.ne.s32.totalorder %s283, %s285
      %p289 = scmp.eq.s32.totalorder %s81, 0
      %p290 = por %p288, %p289
      %p291 = scmp.ne.s32.totalorder %s283, %s285
      %p292 = scmp.eq.s32.totalorder %s86, 1
      %p293 = por %p291, %p292
      %p294 = scmp.ne.s32.totalorder %s285, %s286
      %p295 = scmp.eq.s32.totalorder %s86, 0
      %p296 = por %p294, %p295
      %p297 = scmp.ne.s32.totalorder %s285, %s286
      %p298 = scmp.eq.s32.totalorder %s87, 1
      %p299 = por %p297, %p298
      %p301 = scmp.ne.s32.totalorder %s286, %s300
      %p302 = scmp.eq.s32.totalorder %s87, 0
      %p303 = por %p301, %p302
      %s305 = sadd.s32 %s304, 1
      %p308 = scmp.eq.s32.totalorder %s81, 1
      %p309 = scmp.ne.s32.totalorder %s304, %s306
      %p310 = scmp.eq.s32.totalorder %s81, 0
      %p311 = por %p309, %p310
      %p312 = scmp.ne.s32.totalorder %s304, %s306
      %p313 = scmp.eq.s32.totalorder %s86, 1
      %p314 = por %p312, %p313
      %p315 = scmp.ne.s32.totalorder %s306, %s307
      %p316 = scmp.eq.s32.totalorder %s86, 0
      %p317 = por %p315, %p316
      %p318 = scmp.ne.s32.totalorder %s306, %s307
      %p319 = scmp.eq.s32.totalorder %s87, 1
      %p320 = por %p318, %p319
      %p322 = scmp.ne.s32.totalorder %s307, %s321
      %p323 = scmp.eq.s32.totalorder %s87, 0
      %p324 = por %p322, %p323
      %s326 = sadd.s32 %s325, 1
      %p329 = scmp.eq.s32.totalorder %s81, 1
      %p330 = scmp.ne.s32.totalorder %s325, %s327
      %p331 = scmp.eq.s32.totalorder %s81, 0
      %p332 = por %p330, %p331
      %p333 = scmp.ne.s32.totalorder %s325, %s327
      %p334 = scmp.eq.s32.totalorder %s86, 1
      %p335 = por %p333, %p334
      %p336 = scmp.ne.s32.totalorder %s327, %s328
      %p337 = scmp.eq.s32.totalorder %s86, 0
      %p338 = por %p336, %p337
      %p339 = scmp.ne.s32.totalorder %s327, %s328
      %p340 = scmp.eq.s32.totalorder %s87, 1
      %p341 = por %p339, %p340
      %p343 = scmp.ne.s32.totalorder %s328, %s342
      %p344 = scmp.eq.s32.totalorder %s87, 0
      %p345 = por %p343, %p344
      %s347 = sadd.s32 %s346, 1
      %p350 = scmp.eq.s32.totalorder %s81, 1
      %p351 = scmp.ne.s32.totalorder %s346, %s348
      %p352 = scmp.eq.s32.totalorder %s81, 0
      %p353 = por %p351, %p352
      %p354 = scmp.ne.s32.totalorder %s346, %s348
      %p355 = scmp.eq.s32.totalorder %s86, 1
      %p356 = por %p354, %p355
      %p357 = scmp.ne.s32.totalorder %s348, %s349
      %p358 = scmp.eq.s32.totalorder %s86, 0
      %p359 = por %p357, %p358
      %p360 = scmp.ne.s32.totalorder %s348, %s349
      %p361 = scmp.eq.s32.totalorder %s87, 1
      %p362 = por %p360, %p361
      %p364 = scmp.ne.s32.totalorder %s349, %s363
      %p365 = scmp.eq.s32.totalorder %s87, 0
      %p366 = por %p364, %p365
      %s368 = sadd.s32 %s367, 1
      %p371 = scmp.eq.s32.totalorder %s81, 1
      %p372 = scmp.ne.s32.totalorder %s367, %s369
      %p373 = scmp.eq.s32.totalorder %s81, 0
      %p374 = por %p372, %p373
      %p375 = scmp.ne.s32.totalorder %s367, %s369
      %p376 = scmp.eq.s32.totalorder %s86, 1
      %p377 = por %p375, %p376
      %p378 = scmp.ne.s32.totalorder %s369, %s370
      %p379 = scmp.eq.s32.totalorder %s86, 0
      %p380 = por %p378, %p379
      %p381 = scmp.ne.s32.totalorder %s369, %s370
      %p382 = scmp.eq.s32.totalorder %s87, 1
      %p383 = por %p381, %p382
      %p385 = scmp.ne.s32.totalorder %s370, %s384
      %p386 = scmp.eq.s32.totalorder %s87, 0
      %p387 = por %p385, %p386
      %s389 = sadd.s32 %s388, 1
      %p392 = scmp.eq.s32.totalorder %s81, 1
      %p393 = scmp.ne.s32.totalorder %s388, %s390
      %p394 = scmp.eq.s32.totalorder %s81, 0
      %p395 = por %p393, %p394
      %p396 = scmp.ne.s32.totalorder %s388, %s390
      %p397 = scmp.eq.s32.totalorder %s86, 1
      %p398 = por %p396, %p397
      %p399 = scmp.ne.s32.totalorder %s390, %s391
      %p400 = scmp.eq.s32.totalorder %s86, 0
      %p401 = por %p399, %p400
      %p402 = scmp.ne.s32.totalorder %s390, %s391
      %p403 = scmp.eq.s32.totalorder %s87, 1
      %p404 = por %p402, %p403
      %p406 = scmp.ne.s32.totalorder %s391, %s405
      %p407 = scmp.eq.s32.totalorder %s87, 0
      %p408 = por %p406, %p407
      %s410 = sadd.s32 %s409, 1
      %p413 = scmp.eq.s32.totalorder %s81, 1
      %p414 = scmp.ne.s32.totalorder %s409, %s411
      %p415 = scmp.eq.s32.totalorder %s81, 0
      %p416 = por %p414, %p415
      %p417 = scmp.ne.s32.totalorder %s409, %s411
      %p418 = scmp.eq.s32.totalorder %s86, 1
      %p419 = por %p417, %p418
      %p420 = scmp.ne.s32.totalorder %s411, %s412
      %p421 = scmp.eq.s32.totalorder %s86, 0
      %p422 = por %p420, %p421
      %p423 = scmp.ne.s32.totalorder %s411, %s412
      %p424 = scmp.eq.s32.totalorder %s87, 1
      %p425 = por %p423, %p424
      %p427 = scmp.ne.s32.totalorder %s412, %s426
      %p428 = scmp.eq.s32.totalorder %s87, 0
      %p429 = por %p427, %p428
      %s431 = sadd.s32 %s430, 1
      %p434 = scmp.eq.s32.totalorder %s81, 1
      %p435 = scmp.ne.s32.totalorder %s430, %s432
      %p436 = scmp.eq.s32.totalorder %s81, 0
      %p437 = por %p435, %p436
      %p438 = scmp.ne.s32.totalorder %s430, %s432
      %p439 = scmp.eq.s32.totalorder %s86, 1
      %p440 = por %p438, %p439
      %p441 = scmp.ne.s32.totalorder %s432, %s433
      %p442 = scmp.eq.s32.totalorder %s86, 0
      %p443 = por %p441, %p442
      %p444 = scmp.ne.s32.totalorder %s432, %s433
      %p445 = scmp.eq.s32.totalorder %s87, 1
      %p446 = por %p444, %p445
      %p448 = scmp.ne.s32.totalorder %s433, %s447
      %p449 = scmp.eq.s32.totalorder %s87, 0
      %p450 = por %p448, %p449
      %s452 = sadd.s32 %s451, 1
      %p455 = scmp.eq.s32.totalorder %s81, 1
      %p456 = scmp.ne.s32.totalorder %s451, %s453
      %p457 = scmp.eq.s32.totalorder %s81, 0
      %p458 = por %p456, %p457
      %p459 = scmp.ne.s32.totalorder %s451, %s453
      %p460 = scmp.eq.s32.totalorder %s86, 1
      %p461 = por %p459, %p460
      %p462 = scmp.ne.s32.totalorder %s453, %s454
      %p463 = scmp.eq.s32.totalorder %s86, 0
      %p464 = por %p462, %p463
      %p465 = scmp.ne.s32.totalorder %s453, %s454
      %p466 = scmp.eq.s32.totalorder %s87, 1
      %p467 = por %p465, %p466
      %p469 = scmp.ne.s32.totalorder %s454, %s468
      %p470 = scmp.eq.s32.totalorder %s87, 0
      %p471 = por %p469, %p470
      %s473 = sadd.s32 %s472, 1
      %p476 = scmp.eq.s32.totalorder %s81, 1
      %p477 = scmp.ne.s32.totalorder %s472, %s474
      %p478 = scmp.eq.s32.totalorder %s81, 0
      %p479 = por %p477, %p478
      %p480 = scmp.ne.s32.totalorder %s472, %s474
      %p481 = scmp.eq.s32.totalorder %s86, 1
      %p482 = por %p480, %p481
      %p483 = scmp.ne.s32.totalorder %s474, %s475
      %p484 = scmp.eq.s32.totalorder %s86, 0
      %p485 = por %p483, %p484
      %p486 = scmp.ne.s32.totalorder %s474, %s475
      %p487 = scmp.eq.s32.totalorder %s87, 1
      %p488 = por %p486, %p487
      %p490 = scmp.ne.s32.totalorder %s475, %s489
      %p491 = scmp.eq.s32.totalorder %s87, 0
      %p492 = por %p490, %p491
      %s494 = sadd.s32 %s493, 1
      %p497 = scmp.eq.s32.totalorder %s81, 1
      %p498 = scmp.ne.s32.totalorder %s493, %s495
      %p499 = scmp.eq.s32.totalorder %s81, 0
      %p500 = por %p498, %p499
      %p501 = scmp.ne.s32.totalorder %s493, %s495
      %p502 = scmp.eq.s32.totalorder %s86, 1
      %p503 = por %p501, %p502
      %p504 = scmp.ne.s32.totalorder %s495, %s496
      %p505 = scmp.eq.s32.totalorder %s86, 0
      %p506 = por %p504, %p505
      %p507 = scmp.ne.s32.totalorder %s495, %s496
      %p508 = scmp.eq.s32.totalorder %s87, 1
      %p509 = por %p507, %p508
      %p511 = scmp.ne.s32.totalorder %s496, %s510
      %p512 = scmp.eq.s32.totalorder %s87, 0
      %p513 = por %p511, %p512
      %s515 = sadd.s32 %s514, 1
      %p518 = scmp.eq.s32.totalorder %s81, 1
      %p519 = scmp.ne.s32.totalorder %s514, %s516
      %p520 = scmp.eq.s32.totalorder %s81, 0
      %p521 = por %p519, %p520
      %p522 = scmp.ne.s32.totalorder %s514, %s516
      %p523 = scmp.eq.s32.totalorder %s86, 1
      %p524 = por %p522, %p523
      %p525 = scmp.ne.s32.totalorder %s516, %s517
      %p526 = scmp.eq.s32.totalorder %s86, 0
      %p527 = por %p525, %p526
      %p528 = scmp.ne.s32.totalorder %s516, %s517
      %p529 = scmp.eq.s32.totalorder %s87, 1
      %p530 = por %p528, %p529
      %p532 = scmp.ne.s32.totalorder %s517, %s531
      %p533 = scmp.eq.s32.totalorder %s87, 0
      %p534 = por %p532, %p533
      %s536 = sadd.s32 %s535, 1
      %p539 = scmp.eq.s32.totalorder %s81, 1
      %p540 = scmp.ne.s32.totalorder %s535, %s537
      %p541 = scmp.eq.s32.totalorder %s81, 0
      %p542 = por %p540, %p541
      %p543 = scmp.ne.s32.totalorder %s535, %s537
      %p544 = scmp.eq.s32.totalorder %s86, 1
      %p545 = por %p543, %p544
      %p546 = scmp.ne.s32.totalorder %s537, %s538
      %p547 = scmp.eq.s32.totalorder %s86, 0
      %p548 = por %p546, %p547
      %p549 = scmp.ne.s32.totalorder %s537, %s538
      %p550 = scmp.eq.s32.totalorder %s87, 1
      %p551 = por %p549, %p550
      %p553 = scmp.ne.s32.totalorder %s538, %s552
      %p554 = scmp.eq.s32.totalorder %s87, 0
      %p555 = por %p553, %p554
      %s557 = sadd.s32 %s556, 1
      %p560 = scmp.eq.s32.totalorder %s81, 1
      %p561 = scmp.ne.s32.totalorder %s556, %s558
      %p562 = scmp.eq.s32.totalorder %s81, 0
      %p563 = por %p561, %p562
      %p564 = scmp.ne.s32.totalorder %s556, %s558
      %p565 = scmp.eq.s32.totalorder %s86, 1
      %p566 = por %p564, %p565
      %p567 = scmp.ne.s32.totalorder %s558, %s559
      %p568 = scmp.eq.s32.totalorder %s86, 0
      %p569 = por %p567, %p568
      %p570 = scmp.ne.s32.totalorder %s558, %s559
      %p571 = scmp.eq.s32.totalorder %s87, 1
      %p572 = por %p570, %p571
      %p574 = scmp.ne.s32.totalorder %s559, %s573
      %p575 = scmp.eq.s32.totalorder %s87, 0
      %p576 = por %p574, %p575
      %s578 = sadd.s32 %s577, 1
      %p581 = scmp.eq.s32.totalorder %s81, 1
      %p582 = scmp.ne.s32.totalorder %s577, %s579
      %p583 = scmp.eq.s32.totalorder %s81, 0
      %p584 = por %p582, %p583
      %p585 = scmp.ne.s32.totalorder %s577, %s579
      %p586 = scmp.eq.s32.totalorder %s86, 1
      %p587 = por %p585, %p586
      %p588 = scmp.ne.s32.totalorder %s579, %s580
      %p589 = scmp.eq.s32.totalorder %s86, 0
      %p590 = por %p588, %p589
      %p591 = scmp.ne.s32.totalorder %s579, %s580
      %p592 = scmp.eq.s32.totalorder %s87, 1
      %p593 = por %p591, %p592
      %p595 = scmp.ne.s32.totalorder %s580, %s594
      %p596 = scmp.eq.s32.totalorder %s87, 0
      %p597 = por %p595, %p596
      %s599 = sadd.s32 %s598, 1
      %p602 = scmp.eq.s32.totalorder %s81, 1
      %p603 = scmp.ne.s32.totalorder %s598, %s600
      %p604 = scmp.eq.s32.totalorder %s81, 0
      %p605 = por %p603, %p604
      %p606 = scmp.ne.s32.totalorder %s598, %s600
      %p607 = scmp.eq.s32.totalorder %s86, 1
      %p608 = por %p606, %p607
      %p609 = scmp.ne.s32.totalorder %s600, %s601
      %p610 = scmp.eq.s32.totalorder %s86, 0
      %p611 = por %p609, %p610
      %p612 = scmp.ne.s32.totalorder %s600, %s601
      %p613 = scmp.eq.s32.totalorder %s87, 1
      %p614 = por %p612, %p613
      %p616 = scmp.ne.s32.totalorder %s601, %s615
      %p617 = scmp.eq.s32.totalorder %s87, 0
      %p618 = por %p616, %p617
      %s620 = sadd.s32 %s619, 1
      %p623 = scmp.eq.s32.totalorder %s81, 1
      %p624 = scmp.ne.s32.totalorder %s619, %s621
      %p625 = scmp.eq.s32.totalorder %s81, 0
      %p626 = por %p624, %p625
      %p627 = scmp.ne.s32.totalorder %s619, %s621
      %p628 = scmp.eq.s32.totalorder %s86, 1
      %p629 = por %p627, %p628
      %p630 = scmp.ne.s32.totalorder %s621, %s622
      %p631 = scmp.eq.s32.totalorder %s86, 0
      %p632 = por %p630, %p631
      %p633 = scmp.ne.s32.totalorder %s621, %s622
      %p634 = scmp.eq.s32.totalorder %s87, 1
      %p635 = por %p633, %p634
      %p637 = scmp.ne.s32.totalorder %s622, %s636
      %p638 = scmp.eq.s32.totalorder %s87, 0
      %p639 = por %p637, %p638
      %s641 = sadd.s32 %s640, 1
      %p644 = scmp.eq.s32.totalorder %s81, 1
      %p645 = scmp.ne.s32.totalorder %s640, %s642
      %p646 = scmp.eq.s32.totalorder %s81, 0
      %p647 = por %p645, %p646
      %p648 = scmp.ne.s32.totalorder %s640, %s642
      %p649 = scmp.eq.s32.totalorder %s86, 1
      %p650 = por %p648, %p649
      %p651 = scmp.ne.s32.totalorder %s642, %s643
      %p652 = scmp.eq.s32.totalorder %s86, 0
      %p653 = por %p651, %p652
      %p654 = scmp.ne.s32.totalorder %s642, %s643
      %p655 = scmp.eq.s32.totalorder %s87, 1
      %p656 = por %p654, %p655
      %p658 = scmp.ne.s32.totalorder %s643, %s657
      %p659 = scmp.eq.s32.totalorder %s87, 0
      %p660 = por %p658, %p659
      %s662 = sadd.s32 %s661, 1
      %p665 = scmp.eq.s32.totalorder %s81, 1
      %p666 = scmp.ne.s32.totalorder %s661, %s663
      %p667 = scmp.eq.s32.totalorder %s81, 0
      %p668 = por %p666, %p667
      %p669 = scmp.ne.s32.totalorder %s661, %s663
      %p670 = scmp.eq.s32.totalorder %s86, 1
      %p671 = por %p669, %p670
      %p672 = scmp.ne.s32.totalorder %s663, %s664
      %p673 = scmp.eq.s32.totalorder %s86, 0
      %p674 = por %p672, %p673
      %p675 = scmp.ne.s32.totalorder %s663, %s664
      %p676 = scmp.eq.s32.totalorder %s87, 1
      %p677 = por %p675, %p676
      %p679 = scmp.ne.s32.totalorder %s664, %s678
      %p680 = scmp.eq.s32.totalorder %s87, 0
      %p681 = por %p679, %p680
      %s683 = sadd.s32 %s682, 1
      %p686 = scmp.eq.s32.totalorder %s81, 1
      %p687 = scmp.ne.s32.totalorder %s682, %s684
      %p688 = scmp.eq.s32.totalorder %s81, 0
      %p689 = por %p687, %p688
      %p690 = scmp.ne.s32.totalorder %s682, %s684
      %p691 = scmp.eq.s32.totalorder %s86, 1
      %p692 = por %p690, %p691
      %p693 = scmp.ne.s32.totalorder %s684, %s685
      %p694 = scmp.eq.s32.totalorder %s86, 0
      %p695 = por %p693, %p694
      %p696 = scmp.ne.s32.totalorder %s684, %s685
      %p697 = scmp.eq.s32.totalorder %s87, 1
      %p698 = por %p696, %p697
      %p700 = scmp.ne.s32.totalorder %s685, %s699
      %p701 = scmp.eq.s32.totalorder %s87, 0
      %p702 = por %p700, %p701
      %s704 = sadd.s32 %s703, 1
      %p707 = scmp.eq.s32.totalorder %s81, 1
      %p708 = scmp.ne.s32.totalorder %s703, %s705
      %p709 = scmp.eq.s32.totalorder %s81, 0
      %p710 = por %p708, %p709
      %p711 = scmp.ne.s32.totalorder %s703, %s705
      %p712 = scmp.eq.s32.totalorder %s86, 1
      %p713 = por %p711, %p712
      %p714 = scmp.ne.s32.totalorder %s705, %s706
      %p715 = scmp.eq.s32.totalorder %s86, 0
      %p716 = por %p714, %p715
      %p717 = scmp.ne.s32.totalorder %s705, %s706
      %p718 = scmp.eq.s32.totalorder %s87, 1
      %p719 = por %p717, %p718
      %p721 = scmp.ne.s32.totalorder %s706, %s720
      %p722 = scmp.eq.s32.totalorder %s87, 0
      %p723 = por %p721, %p722
      %s725 = sadd.s32 %s724, 1
      %p728 = scmp.eq.s32.totalorder %s81, 1
      %p729 = scmp.ne.s32.totalorder %s724, %s726
      %p730 = scmp.eq.s32.totalorder %s81, 0
      %p731 = por %p729, %p730
      %p732 = scmp.ne.s32.totalorder %s724, %s726
      %p733 = scmp.eq.s32.totalorder %s86, 1
      %p734 = por %p732, %p733
      %p735 = scmp.ne.s32.totalorder %s726, %s727
      %p736 = scmp.eq.s32.totalorder %s86, 0
      %p737 = por %p735, %p736
      %p738 = scmp.ne.s32.totalorder %s726, %s727
      %p739 = scmp.eq.s32.totalorder %s87, 1
      %p740 = por %p738, %p739
      %p742 = scmp.ne.s32.totalorder %s727, %s741
      %p743 = scmp.eq.s32.totalorder %s87, 0
      %p744 = por %p742, %p743
      %s746 = sadd.s32 %s745, 1
      %p749 = scmp.eq.s32.totalorder %s81, 1
      %p750 = scmp.ne.s32.totalorder %s745, %s747
      %p751 = scmp.eq.s32.totalorder %s81, 0
      %p752 = por %p750, %p751
      %p753 = scmp.ne.s32.totalorder %s745, %s747
      %p754 = scmp.eq.s32.totalorder %s86, 1
      %p755 = por %p753, %p754
      %p756 = scmp.ne.s32.totalorder %s747, %s748
      %p757 = scmp.eq.s32.totalorder %s86, 0
      %p758 = por %p756, %p757
      %p759 = scmp.ne.s32.totalorder %s747, %s748
      %p760 = scmp.eq.s32.totalorder %s87, 1
      %p761 = por %p759, %p760
      %p763 = scmp.ne.s32.totalorder %s748, %s762
      %p764 = scmp.eq.s32.totalorder %s87, 0
      %p765 = por %p763, %p764
      %s767 = sadd.s32 %s766, 1
      %p770 = scmp.eq.s32.totalorder %s81, 1
      %p771 = scmp.ne.s32.totalorder %s766, %s768
      %p772 = scmp.eq.s32.totalorder %s81, 0
      %p773 = por %p771, %p772
      %p774 = scmp.ne.s32.totalorder %s766, %s768
      %p775 = scmp.eq.s32.totalorder %s86, 1
      %p776 = por %p774, %p775
      %p777 = scmp.ne.s32.totalorder %s768, %s769
      %p778 = scmp.eq.s32.totalorder %s86, 0
      %p779 = por %p777, %p778
      %p780 = scmp.ne.s32.totalorder %s768, %s769
      %p781 = scmp.eq.s32.totalorder %s87, 1
      %p782 = por %p780, %p781
      %p784 = scmp.ne.s32.totalorder %s769, %s783
      %p785 = scmp.eq.s32.totalorder %s87, 0
      %p786 = por %p784, %p785
      %s787 = ssub.s32 %s81, %s88
      %p788 = scmp.eq.s32.totalorder %s787, 0
      %s790 = sadd.s32 %s789, 1
      %s791 = scalar_select %p788, %s789, %s790
      %p794 = pneg %p788
      %p795 = scmp.eq.s32.totalorder %s81, 1
      %p796 = por %p794, %p795
      %p797 = scmp.ne.s32.totalorder %s789, %s792
      %p798 = scmp.eq.s32.totalorder %s81, 0
      %p799 = por %p797, %p798
      %p800 = scmp.ne.s32.totalorder %s789, %s792
      %p801 = scmp.eq.s32.totalorder %s86, 1
      %p802 = por %p800, %p801
      %p803 = scmp.ne.s32.totalorder %s792, %s793
      %p804 = scmp.eq.s32.totalorder %s86, 0
      %p805 = por %p803, %p804
      %p806 = scmp.ne.s32.totalorder %s792, %s793
      %p807 = scmp.eq.s32.totalorder %s87, 1
      %p808 = por %p806, %p807
      %p810 = scmp.ne.s32.totalorder %s793, %s809
      %p811 = scmp.eq.s32.totalorder %s87, 0
      %p812 = por %p810, %p811
      %p813 = scmp.le.s32.totalorder 1, %s81
      %p814 = scmp.lt.s32.totalorder %s81, 3
      %p815 = pnand %p813, %p814
      %p816 = pneg %p815
      // Predicated region
      $region9: #{tpu_custom_call.1} parent=5 // pred_check
        _
      $region10: #{tpu_custom_call.1} parent=5 // pred_check_branch
        %818 = sbr.rel (%p815) target = $region12
      $region11: #{tpu_custom_call.1} parent=5 // pred_region
        %s819 = ssub.s32 %s81, 1
        // Predicated region
        $region13: #{tpu_custom_call.1} parent=11 // pred_check
          %p820 = pneg %p128
        $region14: #{tpu_custom_call.1} parent=11 // pred_check_branch
          %822 = sbr.rel (%p820) target = $region16
        $region15: #{tpu_custom_call.1} parent=11 // pred_region
          _
        $region16: #{tpu_custom_call.1} parent=11 // pred_fallthru
          _
        // Predicated region
        $region17: #{tpu_custom_call.1} parent=11 // pred_check
          %p823 = pneg %p149
        $region18: #{tpu_custom_call.1} parent=11 // pred_check_branch
          %825 = sbr.rel (%p823) target = $region20
        $region19: #{tpu_custom_call.1} parent=11 // pred_region
          %s827 = ssub.s32 64, 64
          %828 = vsyncadd [#allocation5], %s827
          %s830 = sshll.u32 [#allocation4], 4
          %s831 = int_to_ptr.vmem [resolvable:$true] %s830
          %833 = dma.hbm_to_vmem [thread:$0]  %s5, 64, %s831, [#allocation5]
        $region20: #{tpu_custom_call.1} parent=11 // pred_fallthru
          _
        // Predicated region
        $region21: #{tpu_custom_call.1} parent=11 // pred_check
          %p834 = pneg %p170
        $region22: #{tpu_custom_call.1} parent=11 // pred_check_branch
          %836 = sbr.rel (%p834) target = $region24
        $region23: #{tpu_custom_call.1} parent=11 // pred_region
          %s838 = ssub.s32 64, 64
          %839 = vsyncadd [#allocation8], %s838
          %s841 = sshll.u32 [#allocation7], 4
          %s842 = int_to_ptr.vmem [resolvable:$true] %s841
          %844 = dma.hbm_to_vmem [thread:$0]  %s7, 64, %s842, [#allocation8]
        $region24: #{tpu_custom_call.1} parent=11 // pred_fallthru
          _
        // Predicated region
        $region25: #{tpu_custom_call.1} parent=11 // pred_check
          %p845 = pneg %p191
        $region26: #{tpu_custom_call.1} parent=11 // pred_check_branch
          %847 = sbr.rel (%p845) target = $region28
        $region27: #{tpu_custom_call.1} parent=11 // pred_region
          %s849 = ssub.s32 64, 64
          %850 = vsyncadd [#allocation8], %s849
          %s852 = sshll.u32 [#allocation9], 4
          %s853 = int_to_ptr.vmem [resolvable:$true] %s852
          %855 = dma.hbm_to_vmem [thread:$0]  %s9, 64, %s853, [#allocation8]
        $region28: #{tpu_custom_call.1} parent=11 // pred_fallthru
          _
        // Predicated region
        $region29: #{tpu_custom_call.1} parent=11 // pred_check
          %p856 = pneg %p212
        $region30: #{tpu_custom_call.1} parent=11 // pred_check_branch
          %858 = sbr.rel (%p856) target = $region32
        $region31: #{tpu_custom_call.1} parent=11 // pred_region
          %s860 = ssub.s32 64, 64
          %861 = vsyncadd [#allocation11], %s860
          %s863 = sshll.u32 [#allocation10], 4
          %s864 = int_to_ptr.vmem [resolvable:$true] %s863
          %866 = dma.hbm_to_vmem [thread:$0]  %s11, 64, %s864, [#allocation11]
        $region32: #{tpu_custom_call.1} parent=11 // pred_fallthru
          _
        // Predicated region
        $region33: #{tpu_custom_call.1} parent=11 // pred_check
          %p867 = pneg %p233
        $region34: #{tpu_custom_call.1} parent=11 // pred_check_branch
          %869 = sbr.rel (%p867) target = $region36
        $region35: #{tpu_custom_call.1} parent=11 // pred_region
          %s871 = ssub.s32 64, 64
          %872 = vsyncadd [#allocation11], %s871
          %s874 = sshll.u32 [#allocation12], 4
          %s875 = int_to_ptr.vmem [resolvable:$true] %s874
          %877 = dma.hbm_to_vmem [thread:$0]  %s13, 64, %s875, [#allocation11]
        $region36: #{tpu_custom_call.1} parent=11 // pred_fallthru
          _
        // Predicated region
        $region37: #{tpu_custom_call.1} parent=11 // pred_check
          %p878 = pneg %p254
        $region38: #{tpu_custom_call.1} parent=11 // pred_check_branch
          %880 = sbr.rel (%p878) target = $region40
        $region39: #{tpu_custom_call.1} parent=11 // pred_region
          %s882 = ssub.s32 64, 64
          %883 = vsyncadd [#allocation14], %s882
          %s885 = sshll.u32 [#allocation13], 4
          %s886 = int_to_ptr.vmem [resolvable:$true] %s885
          %888 = dma.hbm_to_vmem [thread:$0]  %s15, 64, %s886, [#allocation14]
        $region40: #{tpu_custom_call.1} parent=11 // pred_fallthru
          _
        // Predicated region
        $region41: #{tpu_custom_call.1} parent=11 // pred_check
          %p889 = pneg %p275
        $region42: #{tpu_custom_call.1} parent=11 // pred_check_branch
          %891 = sbr.rel (%p889) target = $region44
        $region43: #{tpu_custom_call.1} parent=11 // pred_region
          _
        $region44: #{tpu_custom_call.1} parent=11 // pred_fallthru
          _
        // Predicated region
        $region45: #{tpu_custom_call.1} parent=11 // pred_check
          %p892 = pneg %p296
        $region46: #{tpu_custom_call.1} parent=11 // pred_check_branch
          %894 = sbr.rel (%p892) target = $region48
        $region47: #{tpu_custom_call.1} parent=11 // pred_region
          %s896 = ssub.s32 16, 16
          %897 = vsyncadd [#allocation14], %s896
          %s899 = sshll.u32 [#allocation15], 4
          %s900 = int_to_ptr.vmem [resolvable:$true] %s899
          %902 = dma.hbm_to_vmem [thread:$0]  %s19, 16, %s900, [#allocation14]
        $region48: #{tpu_custom_call.1} parent=11 // pred_fallthru
          _
        // Predicated region
        $region49: #{tpu_custom_call.1} parent=11 // pred_check
          %p903 = pneg %p317
        $region50: #{tpu_custom_call.1} parent=11 // pred_check_branch
          %905 = sbr.rel (%p903) target = $region52
        $region51: #{tpu_custom_call.1} parent=11 // pred_region
          _
        $region52: #{tpu_custom_call.1} parent=11 // pred_fallthru
          _
        // Predicated region
        $region53: #{tpu_custom_call.1} parent=11 // pred_check
          %p906 = pneg %p338
        $region54: #{tpu_custom_call.1} parent=11 // pred_check_branch
          %908 = sbr.rel (%p906) target = $region56
        $region55: #{tpu_custom_call.1} parent=11 // pred_region
          %s910 = ssub.s32 16, 16
          %911 = vsyncadd [#allocation17], %s910
          %s913 = sshll.u32 [#allocation16], 4
          %s914 = int_to_ptr.vmem [resolvable:$true] %s913
          %916 = dma.hbm_to_vmem [thread:$0]  %s23, 16, %s914, [#allocation17]
        $region56: #{tpu_custom_call.1} parent=11 // pred_fallthru
          _
        // Predicated region
        $region57: #{tpu_custom_call.1} parent=11 // pred_check
          %p917 = pneg %p359
        $region58: #{tpu_custom_call.1} parent=11 // pred_check_branch
          %919 = sbr.rel (%p917) target = $region60
        $region59: #{tpu_custom_call.1} parent=11 // pred_region
          _
        $region60: #{tpu_custom_call.1} parent=11 // pred_fallthru
          _
        // Predicated region
        $region61: #{tpu_custom_call.1} parent=11 // pred_check
          %p920 = pneg %p380
        $region62: #{tpu_custom_call.1} parent=11 // pred_check_branch
          %922 = sbr.rel (%p920) target = $region64
        $region63: #{tpu_custom_call.1} parent=11 // pred_region
          _
        $region64: #{tpu_custom_call.1} parent=11 // pred_fallthru
          _
        // Predicated region
        $region65: #{tpu_custom_call.1} parent=11 // pred_check
          %p923 = pneg %p401
        $region66: #{tpu_custom_call.1} parent=11 // pred_check_branch
          %925 = sbr.rel (%p923) target = $region68
        $region67: #{tpu_custom_call.1} parent=11 // pred_region
          _
        $region68: #{tpu_custom_call.1} parent=11 // pred_fallthru
          _
        // Predicated region
        $region69: #{tpu_custom_call.1} parent=11 // pred_check
          %p926 = pneg %p422
        $region70: #{tpu_custom_call.1} parent=11 // pred_check_branch
          %928 = sbr.rel (%p926) target = $region72
        $region71: #{tpu_custom_call.1} parent=11 // pred_region
          _
        $region72: #{tpu_custom_call.1} parent=11 // pred_fallthru
          _
        // Predicated region
        $region73: #{tpu_custom_call.1} parent=11 // pred_check
          %p929 = pneg %p443
        $region74: #{tpu_custom_call.1} parent=11 // pred_check_branch
          %931 = sbr.rel (%p929) target = $region76
        $region75: #{tpu_custom_call.1} parent=11 // pred_region
          _
        $region76: #{tpu_custom_call.1} parent=11 // pred_fallthru
          _
        // Predicated region
        $region77: #{tpu_custom_call.1} parent=11 // pred_check
          %p932 = pneg %p464
        $region78: #{tpu_custom_call.1} parent=11 // pred_check_branch
          %934 = sbr.rel (%p932) target = $region80
        $region79: #{tpu_custom_call.1} parent=11 // pred_region
          _
        $region80: #{tpu_custom_call.1} parent=11 // pred_fallthru
          _
        // Predicated region
        $region81: #{tpu_custom_call.1} parent=11 // pred_check
          %p935 = pneg %p485
        $region82: #{tpu_custom_call.1} parent=11 // pred_check_branch
          %937 = sbr.rel (%p935) target = $region84
        $region83: #{tpu_custom_call.1} parent=11 // pred_region
          _
        $region84: #{tpu_custom_call.1} parent=11 // pred_fallthru
          _
        // Predicated region
        $region85: #{tpu_custom_call.1} parent=11 // pred_check
          %p938 = pneg %p506
        $region86: #{tpu_custom_call.1} parent=11 // pred_check_branch
          %940 = sbr.rel (%p938) target = $region88
        $region87: #{tpu_custom_call.1} parent=11 // pred_region
          _
        $region88: #{tpu_custom_call.1} parent=11 // pred_fallthru
          _
        // Predicated region
        $region89: #{tpu_custom_call.1} parent=11 // pred_check
          %p941 = pneg %p527
        $region90: #{tpu_custom_call.1} parent=11 // pred_check_branch
          %943 = sbr.rel (%p941) target = $region92
        $region91: #{tpu_custom_call.1} parent=11 // pred_region
          _
        $region92: #{tpu_custom_call.1} parent=11 // pred_fallthru
          _
        // Predicated region
        $region93: #{tpu_custom_call.1} parent=11 // pred_check
          %p944 = pneg %p548
        $region94: #{tpu_custom_call.1} parent=11 // pred_check_branch
          %946 = sbr.rel (%p944) target = $region96
        $region95: #{tpu_custom_call.1} parent=11 // pred_region
          _
        $region96: #{tpu_custom_call.1} parent=11 // pred_fallthru
          _
        // Predicated region
        $region97: #{tpu_custom_call.1} parent=11 // pred_check
          %p947 = pneg %p569
        $region98: #{tpu_custom_call.1} parent=11 // pred_check_branch
          %949 = sbr.rel (%p947) target = $region100
        $region99: #{tpu_custom_call.1} parent=11 // pred_region
          _
        $region100: #{tpu_custom_call.1} parent=11 // pred_fallthru
          _
        // Predicated region
        $region101: #{tpu_custom_call.1} parent=11 // pred_check
          %p950 = pneg %p590
        $region102: #{tpu_custom_call.1} parent=11 // pred_check_branch
          %952 = sbr.rel (%p950) target = $region104
        $region103: #{tpu_custom_call.1} parent=11 // pred_region
          _
        $region104: #{tpu_custom_call.1} parent=11 // pred_fallthru
          _
        // Predicated region
        $region105: #{tpu_custom_call.1} parent=11 // pred_check
          %p953 = pneg %p611
        $region106: #{tpu_custom_call.1} parent=11 // pred_check_branch
          %955 = sbr.rel (%p953) target = $region108
        $region107: #{tpu_custom_call.1} parent=11 // pred_region
          _
        $region108: #{tpu_custom_call.1} parent=11 // pred_fallthru
          _
        // Predicated region
        $region109: #{tpu_custom_call.1} parent=11 // pred_check
          %p956 = pneg %p632
        $region110: #{tpu_custom_call.1} parent=11 // pred_check_branch
          %958 = sbr.rel (%p956) target = $region112
        $region111: #{tpu_custom_call.1} parent=11 // pred_region
          _
        $region112: #{tpu_custom_call.1} parent=11 // pred_fallthru
          _
        // Predicated region
        $region113: #{tpu_custom_call.1} parent=11 // pred_check
          %p959 = pneg %p653
        $region114: #{tpu_custom_call.1} parent=11 // pred_check_branch
          %961 = sbr.rel (%p959) target = $region116
        $region115: #{tpu_custom_call.1} parent=11 // pred_region
          _
        $region116: #{tpu_custom_call.1} parent=11 // pred_fallthru
          _
        // Predicated region
        $region117: #{tpu_custom_call.1} parent=11 // pred_check
          %p962 = pneg %p674
        $region118: #{tpu_custom_call.1} parent=11 // pred_check_branch
          %964 = sbr.rel (%p962) target = $region120
        $region119: #{tpu_custom_call.1} parent=11 // pred_region
          _
        $region120: #{tpu_custom_call.1} parent=11 // pred_fallthru
          _
        // Predicated region
        $region121: #{tpu_custom_call.1} parent=11 // pred_check
          %p965 = pneg %p695
        $region122: #{tpu_custom_call.1} parent=11 // pred_check_branch
          %967 = sbr.rel (%p965) target = $region124
        $region123: #{tpu_custom_call.1} parent=11 // pred_region
          _
        $region124: #{tpu_custom_call.1} parent=11 // pred_fallthru
          _
        // Predicated region
        $region125: #{tpu_custom_call.1} parent=11 // pred_check
          %p968 = pneg %p716
        $region126: #{tpu_custom_call.1} parent=11 // pred_check_branch
          %970 = sbr.rel (%p968) target = $region128
        $region127: #{tpu_custom_call.1} parent=11 // pred_region
          _
        $region128: #{tpu_custom_call.1} parent=11 // pred_fallthru
          _
        // Predicated region
        $region129: #{tpu_custom_call.1} parent=11 // pred_check
          %p971 = pneg %p737
        $region130: #{tpu_custom_call.1} parent=11 // pred_check_branch
          %973 = sbr.rel (%p971) target = $region132
        $region131: #{tpu_custom_call.1} parent=11 // pred_region
          _
        $region132: #{tpu_custom_call.1} parent=11 // pred_fallthru
          _
        // Predicated region
        $region133: #{tpu_custom_call.1} parent=11 // pred_check
          %p974 = pneg %p758
        $region134: #{tpu_custom_call.1} parent=11 // pred_check_branch
          %976 = sbr.rel (%p974) target = $region136
        $region135: #{tpu_custom_call.1} parent=11 // pred_region
          _
        $region136: #{tpu_custom_call.1} parent=11 // pred_fallthru
          _
        // Predicated region
        $region137: #{tpu_custom_call.1} parent=11 // pred_check
          %p977 = pneg %p779
        $region138: #{tpu_custom_call.1} parent=11 // pred_check_branch
          %979 = sbr.rel (%p977) target = $region140
        $region139: #{tpu_custom_call.1} parent=11 // pred_region
          _
        $region140: #{tpu_custom_call.1} parent=11 // pred_fallthru
          _
      $region12: #{tpu_custom_call.1} parent=5 // pred_fallthru
        _
      %p980 = scmp.lt.s32.totalorder %s81, 2
      // Predicated region
      $region141: #{tpu_custom_call.1} parent=5 // pred_check
        %p981 = pneg %p980
      $region142: #{tpu_custom_call.1} parent=5 // pred_check_branch
        %983 = sbr.rel (%p981) target = $region144
      $region143: #{tpu_custom_call.1} parent=5 // pred_region
        // Predicated region
        $region145: #{tpu_custom_call.1} parent=143 // pred_check
          %p984 = pneg %p101
        $region146: #{tpu_custom_call.1} parent=143 // pred_check_branch
          %986 = sbr.rel (%p984) target = $region148
        $region147: #{tpu_custom_call.1} parent=143 // pred_region
          %p987 = scmp.lt.s32.totalorder %s81, 1
          %s988 = scalar_select %p987, %s81, 1
          %s989 = smul.addr %s988, 2
          %s990 = smul.addr %s989, 8
          %s991 = scalar_lea.vmem %s1, %s990
        $region148: #{tpu_custom_call.1} parent=143 // pred_fallthru
          _
      $region144: #{tpu_custom_call.1} parent=5 // pred_fallthru
        _
      %p992 = scmp.le.s32.totalorder 1, %s81
      %p993 = scmp.lt.s32.totalorder %s81, 3
      %p994 = pnand %p992, %p993
      %p995 = pneg %p994
      // Predicated region
      $region149: #{tpu_custom_call.1} parent=5 // pred_check
        _
      $region150: #{tpu_custom_call.1} parent=5 // pred_check_branch
        %997 = sbr.rel (%p994) target = $region152
      $region151: #{tpu_custom_call.1} parent=5 // pred_region
        %s998 = ssub.s32 %s81, 1
        // Predicated region
        $region153: #{tpu_custom_call.1} parent=151 // pred_check
          %p999 = pneg %p149
        $region154: #{tpu_custom_call.1} parent=151 // pred_check_branch
          %1001 = sbr.rel (%p999) target = $region156
        $region155: #{tpu_custom_call.1} parent=151 // pred_region
          %1002 = dma.done [#allocation5], 64
        $region156: #{tpu_custom_call.1} parent=151 // pred_fallthru
          _
        // Predicated region
        $region157: #{tpu_custom_call.1} parent=151 // pred_check
          %p1003 = pneg %p170
        $region158: #{tpu_custom_call.1} parent=151 // pred_check_branch
          %1005 = sbr.rel (%p1003) target = $region160
        $region159: #{tpu_custom_call.1} parent=151 // pred_region
          %1006 = dma.done [#allocation8], 64
        $region160: #{tpu_custom_call.1} parent=151 // pred_fallthru
          _
        // Predicated region
        $region161: #{tpu_custom_call.1} parent=151 // pred_check
          %p1007 = pneg %p191
        $region162: #{tpu_custom_call.1} parent=151 // pred_check_branch
          %1009 = sbr.rel (%p1007) target = $region164
        $region163: #{tpu_custom_call.1} parent=151 // pred_region
          %1010 = dma.done [#allocation8], 64
        $region164: #{tpu_custom_call.1} parent=151 // pred_fallthru
          _
        // Predicated region
        $region165: #{tpu_custom_call.1} parent=151 // pred_check
          %p1011 = pneg %p212
        $region166: #{tpu_custom_call.1} parent=151 // pred_check_branch
          %1013 = sbr.rel (%p1011) target = $region168
        $region167: #{tpu_custom_call.1} parent=151 // pred_region
          %1014 = dma.done [#allocation11], 64
        $region168: #{tpu_custom_call.1} parent=151 // pred_fallthru
          _
        // Predicated region
        $region169: #{tpu_custom_call.1} parent=151 // pred_check
          %p1015 = pneg %p233
        $region170: #{tpu_custom_call.1} parent=151 // pred_check_branch
          %1017 = sbr.rel (%p1015) target = $region172
        $region171: #{tpu_custom_call.1} parent=151 // pred_region
          %1018 = dma.done [#allocation11], 64
        $region172: #{tpu_custom_call.1} parent=151 // pred_fallthru
          _
        // Predicated region
        $region173: #{tpu_custom_call.1} parent=151 // pred_check
          %p1019 = pneg %p254
        $region174: #{tpu_custom_call.1} parent=151 // pred_check_branch
          %1021 = sbr.rel (%p1019) target = $region176
        $region175: #{tpu_custom_call.1} parent=151 // pred_region
          %1022 = dma.done [#allocation14], 64
        $region176: #{tpu_custom_call.1} parent=151 // pred_fallthru
          _
        // Predicated region
        $region177: #{tpu_custom_call.1} parent=151 // pred_check
          %p1023 = pneg %p296
        $region178: #{tpu_custom_call.1} parent=151 // pred_check_branch
          %1025 = sbr.rel (%p1023) target = $region180
        $region179: #{tpu_custom_call.1} parent=151 // pred_region
          %1026 = dma.done [#allocation14], 16
        $region180: #{tpu_custom_call.1} parent=151 // pred_fallthru
          _
        // Predicated region
        $region181: #{tpu_custom_call.1} parent=151 // pred_check
          %p1027 = pneg %p338
        $region182: #{tpu_custom_call.1} parent=151 // pred_check_branch
          %1029 = sbr.rel (%p1027) target = $region184
        $region183: #{tpu_custom_call.1} parent=151 // pred_region
          %1030 = dma.done [#allocation17], 16
        $region184: #{tpu_custom_call.1} parent=151 // pred_fallthru
          _
        %p1031 = scmp.lt.s32.totalorder %s86, 1
        %s1032 = scalar_select %p1031, %s86, 1
        %s1033 = smul.addr %s1032, 2
        %s1034 = smul.addr %s1033, 8
        %s1035 = scalar_lea.vmem %s1, %s1034
        %p1036 = pneg %p107
        %p1037 = pneg %p104
        %p1038 = pneg %p128
        %p1039 = pneg %p125
        %p1040 = pneg %p149
        %p1041 = pneg %p146
        %p1042 = pneg %p170
        %p1043 = pneg %p167
        %p1044 = pneg %p191
        %p1045 = pneg %p188
        %p1046 = pneg %p212
        %p1047 = pneg %p209
        %p1048 = pneg %p233
        %p1049 = pneg %p230
        %p1050 = pneg %p254
        %p1051 = pneg %p251
        %p1052 = pneg %p275
        %p1053 = pneg %p272
        %p1054 = pneg %p296
        %p1055 = pneg %p293
        %p1056 = pneg %p317
        %p1057 = pneg %p314
        %p1058 = pneg %p338
        %p1059 = pneg %p335
        %p1060 = pneg %p359
        %p1061 = pneg %p356
        %p1062 = pneg %p380
        %p1063 = pneg %p377
        %p1064 = pneg %p401
        %p1065 = pneg %p398
        %p1066 = pneg %p422
        %p1067 = pneg %p419
        %p1068 = pneg %p443
        %p1069 = pneg %p440
        %p1070 = pneg %p464
        %p1071 = pneg %p461
        %p1072 = pneg %p485
        %p1073 = pneg %p482
        %p1074 = pneg %p506
        %p1075 = pneg %p503
        %p1076 = pneg %p527
        %p1077 = pneg %p524
        %p1078 = pneg %p548
        %p1079 = pneg %p545
        %p1080 = pneg %p569
        %p1081 = pneg %p566
        %p1082 = pneg %p590
        %p1083 = pneg %p587
        %p1084 = pneg %p611
        %p1085 = pneg %p608
        %p1086 = pneg %p632
        %p1087 = pneg %p629
        %p1088 = pneg %p653
        %p1089 = pneg %p650
        %p1090 = pneg %p674
        %p1091 = pneg %p671
        %p1092 = pneg %p695
        %p1093 = pneg %p692
        %p1094 = pneg %p716
        %p1095 = pneg %p713
        %p1096 = pneg %p737
        %p1097 = pneg %p734
        %p1098 = pneg %p758
        %p1099 = pneg %p755
        %p1100 = pneg %p779
        %p1101 = pneg %p776
        %p1102 = pneg %p805
        %p1103 = pneg %p802
        %s1104 = sand.u32 %s792, 1
        %s1105 = scalar_lea.sflag [#allocation6], %s1104
        %s1106 = sand.u32 %s792, 1
        %s1107 = smul.addr %s1106, 16
        %s1108 = scalar_lea.vmem [#allocation18], %s1107
        %p1109 = scmp.lt.s32.totalorder %s86, 1
        %s1110 = scalar_select %p1109, %s86, 1
        %s1111 = smul.addr %s1110, 2
        %s1112 = smul.addr %s1111, 8
        %s1113 = scalar_lea.vmem %s1, %s1112
        %v1115 = vld [vmem:[%s1113] sm:$0xff]
        %v1116 = vld [vmem:[%s1113 + $0x8] sm:$0xff]
        %v1117 = vpack.c.bf16 %v1116, %v1115
        %v1118 = vld [vmem:[#allocation4] sm:$0xf]
        %v1119 = vld [vmem:[#allocation7] sm:$0xf]
        %v1120 = vld [vmem:[#allocation9] sm:$0xf]
        %v1121 = vld [vmem:[#allocation10] sm:$0xf]
        %v1122 = vld [vmem:[#allocation12] sm:$0xf]
        %v1123 = vld [vmem:[#allocation13] sm:$0xf]
        %v1124 = vld [vmem:[%s1113] sm:$0x1]
        %v1125 = vld [vmem:[%s1113 + $0xf] sm:$0x1]
        %v1126 = vmul.f32 %v1118, 0.0
        %v1127 = vlaneseq
        %v1128 = vshrl.u32 %v1127, 7
        %v1129 = vsub.s32 0, %v1128
        %v1130 = vrot.slane %v1124, %v1129
        %v1131 = vmul.f32 %v1119, %v1130
        %v1132 = vadd.f32 %v1126, %v1131
        %v1133 = vmul.f32 %v1121, 0.0
        %v1134 = vlaneseq
        %v1135 = vshrl.u32 %v1134, 7
        %v1136 = vsub.s32 0, %v1135
        %v1137 = vrot.slane %v1125, %v1136
        %v1138 = vmul.f32 %v1122, %v1137
        %v1139 = vadd.f32 %v1133, %v1138
        %v1140 = vmul.f32 %v1120, %v1132
        %vm1141 = vcmask 257024
        %v1142 = vsel %vm1141, %v1140, 0.0
        %v1143 = vrot.slane %v1142, 4
        %v1144 = vadd.f32 %v1142, %v1143
        %v1145 = vrot.slane %v1144, 2
        %v1146 = vadd.f32 %v1144, %v1145
        %v1147 = vrot.slane %v1146, 1
        %v1148 = vadd.f32 %v1146, %v1147
        %vm1149 = vcmask 253952
        %1150 = vst.msk [vmem:[#allocation2] sm:$0x1] %vm1149, %v1148
        %v1151 = vmul.f32 %v1123, %v1139
        %v1152 = vsel %vm1141, %v1151, 0.0
        %v1153 = vrot.slane %v1152, 4
        %v1154 = vadd.f32 %v1152, %v1153
        %v1155 = vrot.slane %v1154, 2
        %v1156 = vadd.f32 %v1154, %v1155
        %v1157 = vrot.slane %v1156, 1
        %v1158 = vadd.f32 %v1156, %v1157
        %1159 = vst.msk [vmem:[#allocation3 + $0xf] sm:$0x1] %vm1149, %v1158
        %v1160 = vld [vmem:[%s1113 + $0x1] sm:$0x1]
        %v1161 = vld [vmem:[%s1113 + $0xe] sm:$0x1]
        %v1162 = vmul.f32 %v1118, %v1132
        %v1163 = vlaneseq
        %v1164 = vshrl.u32 %v1163, 7
        %v1165 = vsub.s32 0, %v1164
        %v1166 = vrot.slane %v1160, %v1165
        %v1167 = vmul.f32 %v1119, %v1166
        %v1168 = vadd.f32 %v1162, %v1167
        %v1169 = vmul.f32 %v1121, %v1139
        %v1170 = vlaneseq
        %v1171 = vshrl.u32 %v1170, 7
        %v1172 = vsub.s32 0, %v1171
        %v1173 = vrot.slane %v1161, %v1172
        %v1174 = vmul.f32 %v1122, %v1173
        %v1175 = vadd.f32 %v1169, %v1174
        %v1176 = vmul.f32 %v1120, %v1168
        %v1177 = vsel %vm1141, %v1176, 0.0
        %v1178 = vrot.slane %v1177, 4
        %v1179 = vadd.f32 %v1177, %v1178
        %v1180 = vrot.slane %v1179, 2
        %v1181 = vadd.f32 %v1179, %v1180
        %v1182 = vrot.slane %v1181, 1
        %v1183 = vadd.f32 %v1181, %v1182
        %1184 = vst.msk [vmem:[#allocation2 + $0x1] sm:$0x1] %vm1149, %v1183
        %v1185 = vmul.f32 %v1123, %v1175
        %v1186 = vsel %vm1141, %v1185, 0.0
        %v1187 = vrot.slane %v1186, 4
        %v1188 = vadd.f32 %v1186, %v1187
        %v1189 = vrot.slane %v1188, 2
        %v1190 = vadd.f32 %v1188, %v1189
        %v1191 = vrot.slane %v1190, 1
        %v1192 = vadd.f32 %v1190, %v1191
        %1193 = vst.msk [vmem:[#allocation3 + $0xe] sm:$0x1] %vm1149, %v1192
        %v1194 = vld [vmem:[%s1113 + $0x2] sm:$0x1]
        %v1195 = vld [vmem:[%s1113 + $0xd] sm:$0x1]
        %v1196 = vmul.f32 %v1118, %v1168
        %v1197 = vlaneseq
        %v1198 = vshrl.u32 %v1197, 7
        %v1199 = vsub.s32 0, %v1198
        %v1200 = vrot.slane %v1194, %v1199
        %v1201 = vmul.f32 %v1119, %v1200
        %v1202 = vadd.f32 %v1196, %v1201
        %v1203 = vmul.f32 %v1121, %v1175
        %v1204 = vlaneseq
        %v1205 = vshrl.u32 %v1204, 7
        %v1206 = vsub.s32 0, %v1205
        %v1207 = vrot.slane %v1195, %v1206
        %v1208 = vmul.f32 %v1122, %v1207
        %v1209 = vadd.f32 %v1203, %v1208
        %v1210 = vmul.f32 %v1120, %v1202
        %v1211 = vsel %vm1141, %v1210, 0.0
        %v1212 = vrot.slane %v1211, 4
        %v1213 = vadd.f32 %v1211, %v1212
        %v1214 = vrot.slane %v1213, 2
        %v1215 = vadd.f32 %v1213, %v1214
        %v1216 = vrot.slane %v1215, 1
        %v1217 = vadd.f32 %v1215, %v1216
        %1218 = vst.msk [vmem:[#allocation2 + $0x2] sm:$0x1] %vm1149, %v1217
        %v1219 = vmul.f32 %v1123, %v1209
        %v1220 = vsel %vm1141, %v1219, 0.0
        %v1221 = vrot.slane %v1220, 4
        %v1222 = vadd.f32 %v1220, %v1221
        %v1223 = vrot.slane %v1222, 2
        %v1224 = vadd.f32 %v1222, %v1223
        %v1225 = vrot.slane %v1224, 1
        %v1226 = vadd.f32 %v1224, %v1225
        %1227 = vst.msk [vmem:[#allocation3 + $0xd] sm:$0x1] %vm1149, %v1226
        %v1228 = vld [vmem:[%s1113 + $0x3] sm:$0x1]
        %v1229 = vld [vmem:[%s1113 + $0xc] sm:$0x1]
        %v1230 = vmul.f32 %v1118, %v1202
        %v1231 = vlaneseq
        %v1232 = vshrl.u32 %v1231, 7
        %v1233 = vsub.s32 0, %v1232
        %v1234 = vrot.slane %v1228, %v1233
        %v1235 = vmul.f32 %v1119, %v1234
        %v1236 = vadd.f32 %v1230, %v1235
        %v1237 = vmul.f32 %v1121, %v1209
        %v1238 = vlaneseq
        %v1239 = vshrl.u32 %v1238, 7
        %v1240 = vsub.s32 0, %v1239
        %v1241 = vrot.slane %v1229, %v1240
        %v1242 = vmul.f32 %v1122, %v1241
        %v1243 = vadd.f32 %v1237, %v1242
        %v1244 = vmul.f32 %v1120, %v1236
        %v1245 = vsel %vm1141, %v1244, 0.0
        %v1246 = vrot.slane %v1245, 4
        %v1247 = vadd.f32 %v1245, %v1246
        %v1248 = vrot.slane %v1247, 2
        %v1249 = vadd.f32 %v1247, %v1248
        %v1250 = vrot.slane %v1249, 1
        %v1251 = vadd.f32 %v1249, %v1250
        %1252 = vst.msk [vmem:[#allocation2 + $0x3] sm:$0x1] %vm1149, %v1251
        %v1253 = vmul.f32 %v1123, %v1243
        %v1254 = vsel %vm1141, %v1253, 0.0
        %v1255 = vrot.slane %v1254, 4
        %v1256 = vadd.f32 %v1254, %v1255
        %v1257 = vrot.slane %v1256, 2
        %v1258 = vadd.f32 %v1256, %v1257
        %v1259 = vrot.slane %v1258, 1
        %v1260 = vadd.f32 %v1258, %v1259
        %1261 = vst.msk [vmem:[#allocation3 + $0xc] sm:$0x1] %vm1149, %v1260
        %v1262 = vld [vmem:[%s1113 + $0x4] sm:$0x1]
        %v1263 = vld [vmem:[%s1113 + $0xb] sm:$0x1]
        %v1264 = vmul.f32 %v1118, %v1236
        %v1265 = vlaneseq
        %v1266 = vshrl.u32 %v1265, 7
        %v1267 = vsub.s32 0, %v1266
        %v1268 = vrot.slane %v1262, %v1267
        %v1269 = vmul.f32 %v1119, %v1268
        %v1270 = vadd.f32 %v1264, %v1269
        %v1271 = vmul.f32 %v1121, %v1243
        %v1272 = vlaneseq
        %v1273 = vshrl.u32 %v1272, 7
        %v1274 = vsub.s32 0, %v1273
        %v1275 = vrot.slane %v1263, %v1274
        %v1276 = vmul.f32 %v1122, %v1275
        %v1277 = vadd.f32 %v1271, %v1276
        %v1278 = vmul.f32 %v1120, %v1270
        %v1279 = vsel %vm1141, %v1278, 0.0
        %v1280 = vrot.slane %v1279, 4
        %v1281 = vadd.f32 %v1279, %v1280
        %v1282 = vrot.slane %v1281, 2
        %v1283 = vadd.f32 %v1281, %v1282
        %v1284 = vrot.slane %v1283, 1
        %v1285 = vadd.f32 %v1283, %v1284
        %1286 = vst.msk [vmem:[#allocation2 + $0x4] sm:$0x1] %vm1149, %v1285
        %v1287 = vmul.f32 %v1123, %v1277
        %v1288 = vsel %vm1141, %v1287, 0.0
        %v1289 = vrot.slane %v1288, 4
        %v1290 = vadd.f32 %v1288, %v1289
        %v1291 = vrot.slane %v1290, 2
        %v1292 = vadd.f32 %v1290, %v1291
        %v1293 = vrot.slane %v1292, 1
        %v1294 = vadd.f32 %v1292, %v1293
        %1295 = vst.msk [vmem:[#allocation3 + $0xb] sm:$0x1] %vm1149, %v1294
        %v1296 = vld [vmem:[%s1113 + $0x5] sm:$0x1]
        %v1297 = vld [vmem:[%s1113 + $0xa] sm:$0x1]
        %v1298 = vmul.f32 %v1118, %v1270
        %v1299 = vlaneseq
        %v1300 = vshrl.u32 %v1299, 7
        %v1301 = vsub.s32 0, %v1300
        %v1302 = vrot.slane %v1296, %v1301
        %v1303 = vmul.f32 %v1119, %v1302
        %v1304 = vadd.f32 %v1298, %v1303
        %v1305 = vmul.f32 %v1121, %v1277
        %v1306 = vlaneseq
        %v1307 = vshrl.u32 %v1306, 7
        %v1308 = vsub.s32 0, %v1307
        %v1309 = vrot.slane %v1297, %v1308
        %v1310 = vmul.f32 %v1122, %v1309
        %v1311 = vadd.f32 %v1305, %v1310
        %v1312 = vmul.f32 %v1120, %v1304
        %v1313 = vsel %vm1141, %v1312, 0.0
        %v1314 = vrot.slane %v1313, 4
        %v1315 = vadd.f32 %v1313, %v1314
        %v1316 = vrot.slane %v1315, 2
        %v1317 = vadd.f32 %v1315, %v1316
        %v1318 = vrot.slane %v1317, 1
        %v1319 = vadd.f32 %v1317, %v1318
        %1320 = vst.msk [vmem:[#allocation2 + $0x5] sm:$0x1] %vm1149, %v1319
        %v1321 = vmul.f32 %v1123, %v1311
        %v1322 = vsel %vm1141, %v1321, 0.0
        %v1323 = vrot.slane %v1322, 4
        %v1324 = vadd.f32 %v1322, %v1323
        %v1325 = vrot.slane %v1324, 2
        %v1326 = vadd.f32 %v1324, %v1325
        %v1327 = vrot.slane %v1326, 1
        %v1328 = vadd.f32 %v1326, %v1327
        %1329 = vst.msk [vmem:[#allocation3 + $0xa] sm:$0x1] %vm1149, %v1328
        %v1330 = vld [vmem:[%s1113 + $0x6] sm:$0x1]
        %v1331 = vld [vmem:[%s1113 + $0x9] sm:$0x1]
        %v1332 = vmul.f32 %v1118, %v1304
        %v1333 = vlaneseq
        %v1334 = vshrl.u32 %v1333, 7
        %v1335 = vsub.s32 0, %v1334
        %v1336 = vrot.slane %v1330, %v1335
        %v1337 = vmul.f32 %v1119, %v1336
        %v1338 = vadd.f32 %v1332, %v1337
        %v1339 = vmul.f32 %v1121, %v1311
        %v1340 = vlaneseq
        %v1341 = vshrl.u32 %v1340, 7
        %v1342 = vsub.s32 0, %v1341
        %v1343 = vrot.slane %v1331, %v1342
        %v1344 = vmul.f32 %v1122, %v1343
        %v1345 = vadd.f32 %v1339, %v1344
        %v1346 = vmul.f32 %v1120, %v1338
        %v1347 = vsel %vm1141, %v1346, 0.0
        %v1348 = vrot.slane %v1347, 4
        %v1349 = vadd.f32 %v1347, %v1348
        %v1350 = vrot.slane %v1349, 2
        %v1351 = vadd.f32 %v1349, %v1350
        %v1352 = vrot.slane %v1351, 1
        %v1353 = vadd.f32 %v1351, %v1352
        %1354 = vst.msk [vmem:[#allocation2 + $0x6] sm:$0x1] %vm1149, %v1353
        %v1355 = vmul.f32 %v1123, %v1345
        %v1356 = vsel %vm1141, %v1355, 0.0
        %v1357 = vrot.slane %v1356, 4
        %v1358 = vadd.f32 %v1356, %v1357
        %v1359 = vrot.slane %v1358, 2
        %v1360 = vadd.f32 %v1358, %v1359
        %v1361 = vrot.slane %v1360, 1
        %v1362 = vadd.f32 %v1360, %v1361
        %1363 = vst.msk [vmem:[#allocation3 + $0x9] sm:$0x1] %vm1149, %v1362
        %v1364 = vld [vmem:[%s1113 + $0x7] sm:$0x1]
        %v1365 = vld [vmem:[%s1113 + $0x8] sm:$0x1]
        %v1366 = vmul.f32 %v1118, %v1338
        %v1367 = vlaneseq
        %v1368 = vshrl.u32 %v1367, 7
        %v1369 = vsub.s32 0, %v1368
        %v1370 = vrot.slane %v1364, %v1369
        %v1371 = vmul.f32 %v1119, %v1370
        %v1372 = vadd.f32 %v1366, %v1371
        %v1373 = vmul.f32 %v1121, %v1345
        %v1374 = vlaneseq
        %v1375 = vshrl.u32 %v1374, 7
        %v1376 = vsub.s32 0, %v1375
        %v1377 = vrot.slane %v1365, %v1376
        %v1378 = vmul.f32 %v1122, %v1377
        %v1379 = vadd.f32 %v1373, %v1378
        %v1380 = vmul.f32 %v1120, %v1372
        %v1381 = vsel %vm1141, %v1380, 0.0
        %v1382 = vrot.slane %v1381, 4
        %v1383 = vadd.f32 %v1381, %v1382
        %v1384 = vrot.slane %v1383, 2
        %v1385 = vadd.f32 %v1383, %v1384
        %v1386 = vrot.slane %v1385, 1
        %v1387 = vadd.f32 %v1385, %v1386
        %1388 = vst.msk [vmem:[#allocation2 + $0x7] sm:$0x1] %vm1149, %v1387
        %v1389 = vmul.f32 %v1123, %v1379
        %v1390 = vsel %vm1141, %v1389, 0.0
        %v1391 = vrot.slane %v1390, 4
        %v1392 = vadd.f32 %v1390, %v1391
        %v1393 = vrot.slane %v1392, 2
        %v1394 = vadd.f32 %v1392, %v1393
        %v1395 = vrot.slane %v1394, 1
        %v1396 = vadd.f32 %v1394, %v1395
        %1397 = vst.msk [vmem:[#allocation3 + $0x8] sm:$0x1] %vm1149, %v1396
        %v1398 = vld [vmem:[%s1113 + $0x8] sm:$0x1]
        %v1399 = vld [vmem:[%s1113 + $0x7] sm:$0x1]
        %v1400 = vmul.f32 %v1118, %v1372
        %v1401 = vlaneseq
        %v1402 = vshrl.u32 %v1401, 7
        %v1403 = vsub.s32 0, %v1402
        %v1404 = vrot.slane %v1398, %v1403
        %v1405 = vmul.f32 %v1119, %v1404
        %v1406 = vadd.f32 %v1400, %v1405
        %v1407 = vmul.f32 %v1121, %v1379
        %v1408 = vlaneseq
        %v1409 = vshrl.u32 %v1408, 7
        %v1410 = vsub.s32 0, %v1409
        %v1411 = vrot.slane %v1399, %v1410
        %v1412 = vmul.f32 %v1122, %v1411
        %v1413 = vadd.f32 %v1407, %v1412
        %v1414 = vmul.f32 %v1120, %v1406
        %v1415 = vsel %vm1141, %v1414, 0.0
        %v1416 = vrot.slane %v1415, 4
        %v1417 = vadd.f32 %v1415, %v1416
        %v1418 = vrot.slane %v1417, 2
        %v1419 = vadd.f32 %v1417, %v1418
        %v1420 = vrot.slane %v1419, 1
        %v1421 = vadd.f32 %v1419, %v1420
        %1422 = vst.msk [vmem:[#allocation2 + $0x8] sm:$0x1] %vm1149, %v1421
        %v1423 = vmul.f32 %v1123, %v1413
        %v1424 = vsel %vm1141, %v1423, 0.0
        %v1425 = vrot.slane %v1424, 4
        %v1426 = vadd.f32 %v1424, %v1425
        %v1427 = vrot.slane %v1426, 2
        %v1428 = vadd.f32 %v1426, %v1427
        %v1429 = vrot.slane %v1428, 1
        %v1430 = vadd.f32 %v1428, %v1429
        %1431 = vst.msk [vmem:[#allocation3 + $0x7] sm:$0x1] %vm1149, %v1430
        %v1432 = vld [vmem:[%s1113 + $0x9] sm:$0x1]
        %v1433 = vld [vmem:[%s1113 + $0x6] sm:$0x1]
        %v1434 = vmul.f32 %v1118, %v1406
        %v1435 = vlaneseq
        %v1436 = vshrl.u32 %v1435, 7
        %v1437 = vsub.s32 0, %v1436
        %v1438 = vrot.slane %v1432, %v1437
        %v1439 = vmul.f32 %v1119, %v1438
        %v1440 = vadd.f32 %v1434, %v1439
        %v1441 = vmul.f32 %v1121, %v1413
        %v1442 = vlaneseq
        %v1443 = vshrl.u32 %v1442, 7
        %v1444 = vsub.s32 0, %v1443
        %v1445 = vrot.slane %v1433, %v1444
        %v1446 = vmul.f32 %v1122, %v1445
        %v1447 = vadd.f32 %v1441, %v1446
        %v1448 = vmul.f32 %v1120, %v1440
        %v1449 = vsel %vm1141, %v1448, 0.0
        %v1450 = vrot.slane %v1449, 4
        %v1451 = vadd.f32 %v1449, %v1450
        %v1452 = vrot.slane %v1451, 2
        %v1453 = vadd.f32 %v1451, %v1452
        %v1454 = vrot.slane %v1453, 1
        %v1455 = vadd.f32 %v1453, %v1454
        %1456 = vst.msk [vmem:[#allocation2 + $0x9] sm:$0x1] %vm1149, %v1455
        %v1457 = vmul.f32 %v1123, %v1447
        %v1458 = vsel %vm1141, %v1457, 0.0
        %v1459 = vrot.slane %v1458, 4
        %v1460 = vadd.f32 %v1458, %v1459
        %v1461 = vrot.slane %v1460, 2
        %v1462 = vadd.f32 %v1460, %v1461
        %v1463 = vrot.slane %v1462, 1
        %v1464 = vadd.f32 %v1462, %v1463
        %1465 = vst.msk [vmem:[#allocation3 + $0x6] sm:$0x1] %vm1149, %v1464
        %v1466 = vld [vmem:[%s1113 + $0xa] sm:$0x1]
        %v1467 = vld [vmem:[%s1113 + $0x5] sm:$0x1]
        %v1468 = vmul.f32 %v1118, %v1440
        %v1469 = vlaneseq
        %v1470 = vshrl.u32 %v1469, 7
        %v1471 = vsub.s32 0, %v1470
        %v1472 = vrot.slane %v1466, %v1471
        %v1473 = vmul.f32 %v1119, %v1472
        %v1474 = vadd.f32 %v1468, %v1473
        %v1475 = vmul.f32 %v1121, %v1447
        %v1476 = vlaneseq
        %v1477 = vshrl.u32 %v1476, 7
        %v1478 = vsub.s32 0, %v1477
        %v1479 = vrot.slane %v1467, %v1478
        %v1480 = vmul.f32 %v1122, %v1479
        %v1481 = vadd.f32 %v1475, %v1480
        %v1482 = vmul.f32 %v1120, %v1474
        %v1483 = vsel %vm1141, %v1482, 0.0
        %v1484 = vrot.slane %v1483, 4
        %v1485 = vadd.f32 %v1483, %v1484
        %v1486 = vrot.slane %v1485, 2
        %v1487 = vadd.f32 %v1485, %v1486
        %v1488 = vrot.slane %v1487, 1
        %v1489 = vadd.f32 %v1487, %v1488
        %1490 = vst.msk [vmem:[#allocation2 + $0xa] sm:$0x1] %vm1149, %v1489
        %v1491 = vmul.f32 %v1123, %v1481
        %v1492 = vsel %vm1141, %v1491, 0.0
        %v1493 = vrot.slane %v1492, 4
        %v1494 = vadd.f32 %v1492, %v1493
        %v1495 = vrot.slane %v1494, 2
        %v1496 = vadd.f32 %v1494, %v1495
        %v1497 = vrot.slane %v1496, 1
        %v1498 = vadd.f32 %v1496, %v1497
        %1499 = vst.msk [vmem:[#allocation3 + $0x5] sm:$0x1] %vm1149, %v1498
        %v1500 = vld [vmem:[%s1113 + $0xb] sm:$0x1]
        %v1501 = vld [vmem:[%s1113 + $0x4] sm:$0x1]
        %v1502 = vmul.f32 %v1118, %v1474
        %v1503 = vlaneseq
        %v1504 = vshrl.u32 %v1503, 7
        %v1505 = vsub.s32 0, %v1504
        %v1506 = vrot.slane %v1500, %v1505
        %v1507 = vmul.f32 %v1119, %v1506
        %v1508 = vadd.f32 %v1502, %v1507
        %v1509 = vmul.f32 %v1121, %v1481
        %v1510 = vlaneseq
        %v1511 = vshrl.u32 %v1510, 7
        %v1512 = vsub.s32 0, %v1511
        %v1513 = vrot.slane %v1501, %v1512
        %v1514 = vmul.f32 %v1122, %v1513
        %v1515 = vadd.f32 %v1509, %v1514
        %v1516 = vmul.f32 %v1120, %v1508
        %v1517 = vsel %vm1141, %v1516, 0.0
        %v1518 = vrot.slane %v1517, 4
        %v1519 = vadd.f32 %v1517, %v1518
        %v1520 = vrot.slane %v1519, 2
        %v1521 = vadd.f32 %v1519, %v1520
        %v1522 = vrot.slane %v1521, 1
        %v1523 = vadd.f32 %v1521, %v1522
        %1524 = vst.msk [vmem:[#allocation2 + $0xb] sm:$0x1] %vm1149, %v1523
        %v1525 = vmul.f32 %v1123, %v1515
        %v1526 = vsel %vm1141, %v1525, 0.0
        %v1527 = vrot.slane %v1526, 4
        %v1528 = vadd.f32 %v1526, %v1527
        %v1529 = vrot.slane %v1528, 2
        %v1530 = vadd.f32 %v1528, %v1529
        %v1531 = vrot.slane %v1530, 1
        %v1532 = vadd.f32 %v1530, %v1531
        %1533 = vst.msk [vmem:[#allocation3 + $0x4] sm:$0x1] %vm1149, %v1532
        %v1534 = vld [vmem:[%s1113 + $0xc] sm:$0x1]
        %v1535 = vld [vmem:[%s1113 + $0x3] sm:$0x1]
        %v1536 = vmul.f32 %v1118, %v1508
        %v1537 = vlaneseq
        %v1538 = vshrl.u32 %v1537, 7
        %v1539 = vsub.s32 0, %v1538
        %v1540 = vrot.slane %v1534, %v1539
        %v1541 = vmul.f32 %v1119, %v1540
        %v1542 = vadd.f32 %v1536, %v1541
        %v1543 = vmul.f32 %v1121, %v1515
        %v1544 = vlaneseq
        %v1545 = vshrl.u32 %v1544, 7
        %v1546 = vsub.s32 0, %v1545
        %v1547 = vrot.slane %v1535, %v1546
        %v1548 = vmul.f32 %v1122, %v1547
        %v1549 = vadd.f32 %v1543, %v1548
        %v1550 = vmul.f32 %v1120, %v1542
        %v1551 = vsel %vm1141, %v1550, 0.0
        %v1552 = vrot.slane %v1551, 4
        %v1553 = vadd.f32 %v1551, %v1552
        %v1554 = vrot.slane %v1553, 2
        %v1555 = vadd.f32 %v1553, %v1554
        %v1556 = vrot.slane %v1555, 1
        %v1557 = vadd.f32 %v1555, %v1556
        %1558 = vst.msk [vmem:[#allocation2 + $0xc] sm:$0x1] %vm1149, %v1557
        %v1559 = vmul.f32 %v1123, %v1549
        %v1560 = vsel %vm1141, %v1559, 0.0
        %v1561 = vrot.slane %v1560, 4
        %v1562 = vadd.f32 %v1560, %v1561
        %v1563 = vrot.slane %v1562, 2
        %v1564 = vadd.f32 %v1562, %v1563
        %v1565 = vrot.slane %v1564, 1
        %v1566 = vadd.f32 %v1564, %v1565
        %1567 = vst.msk [vmem:[#allocation3 + $0x3] sm:$0x1] %vm1149, %v1566
        %v1568 = vld [vmem:[%s1113 + $0xd] sm:$0x1]
        %v1569 = vld [vmem:[%s1113 + $0x2] sm:$0x1]
        %v1570 = vmul.f32 %v1118, %v1542
        %v1571 = vlaneseq
        %v1572 = vshrl.u32 %v1571, 7
        %v1573 = vsub.s32 0, %v1572
        %v1574 = vrot.slane %v1568, %v1573
        %v1575 = vmul.f32 %v1119, %v1574
        %v1576 = vadd.f32 %v1570, %v1575
        %v1577 = vmul.f32 %v1121, %v1549
        %v1578 = vlaneseq
        %v1579 = vshrl.u32 %v1578, 7
        %v1580 = vsub.s32 0, %v1579
        %v1581 = vrot.slane %v1569, %v1580
        %v1582 = vmul.f32 %v1122, %v1581
        %v1583 = vadd.f32 %v1577, %v1582
        %v1584 = vmul.f32 %v1120, %v1576
        %v1585 = vsel %vm1141, %v1584, 0.0
        %v1586 = vrot.slane %v1585, 4
        %v1587 = vadd.f32 %v1585, %v1586
        %v1588 = vrot.slane %v1587, 2
        %v1589 = vadd.f32 %v1587, %v1588
        %v1590 = vrot.slane %v1589, 1
        %v1591 = vadd.f32 %v1589, %v1590
        %1592 = vst.msk [vmem:[#allocation2 + $0xd] sm:$0x1] %vm1149, %v1591
        %v1593 = vmul.f32 %v1123, %v1583
        %v1594 = vsel %vm1141, %v1593, 0.0
        %v1595 = vrot.slane %v1594, 4
        %v1596 = vadd.f32 %v1594, %v1595
        %v1597 = vrot.slane %v1596, 2
        %v1598 = vadd.f32 %v1596, %v1597
        %v1599 = vrot.slane %v1598, 1
        %v1600 = vadd.f32 %v1598, %v1599
        %1601 = vst.msk [vmem:[#allocation3 + $0x2] sm:$0x1] %vm1149, %v1600
        %v1602 = vld [vmem:[%s1113 + $0xe] sm:$0x1]
        %v1603 = vld [vmem:[%s1113 + $0x1] sm:$0x1]
        %v1604 = vmul.f32 %v1118, %v1576
        %v1605 = vlaneseq
        %v1606 = vshrl.u32 %v1605, 7
        %v1607 = vsub.s32 0, %v1606
        %v1608 = vrot.slane %v1602, %v1607
        %v1609 = vmul.f32 %v1119, %v1608
        %v1610 = vadd.f32 %v1604, %v1609
        %v1611 = vmul.f32 %v1121, %v1583
        %v1612 = vlaneseq
        %v1613 = vshrl.u32 %v1612, 7
        %v1614 = vsub.s32 0, %v1613
        %v1615 = vrot.slane %v1603, %v1614
        %v1616 = vmul.f32 %v1122, %v1615
        %v1617 = vadd.f32 %v1611, %v1616
        %v1618 = vmul.f32 %v1120, %v1610
        %v1619 = vsel %vm1141, %v1618, 0.0
        %v1620 = vrot.slane %v1619, 4
        %v1621 = vadd.f32 %v1619, %v1620
        %v1622 = vrot.slane %v1621, 2
        %v1623 = vadd.f32 %v1621, %v1622
        %v1624 = vrot.slane %v1623, 1
        %v1625 = vadd.f32 %v1623, %v1624
        %1626 = vst.msk [vmem:[#allocation2 + $0xe] sm:$0x1] %vm1149, %v1625
        %v1627 = vmul.f32 %v1123, %v1617
        %v1628 = vsel %vm1141, %v1627, 0.0
        %v1629 = vrot.slane %v1628, 4
        %v1630 = vadd.f32 %v1628, %v1629
        %v1631 = vrot.slane %v1630, 2
        %v1632 = vadd.f32 %v1630, %v1631
        %v1633 = vrot.slane %v1632, 1
        %v1634 = vadd.f32 %v1632, %v1633
        %1635 = vst.msk [vmem:[#allocation3 + $0x1] sm:$0x1] %vm1149, %v1634
        %v1636 = vld [vmem:[%s1113 + $0xf] sm:$0x1]
        %v1637 = vld [vmem:[%s1113] sm:$0x1]
        %v1638 = vmul.f32 %v1118, %v1610
        %v1639 = vlaneseq
        %v1640 = vshrl.u32 %v1639, 7
        %v1641 = vsub.s32 0, %v1640
        %v1642 = vrot.slane %v1636, %v1641
        %v1643 = vmul.f32 %v1119, %v1642
        %v1644 = vadd.f32 %v1638, %v1643
        %v1645 = vmul.f32 %v1121, %v1617
        %v1646 = vlaneseq
        %v1647 = vshrl.u32 %v1646, 7
        %v1648 = vsub.s32 0, %v1647
        %v1649 = vrot.slane %v1637, %v1648
        %v1650 = vmul.f32 %v1122, %v1649
        %v1651 = vadd.f32 %v1645, %v1650
        %v1652 = vmul.f32 %v1120, %v1644
        %v1653 = vsel %vm1141, %v1652, 0.0
        %v1654 = vrot.slane %v1653, 4
        %v1655 = vadd.f32 %v1653, %v1654
        %v1656 = vrot.slane %v1655, 2
        %v1657 = vadd.f32 %v1655, %v1656
        %v1658 = vrot.slane %v1657, 1
        %v1659 = vadd.f32 %v1657, %v1658
        %1660 = vst.msk [vmem:[#allocation2 + $0xf] sm:$0x1] %vm1149, %v1659
        %v1661 = vmul.f32 %v1123, %v1651
        %v1662 = vsel %vm1141, %v1661, 0.0
        %v1663 = vrot.slane %v1662, 4
        %v1664 = vadd.f32 %v1662, %v1663
        %v1665 = vrot.slane %v1664, 2
        %v1666 = vadd.f32 %v1664, %v1665
        %v1667 = vrot.slane %v1666, 1
        %v1668 = vadd.f32 %v1666, %v1667
        %1669 = vst.msk [vmem:[#allocation3] sm:$0x1] %vm1149, %v1668
        %v1670 = vld [vmem:[#allocation2] sm:$0xff]
        %v1671 = vld [vmem:[#allocation2 + $0x8] sm:$0xff]
        %v1672 = vld [vmem:[#allocation3] sm:$0xff]
        %v1673 = vld [vmem:[#allocation3 + $0x8] sm:$0xff]
        %v1674 = vadd.f32 %v1670, %v1672
        %v1675 = vadd.f32 %v1671, %v1673
        %v1676 = vld [vmem:[%s3] sm:$0x1]
        %v1678 = vlaneseq
        %v1679 = vshrl.u32 %v1678, 7
        %v1680 = vsub.s32 0, %v1679
        %v1681 = vrot.slane %v1676, %v1680
        %v1683 = vmul.f32 %v1115, %v1681
        %v1684 = vmul.f32 %v1116, %v1681
        %v1685 = vadd.f32 %v1674, %v1683
        %v1686 = vadd.f32 %v1675, %v1684
        %v1687 = vxor.u32 %v1685, 2147483648
        %v1688 = vxor.u32 %v1686, 2147483648
        %v1689 = vmul.f32 %v1687, 1.442695
        %v1690 = vpow.pop %v1689
        %v1691 = vmul.f32 %v1688, 1.442695
        %v1692 = vpow.pop %v1691
        %v1693 = vadd.f32 %v1690, 1.0
        %v1694 = vadd.f32 %v1692, 1.0
        %v1695 = vrcp.pop %v1693
        %v1696 = vmul.f32 1.0, %v1695
        %v1697 = vrcp.pop %v1694
        %v1698 = vmul.f32 1.0, %v1697
        %v1699 = vmul.f32 %v1685, %v1696
        %v1700 = vmul.f32 %v1686, %v1698
        %v1701 = vpack.c.bf16 %v1700, %v1699
        %v1702 = vld [vmem:[%s17] sm:$0xf]
        %v1703 = vld [vmem:[%s17 + $0x4] sm:$0xf]
        %v1704 = vld [vmem:[%s17 + $0x8] sm:$0xf]
        %v1705 = vld [vmem:[%s17 + $0xc] sm:$0xf]
        %v1706 = vld [vmem:[#allocation15] sm:$0x1]
        %v1708 = vlaneseq
        %v1709 = vshrl.u32 %v1708, 7
        %v1710 = vsub.s32 0, %v1709
        %v1711 = vrot.slane %v1706, %v1710
        %v1717 = vunpack.c.l.b16 %v1702
        %v1718 = vunpack.c.l.b16 %v1703
        %v1719 = vunpack.c.l.b16 %v1704
        %v1720 = vunpack.c.l.b16 %v1705
        %v1721 = vpack.c.b16 %v1718, %v1717
        %v1722 = vpack.c.b16 %v1720, %v1719
        %vm1725 = vcmask 261120
        %v1727 = vsel %vm1725, %v1117, 0
        %1729 = vmatprep.subr.bf16.mxu0 0
        %1730 = vmatpush1.bf16.msra.mxu0 %v1721
        %1731 = vmatprep.subr.bf16.mxu0 0
        %1732 = vmatpush1.bf16.msra.mxu0 %v1722
        %1733 = vmatprep.subr.bf16.mxu0 0
        %1734 = vmatpush1.bf16.msra.mxu0 0
        %1735 = vmatprep.subr.bf16.mxu0 0
        %1736 = vmatpush1.bf16.msra.mxu0 0
        %1737 = vmatprep.subr.bf16.mxu0 0
        %1738 = vmatpush1.bf16.msra.mxu0 0
        %1739 = vmatprep.subr.bf16.mxu0 0
        %1740 = vmatpush1.bf16.msra.mxu0 0
        %1741 = vmatprep.subr.bf16.mxu0 0
        %1742 = vmatpush1.bf16.msra.mxu0 0
        %1743 = vmatprep.subr.bf16.mxu0 0
        %1744 = vmatpush1.bf16.msra.mxu0 0
        %1745 = vmatprep.subr.bf16.mxu0 0
        %1746 = vmatpush1.bf16.msra.mxu0 0
        %1747 = vmatprep.subr.bf16.mxu0 0
        %1748 = vmatpush1.bf16.msra.mxu0 0
        %1749 = vmatprep.subr.bf16.mxu0 0
        %1750 = vmatpush1.bf16.msra.mxu0 0
        %1751 = vmatprep.subr.bf16.mxu0 0
        %1752 = vmatpush1.bf16.msra.mxu0 0
        %1753 = vmatprep.subr.bf16.mxu0 0
        %1754 = vmatpush1.bf16.msra.mxu0 0
        %1755 = vmatprep.subr.bf16.mxu0 0
        %1756 = vmatpush1.bf16.msra.mxu0 0
        %1757 = vmatprep.subr.bf16.mxu0 0
        %1758 = vmatpush1.bf16.msra.mxu0 0
        %1759 = vmatprep.subr.bf16.mxu0 0
        %1760 = vmatpush1.bf16.msra.mxu0 0
        %1761 = vmatprep.mubr.bf16.mxu0 0
        %1762 = vmatmul.mubr.bf16.gmra.mrb[0].mxu0 %v1727
        %v1763 = vpop.f32.mrb[0].mxu0
        %v1764 = vadd.f32 %v1711, %v1763
        %v1765 = vpop.f32.mrb[0].mxu0
        %v1766 = vpop.f32.mrb[0].mxu0
        %v1767 = vadd.f32 %v1711, %v1766
        %v1768 = vpop.f32.mrb[0].mxu0
        %1769 = vdwg.mxu0
        %v1770 = vxor.u32 %v1764, 2147483648
        %v1771 = vxor.u32 %v1767, 2147483648
        %v1772 = vmul.f32 %v1770, 1.442695
        %v1773 = vpow.pop %v1772
        %v1774 = vmul.f32 %v1771, 1.442695
        %v1775 = vpow.pop %v1774
        %v1776 = vadd.f32 %v1773, 1.0
        %v1777 = vadd.f32 %v1775, 1.0
        %v1778 = vrcp.pop %v1776
        %v1779 = vmul.f32 1.0, %v1778
        %v1780 = vrcp.pop %v1777
        %v1781 = vmul.f32 1.0, %v1780
        %v1782 = vmul.f32 %v1764, %v1779
        %v1783 = vmul.f32 %v1767, %v1781
        %v1784 = vld [vmem:[%s21] sm:$0xf]
        %v1785 = vld [vmem:[%s21 + $0x4] sm:$0xf]
        %v1786 = vld [vmem:[%s21 + $0x8] sm:$0xf]
        %v1787 = vld [vmem:[%s21 + $0xc] sm:$0xf]
        %v1788 = vld [vmem:[#allocation16] sm:$0x1]
        %v1790 = vlaneseq
        %v1791 = vshrl.u32 %v1790, 7
        %v1792 = vsub.s32 0, %v1791
        %v1793 = vrot.slane %v1788, %v1792
        %v1799 = vunpack.c.l.b16 %v1784
        %v1800 = vunpack.c.l.b16 %v1785
        %v1801 = vunpack.c.l.b16 %v1786
        %v1802 = vunpack.c.l.b16 %v1787
        %v1803 = vpack.c.b16 %v1800, %v1799
        %v1804 = vpack.c.b16 %v1802, %v1801
        %v1808 = vsel %vm1725, %v1701, 0
        %1810 = vmatprep.subr.bf16.mxu0 0
        %1811 = vmatpush1.bf16.msra.mxu0 %v1803
        %1812 = vmatprep.subr.bf16.mxu0 0
        %1813 = vmatpush1.bf16.msra.mxu0 %v1804
        %1814 = vmatprep.subr.bf16.mxu0 0
        %1815 = vmatpush1.bf16.msra.mxu0 0
        %1816 = vmatprep.subr.bf16.mxu0 0
        %1817 = vmatpush1.bf16.msra.mxu0 0
        %1818 = vmatprep.subr.bf16.mxu0 0
        %1819 = vmatpush1.bf16.msra.mxu0 0
        %1820 = vmatprep.subr.bf16.mxu0 0
        %1821 = vmatpush1.bf16.msra.mxu0 0
        %1822 = vmatprep.subr.bf16.mxu0 0
        %1823 = vmatpush1.bf16.msra.mxu0 0
        %1824 = vmatprep.subr.bf16.mxu0 0
        %1825 = vmatpush1.bf16.msra.mxu0 0
        %1826 = vmatprep.subr.bf16.mxu0 0
        %1827 = vmatpush1.bf16.msra.mxu0 0
        %1828 = vmatprep.subr.bf16.mxu0 0
        %1829 = vmatpush1.bf16.msra.mxu0 0
        %1830 = vmatprep.subr.bf16.mxu0 0
        %1831 = vmatpush1.bf16.msra.mxu0 0
        %1832 = vmatprep.subr.bf16.mxu0 0
        %1833 = vmatpush1.bf16.msra.mxu0 0
        %1834 = vmatprep.subr.bf16.mxu0 0
        %1835 = vmatpush1.bf16.msra.mxu0 0
        %1836 = vmatprep.subr.bf16.mxu0 0
        %1837 = vmatpush1.bf16.msra.mxu0 0
        %1838 = vmatprep.subr.bf16.mxu0 0
        %1839 = vmatpush1.bf16.msra.mxu0 0
        %1840 = vmatprep.subr.bf16.mxu0 0
        %1841 = vmatpush1.bf16.msra.mxu0 0
        %1842 = vmatprep.mubr.bf16.mxu0 0
        %1843 = vmatmul.mubr.bf16.gmra.mrb[0].mxu0 %v1808
        %v1844 = vpop.f32.mrb[0].mxu0
        %v1845 = vadd.f32 %v1793, %v1844
        %v1846 = vpop.f32.mrb[0].mxu0
        %v1847 = vpop.f32.mrb[0].mxu0
        %v1848 = vadd.f32 %v1793, %v1847
        %v1849 = vpop.f32.mrb[0].mxu0
        %1850 = vdwg.mxu0
        %v1851 = vxor.u32 %v1845, 2147483648
        %v1852 = vxor.u32 %v1848, 2147483648
        %v1853 = vmul.f32 %v1851, 1.442695
        %v1854 = vpow.pop %v1853
        %v1855 = vmul.f32 %v1852, 1.442695
        %v1856 = vpow.pop %v1855
        %v1857 = vadd.f32 %v1854, 1.0
        %v1858 = vadd.f32 %v1856, 1.0
        %v1859 = vrcp.pop %v1857
        %v1860 = vmul.f32 1.0, %v1859
        %v1861 = vrcp.pop %v1858
        %v1862 = vmul.f32 1.0, %v1861
        %v1863 = vld [vmem:[%s25] sm:$0xf]
        %v1864 = vld [vmem:[%s25 + $0x4] sm:$0xf]
        %v1865 = vld [vmem:[%s25 + $0x8] sm:$0xf]
        %v1866 = vld [vmem:[%s25 + $0xc] sm:$0xf]
        %v1867 = vld [vmem:[%s27] sm:$0x1]
        %v1869 = vlaneseq
        %v1870 = vshrl.u32 %v1869, 7
        %v1871 = vsub.s32 0, %v1870
        %v1872 = vrot.slane %v1867, %v1871
        %v1878 = vunpack.c.l.b16 %v1863
        %v1879 = vunpack.c.l.b16 %v1864
        %v1880 = vunpack.c.l.b16 %v1865
        %v1881 = vunpack.c.l.b16 %v1866
        %v1882 = vpack.c.b16 %v1879, %v1878
        %v1883 = vpack.c.b16 %v1881, %v1880
        %1886 = vmatprep.subr.bf16.mxu0 0
        %1887 = vmatpush1.bf16.msra.mxu0 %v1882
        %1888 = vmatprep.subr.bf16.mxu0 0
        %1889 = vmatpush1.bf16.msra.mxu0 %v1883
        %1890 = vmatprep.subr.bf16.mxu0 0
        %1891 = vmatpush1.bf16.msra.mxu0 0
        %1892 = vmatprep.subr.bf16.mxu0 0
        %1893 = vmatpush1.bf16.msra.mxu0 0
        %1894 = vmatprep.subr.bf16.mxu0 0
        %1895 = vmatpush1.bf16.msra.mxu0 0
        %1896 = vmatprep.subr.bf16.mxu0 0
        %1897 = vmatpush1.bf16.msra.mxu0 0
        %1898 = vmatprep.subr.bf16.mxu0 0
        %1899 = vmatpush1.bf16.msra.mxu0 0
        %1900 = vmatprep.subr.bf16.mxu0 0
        %1901 = vmatpush1.bf16.msra.mxu0 0
        %1902 = vmatprep.subr.bf16.mxu0 0
        %1903 = vmatpush1.bf16.msra.mxu0 0
        %1904 = vmatprep.subr.bf16.mxu0 0
        %1905 = vmatpush1.bf16.msra.mxu0 0
        %1906 = vmatprep.subr.bf16.mxu0 0
        %1907 = vmatpush1.bf16.msra.mxu0 0
        %1908 = vmatprep.subr.bf16.mxu0 0
        %1909 = vmatpush1.bf16.msra.mxu0 0
        %1910 = vmatprep.subr.bf16.mxu0 0
        %1911 = vmatpush1.bf16.msra.mxu0 0
        %1912 = vmatprep.subr.bf16.mxu0 0
        %1913 = vmatpush1.bf16.msra.mxu0 0
        %1914 = vmatprep.subr.bf16.mxu0 0
        %1915 = vmatpush1.bf16.msra.mxu0 0
        %1916 = vmatprep.subr.bf16.mxu0 0
        %1917 = vmatpush1.bf16.msra.mxu0 0
        %1918 = vmatprep.mubr.bf16.mxu0 0
        %1919 = vmatmul.mubr.bf16.gmra.mrb[0].mxu0 %v1808
        %v1920 = vpop.f32.mrb[0].mxu0
        %v1921 = vadd.f32 %v1872, %v1920
        %v1922 = vpop.f32.mrb[0].mxu0
        %v1923 = vpop.f32.mrb[0].mxu0
        %v1924 = vadd.f32 %v1872, %v1923
        %v1925 = vpop.f32.mrb[0].mxu0
        %1926 = vdwg.mxu0
        %v1927 = vxor.u32 %v1921, 2147483648
        %v1928 = vxor.u32 %v1924, 2147483648
        %v1929 = vmul.f32 %v1927, 1.442695
        %v1930 = vpow.pop %v1929
        %v1931 = vmul.f32 %v1928, 1.442695
        %v1932 = vpow.pop %v1931
        %v1933 = vadd.f32 %v1930, 1.0
        %v1934 = vadd.f32 %v1932, 1.0
        %v1935 = vrcp.pop %v1933
        %v1936 = vmul.f32 1.0, %v1935
        %v1937 = vrcp.pop %v1934
        %v1938 = vmul.f32 1.0, %v1937
        %v1939 = vmul.f32 %v1921, %v1936
        %v1940 = vmul.f32 %v1924, %v1938
        %v1941 = vld [vmem:[%s29] sm:$0xf]
        %v1942 = vld [vmem:[%s29 + $0x4] sm:$0xf]
        %v1943 = vld [vmem:[%s29 + $0x8] sm:$0xf]
        %v1944 = vld [vmem:[%s29 + $0xc] sm:$0xf]
        %v1945 = vld [vmem:[%s31] sm:$0x1]
        %v1947 = vlaneseq
        %v1948 = vshrl.u32 %v1947, 7
        %v1949 = vsub.s32 0, %v1948
        %v1950 = vrot.slane %v1945, %v1949
        %v1956 = vunpack.c.l.b16 %v1941
        %v1957 = vunpack.c.l.b16 %v1942
        %v1958 = vunpack.c.l.b16 %v1943
        %v1959 = vunpack.c.l.b16 %v1944
        %v1960 = vpack.c.b16 %v1957, %v1956
        %v1961 = vpack.c.b16 %v1959, %v1958
        %1964 = vmatprep.subr.bf16.mxu0 0
        %1965 = vmatpush1.bf16.msra.mxu0 %v1960
        %1966 = vmatprep.subr.bf16.mxu0 0
        %1967 = vmatpush1.bf16.msra.mxu0 %v1961
        %1968 = vmatprep.subr.bf16.mxu0 0
        %1969 = vmatpush1.bf16.msra.mxu0 0
        %1970 = vmatprep.subr.bf16.mxu0 0
        %1971 = vmatpush1.bf16.msra.mxu0 0
        %1972 = vmatprep.subr.bf16.mxu0 0
        %1973 = vmatpush1.bf16.msra.mxu0 0
        %1974 = vmatprep.subr.bf16.mxu0 0
        %1975 = vmatpush1.bf16.msra.mxu0 0
        %1976 = vmatprep.subr.bf16.mxu0 0
        %1977 = vmatpush1.bf16.msra.mxu0 0
        %1978 = vmatprep.subr.bf16.mxu0 0
        %1979 = vmatpush1.bf16.msra.mxu0 0
        %1980 = vmatprep.subr.bf16.mxu0 0
        %1981 = vmatpush1.bf16.msra.mxu0 0
        %1982 = vmatprep.subr.bf16.mxu0 0
        %1983 = vmatpush1.bf16.msra.mxu0 0
        %1984 = vmatprep.subr.bf16.mxu0 0
        %1985 = vmatpush1.bf16.msra.mxu0 0
        %1986 = vmatprep.subr.bf16.mxu0 0
        %1987 = vmatpush1.bf16.msra.mxu0 0
        %1988 = vmatprep.subr.bf16.mxu0 0
        %1989 = vmatpush1.bf16.msra.mxu0 0
        %1990 = vmatprep.subr.bf16.mxu0 0
        %1991 = vmatpush1.bf16.msra.mxu0 0
        %1992 = vmatprep.subr.bf16.mxu0 0
        %1993 = vmatpush1.bf16.msra.mxu0 0
        %1994 = vmatprep.subr.bf16.mxu0 0
        %1995 = vmatpush1.bf16.msra.mxu0 0
        %1996 = vmatprep.mubr.bf16.mxu0 0
        %1997 = vmatmul.mubr.bf16.gmra.mrb[0].mxu0 %v1808
        %v1998 = vpop.f32.mrb[0].mxu0
        %v1999 = vadd.f32 %v1950, %v1998
        %v2000 = vpop.f32.mrb[0].mxu0
        %v2001 = vpop.f32.mrb[0].mxu0
        %v2002 = vadd.f32 %v1950, %v2001
        %v2003 = vpop.f32.mrb[0].mxu0
        %2004 = vdwg.mxu0
        %v2005 = vxor.u32 %v1999, 2147483648
        %v2006 = vxor.u32 %v2002, 2147483648
        %v2007 = vmul.f32 %v2005, 1.442695
        %v2008 = vpow.pop %v2007
        %v2009 = vmul.f32 %v2006, 1.442695
        %v2010 = vpow.pop %v2009
        %v2011 = vadd.f32 %v2008, 1.0
        %v2012 = vadd.f32 %v2010, 1.0
        %v2013 = vrcp.pop %v2011
        %v2014 = vmul.f32 1.0, %v2013
        %v2015 = vrcp.pop %v2012
        %v2016 = vmul.f32 1.0, %v2015
        %v2017 = vmul.f32 %v1999, %v2014
        %v2018 = vmul.f32 %v2002, %v2016
        %v2019 = vld [vmem:[%s33] sm:$0xf]
        %v2020 = vld [vmem:[%s33 + $0x4] sm:$0xf]
        %v2021 = vld [vmem:[%s33 + $0x8] sm:$0xf]
        %v2022 = vld [vmem:[%s33 + $0xc] sm:$0xf]
        %v2023 = vld [vmem:[%s35] sm:$0x1]
        %v2025 = vlaneseq
        %v2026 = vshrl.u32 %v2025, 7
        %v2027 = vsub.s32 0, %v2026
        %v2028 = vrot.slane %v2023, %v2027
        %v2034 = vunpack.c.l.b16 %v2019
        %v2035 = vunpack.c.l.b16 %v2020
        %v2036 = vunpack.c.l.b16 %v2021
        %v2037 = vunpack.c.l.b16 %v2022
        %v2038 = vpack.c.b16 %v2035, %v2034
        %v2039 = vpack.c.b16 %v2037, %v2036
        %2042 = vmatprep.subr.bf16.mxu0 0
        %2043 = vmatpush1.bf16.msra.mxu0 %v2038
        %2044 = vmatprep.subr.bf16.mxu0 0
        %2045 = vmatpush1.bf16.msra.mxu0 %v2039
        %2046 = vmatprep.subr.bf16.mxu0 0
        %2047 = vmatpush1.bf16.msra.mxu0 0
        %2048 = vmatprep.subr.bf16.mxu0 0
        %2049 = vmatpush1.bf16.msra.mxu0 0
        %2050 = vmatprep.subr.bf16.mxu0 0
        %2051 = vmatpush1.bf16.msra.mxu0 0
        %2052 = vmatprep.subr.bf16.mxu0 0
        %2053 = vmatpush1.bf16.msra.mxu0 0
        %2054 = vmatprep.subr.bf16.mxu0 0
        %2055 = vmatpush1.bf16.msra.mxu0 0
        %2056 = vmatprep.subr.bf16.mxu0 0
        %2057 = vmatpush1.bf16.msra.mxu0 0
        %2058 = vmatprep.subr.bf16.mxu0 0
        %2059 = vmatpush1.bf16.msra.mxu0 0
        %2060 = vmatprep.subr.bf16.mxu0 0
        %2061 = vmatpush1.bf16.msra.mxu0 0
        %2062 = vmatprep.subr.bf16.mxu0 0
        %2063 = vmatpush1.bf16.msra.mxu0 0
        %2064 = vmatprep.subr.bf16.mxu0 0
        %2065 = vmatpush1.bf16.msra.mxu0 0
        %2066 = vmatprep.subr.bf16.mxu0 0
        %2067 = vmatpush1.bf16.msra.mxu0 0
        %2068 = vmatprep.subr.bf16.mxu0 0
        %2069 = vmatpush1.bf16.msra.mxu0 0
        %2070 = vmatprep.subr.bf16.mxu0 0
        %2071 = vmatpush1.bf16.msra.mxu0 0
        %2072 = vmatprep.subr.bf16.mxu0 0
        %2073 = vmatpush1.bf16.msra.mxu0 0
        %2074 = vmatprep.mubr.bf16.mxu0 0
        %2075 = vmatmul.mubr.bf16.gmra.mrb[0].mxu0 %v1808
        %v2076 = vpop.f32.mrb[0].mxu0
        %v2077 = vadd.f32 %v2028, %v2076
        %v2078 = vpop.f32.mrb[0].mxu0
        %v2079 = vpop.f32.mrb[0].mxu0
        %v2080 = vadd.f32 %v2028, %v2079
        %v2081 = vpop.f32.mrb[0].mxu0
        %2082 = vdwg.mxu0
        %v2083 = vld [vmem:[%s37] sm:$0x1]
        %v2085 = vlaneseq
        %v2086 = vshrl.u32 %v2085, 7
        %v2087 = vsub.s32 0, %v2086
        %v2088 = vrot.slane %v2083, %v2087
        %v2090 = vmul.f32 %v1939, %v2088
        %v2091 = vmul.f32 %v1940, %v2088
        %v2092 = vld [vmem:[%s39] sm:$0x1]
        %v2094 = vlaneseq
        %v2095 = vshrl.u32 %v2094, 7
        %v2096 = vsub.s32 0, %v2095
        %v2097 = vrot.slane %v2092, %v2096
        %v2099 = vadd.f32 %v2090, %v2097
        %v2100 = vadd.f32 %v2091, %v2097
        %v2101 = vld [vmem:[%s41] sm:$0x1]
        %v2103 = vlaneseq
        %v2104 = vshrl.u32 %v2103, 7
        %v2105 = vsub.s32 0, %v2104
        %v2106 = vrot.slane %v2101, %v2105
        %v2108 = vmul.f32 %v1939, %v2106
        %v2109 = vmul.f32 %v1940, %v2106
        %v2110 = vld [vmem:[%s43] sm:$0x1]
        %v2112 = vlaneseq
        %v2113 = vshrl.u32 %v2112, 7
        %v2114 = vsub.s32 0, %v2113
        %v2115 = vrot.slane %v2110, %v2114
        %v2117 = vadd.f32 %v2108, %v2115
        %v2118 = vadd.f32 %v2109, %v2115
        %v2119 = vpack.c.bf16 %v2100, %v2099
        %v2120 = vpack.c.bf16 %v2118, %v2117
        %v2121 = vld [vmem:[%s45] sm:$0xff]
        %v2122 = vld [vmem:[%s45 + $0x8] sm:$0xff]
        %vm2123 = vcmask 130048
        %v2125 = vsel %vm2123, %v2119, 0
        %v2128 = vsel %vm2123, %v2120, 0
        %2130 = vmatprep.subr.bf16.mxu0 0
        %2131 = vmatpush1.bf16.xpose.msra.mxu0 %v2128
        %2132 = vmatprep.subr.bf16.mxu0 0
        %2133 = vmatpush1.bf16.xpose.msra.mxu0 0
        %2134 = vmatprep.subr.bf16.mxu0 0
        %2135 = vmatpush1.bf16.xpose.msra.mxu0 0
        %2136 = vmatprep.subr.bf16.mxu0 0
        %2137 = vmatpush1.bf16.xpose.msra.mxu0 0
        %2138 = vmatprep.subr.bf16.mxu0 0
        %2139 = vmatpush1.bf16.xpose.msra.mxu0 0
        %2140 = vmatprep.subr.bf16.mxu0 0
        %2141 = vmatpush1.bf16.xpose.msra.mxu0 0
        %2142 = vmatprep.subr.bf16.mxu0 0
        %2143 = vmatpush1.bf16.xpose.msra.mxu0 0
        %2144 = vmatprep.subr.bf16.mxu0 0
        %2145 = vmatpush1.bf16.xpose.msra.mxu0 0
        %2146 = vmatprep.subr.bf16.mxu0 0
        %2147 = vmatpush1.bf16.xpose.msra.mxu0 0
        %2148 = vmatprep.subr.bf16.mxu0 0
        %2149 = vmatpush1.bf16.xpose.msra.mxu0 0
        %2150 = vmatprep.subr.bf16.mxu0 0
        %2151 = vmatpush1.bf16.xpose.msra.mxu0 0
        %2152 = vmatprep.subr.bf16.mxu0 0
        %2153 = vmatpush1.bf16.xpose.msra.mxu0 0
        %2154 = vmatprep.subr.bf16.mxu0 0
        %2155 = vmatpush1.bf16.xpose.msra.mxu0 0
        %2156 = vmatprep.subr.bf16.mxu0 0
        %2157 = vmatpush1.bf16.xpose.msra.mxu0 0
        %2158 = vmatprep.subr.bf16.mxu0 0
        %2159 = vmatpush1.bf16.xpose.msra.mxu0 0
        %2160 = vmatprep.subr.bf16.mxu0 0
        %2161 = vmatpush1.bf16.xpose.msra.mxu0 0
        %2162 = vmatprep.mubr.bf16.mxu0 0
        %2163 = vmatmul.mubr.bf16.gmra.mrb[0].mxu0 %v2125
        %v2164 = vpop.f32.mrb[0].mxu0
        %v2165 = vadd.f32 %v2121, %v2164
        %v2166 = vpop.f32.mrb[0].mxu0
        %v2167 = vpop.f32.mrb[0].mxu0
        %v2168 = vadd.f32 %v2122, %v2167
        %v2169 = vpop.f32.mrb[0].mxu0
        %2170 = vdwg.mxu0
        %v2171 = vsel %vm2123, %v2165, -inf
        %2172 = vmax.xlane.f32.xlu0 %v2171
        %v2173 = vpop.xlane.xlu0 %2172
        %v2174 = vsel %vm2123, %v2168, -inf
        %2175 = vmax.xlane.f32.xlu0 %v2174
        %v2176 = vpop.xlane.xlu0 %2175
        %v2177 = vsub.f32 %v2165, %v2173
        %v2178 = vsub.f32 %v2168, %v2176
        %v2179 = vmul.f32 %v2177, 1.442695
        %v2180 = vpow.pop %v2179
        %v2181 = vmul.f32 %v2178, 1.442695
        %v2182 = vpow.pop %v2181
        %v2183 = vsel %vm2123, %v2180, 0.0
        %2184 = vadd.xlane.f32.xlu0 %v2183
        %v2185 = vpop.xlane.xlu0 %2184
        %v2186 = vsel %vm2123, %v2182, 0.0
        %2187 = vadd.xlane.f32.xlu0 %v2186
        %v2188 = vpop.xlane.xlu0 %2187
        %v2189 = vrcp.pop %v2185
        %v2190 = vrcp.pop %v2188
        %v2191 = vmul.f32 %v2180, %v2189
        %v2192 = vmul.f32 %v2182, %v2190
        %v2193 = vpack.c.bf16 %v2192, %v2191
        %v2194 = vpack.c.bf16 %v1783, %v1782
        %v2196 = vsel %vm2123, %v2193, 0
        %2198 = vmatprep.subr.bf16.mxu0 0
        %2199 = vmatpush1.bf16.msra.mxu0 %v2194
        %2200 = vmatprep.subr.bf16.mxu0 0
        %2201 = vmatpush1.bf16.msra.mxu0 0
        %2202 = vmatprep.subr.bf16.mxu0 0
        %2203 = vmatpush1.bf16.msra.mxu0 0
        %2204 = vmatprep.subr.bf16.mxu0 0
        %2205 = vmatpush1.bf16.msra.mxu0 0
        %2206 = vmatprep.subr.bf16.mxu0 0
        %2207 = vmatpush1.bf16.msra.mxu0 0
        %2208 = vmatprep.subr.bf16.mxu0 0
        %2209 = vmatpush1.bf16.msra.mxu0 0
        %2210 = vmatprep.subr.bf16.mxu0 0
        %2211 = vmatpush1.bf16.msra.mxu0 0
        %2212 = vmatprep.subr.bf16.mxu0 0
        %2213 = vmatpush1.bf16.msra.mxu0 0
        %2214 = vmatprep.subr.bf16.mxu0 0
        %2215 = vmatpush1.bf16.msra.mxu0 0
        %2216 = vmatprep.subr.bf16.mxu0 0
        %2217 = vmatpush1.bf16.msra.mxu0 0
        %2218 = vmatprep.subr.bf16.mxu0 0
        %2219 = vmatpush1.bf16.msra.mxu0 0
        %2220 = vmatprep.subr.bf16.mxu0 0
        %2221 = vmatpush1.bf16.msra.mxu0 0
        %2222 = vmatprep.subr.bf16.mxu0 0
        %2223 = vmatpush1.bf16.msra.mxu0 0
        %2224 = vmatprep.subr.bf16.mxu0 0
        %2225 = vmatpush1.bf16.msra.mxu0 0
        %2226 = vmatprep.subr.bf16.mxu0 0
        %2227 = vmatpush1.bf16.msra.mxu0 0
        %2228 = vmatprep.subr.bf16.mxu0 0
        %2229 = vmatpush1.bf16.msra.mxu0 0
        %2230 = vmatprep.mubr.bf16.mxu0 0
        %2231 = vmatmul.mubr.bf16.gmra.mrb[0].mxu0 %v2196
        %v2232 = vpop.f32.mrb[0].mxu0
        %v2233 = vadd.f32 0.0, %v2232
        %v2234 = vpop.f32.mrb[0].mxu0
        %v2235 = vpop.f32.mrb[0].mxu0
        %v2236 = vadd.f32 0.0, %v2235
        %v2237 = vpop.f32.mrb[0].mxu0
        %2238 = vdwg.mxu0
        %v2239 = vmul.f32 %v2233, %v2017
        %v2240 = vmul.f32 %v2236, %v2018
        %v2241 = vpack.c.bf16 %v2240, %v2239
        %v2242 = vld [vmem:[%s47] sm:$0xf]
        %v2243 = vld [vmem:[%s47 + $0x4] sm:$0xf]
        %v2244 = vld [vmem:[%s47 + $0x8] sm:$0xf]
        %v2245 = vld [vmem:[%s47 + $0xc] sm:$0xf]
        %v2246 = vld [vmem:[%s47 + $0x10] sm:$0xf]
        %v2247 = vld [vmem:[%s47 + $0x14] sm:$0xf]
        %v2248 = vld [vmem:[%s47 + $0x18] sm:$0xf]
        %v2249 = vld [vmem:[%s47 + $0x1c] sm:$0xf]
        %v2250 = vld [vmem:[%s49] sm:$0x1]
        %v2252 = vlaneseq
        %v2253 = vshrl.u32 %v2252, 7
        %v2254 = vsub.s32 0, %v2253
        %v2255 = vrot.slane %v2250, %v2254
        %v2265 = vunpack.c.l.b16 %v2242
        %v2266 = vunpack.c.l.b16 %v2243
        %v2267 = vunpack.c.l.b16 %v2244
        %v2268 = vunpack.c.l.b16 %v2245
        %v2269 = vunpack.c.l.b16 %v2246
        %v2270 = vunpack.c.l.b16 %v2247
        %v2271 = vunpack.c.l.b16 %v2248
        %v2272 = vunpack.c.l.b16 %v2249
        %v2273 = vpack.c.b16 %v2266, %v2265
        %v2274 = vpack.c.b16 %v2268, %v2267
        %v2275 = vpack.c.b16 %v2270, %v2269
        %v2276 = vpack.c.b16 %v2272, %v2271
        %vm2281 = vcmask 523264
        %v2283 = vsel %vm2281, %v2241, 0
        %2285 = vmatprep.subr.bf16.mxu0 0
        %2286 = vmatpush1.bf16.msra.mxu0 %v2273
        %2287 = vmatprep.subr.bf16.mxu0 0
        %2288 = vmatpush1.bf16.msra.mxu0 %v2274
        %2289 = vmatprep.subr.bf16.mxu0 0
        %2290 = vmatpush1.bf16.msra.mxu0 %v2275
        %2291 = vmatprep.subr.bf16.mxu0 0
        %2292 = vmatpush1.bf16.msra.mxu0 %v2276
        %2293 = vmatprep.subr.bf16.mxu0 0
        %2294 = vmatpush1.bf16.msra.mxu0 0
        %2295 = vmatprep.subr.bf16.mxu0 0
        %2296 = vmatpush1.bf16.msra.mxu0 0
        %2297 = vmatprep.subr.bf16.mxu0 0
        %2298 = vmatpush1.bf16.msra.mxu0 0
        %2299 = vmatprep.subr.bf16.mxu0 0
        %2300 = vmatpush1.bf16.msra.mxu0 0
        %2301 = vmatprep.subr.bf16.mxu0 0
        %2302 = vmatpush1.bf16.msra.mxu0 0
        %2303 = vmatprep.subr.bf16.mxu0 0
        %2304 = vmatpush1.bf16.msra.mxu0 0
        %2305 = vmatprep.subr.bf16.mxu0 0
        %2306 = vmatpush1.bf16.msra.mxu0 0
        %2307 = vmatprep.subr.bf16.mxu0 0
        %2308 = vmatpush1.bf16.msra.mxu0 0
        %2309 = vmatprep.subr.bf16.mxu0 0
        %2310 = vmatpush1.bf16.msra.mxu0 0
        %2311 = vmatprep.subr.bf16.mxu0 0
        %2312 = vmatpush1.bf16.msra.mxu0 0
        %2313 = vmatprep.subr.bf16.mxu0 0
        %2314 = vmatpush1.bf16.msra.mxu0 0
        %2315 = vmatprep.subr.bf16.mxu0 0
        %2316 = vmatpush1.bf16.msra.mxu0 0
        %2317 = vmatprep.mubr.bf16.mxu0 0
        %2318 = vmatmul.mubr.bf16.gmra.mrb[0].mxu0 %v2283
        %v2319 = vpop.f32.mrb[0].mxu0
        %v2320 = vadd.f32 %v2255, %v2319
        %v2321 = vpop.f32.mrb[0].mxu0
        %v2322 = vpop.f32.mrb[0].mxu0
        %v2323 = vadd.f32 %v2255, %v2322
        %v2324 = vpop.f32.mrb[0].mxu0
        %2325 = vdwg.mxu0
        %v2326 = vadd.f32 %v2077, %v2320
        %v2327 = vadd.f32 %v2080, %v2323
        %v2328 = vxor.u32 %v2326, 2147483648
        %v2329 = vxor.u32 %v2327, 2147483648
        %v2330 = vmul.f32 %v2328, 1.442695
        %v2331 = vpow.pop %v2330
        %v2332 = vmul.f32 %v2329, 1.442695
        %v2333 = vpow.pop %v2332
        %v2334 = vadd.f32 %v2331, 1.0
        %v2335 = vadd.f32 %v2333, 1.0
        %v2336 = vrcp.pop %v2334
        %v2337 = vmul.f32 1.0, %v2336
        %v2338 = vrcp.pop %v2335
        %v2339 = vmul.f32 1.0, %v2338
        %v2340 = vmul.f32 %v2326, %v2337
        %v2341 = vmul.f32 %v2327, %v2339
        %v2342 = vsub.f32 %v2340, %v1115
        %v2343 = vsub.f32 %v2341, %v1116
        %v2344 = vmul.f32 %v1860, %v2342
        %v2345 = vmul.f32 %v1862, %v2343
        %v2346 = vadd.f32 %v1115, %v2344
        %v2347 = vadd.f32 %v1116, %v2345
        %v2348 = vld [vmem:[%s51] sm:$0x1]
        %v2349 = vld [vmem:[%s53] sm:$0x1]
        %v2350 = vsel %vm1725, %v2346, 0.0
        %2351 = vadd.xlane.f32.xlu0 %v2350
        %v2352 = vpop.xlane.xlu0 %2351
        %v2353 = vsel %vm1725, %v2347, 0.0
        %2354 = vadd.xlane.f32.xlu0 %v2353
        %v2355 = vpop.xlane.xlu0 %2354
        %v2356 = vrcp.pop 32.0
        %v2357 = vmul.f32 %v2352, %v2356
        %v2358 = vmul.f32 %v2355, %v2356
        %v2359 = vsub.f32 %v2346, %v2357
        %v2360 = vsub.f32 %v2347, %v2358
        %v2361 = vmul.f32 %v2359, %v2359
        %v2362 = vmul.f32 %v2360, %v2360
        %v2363 = vsel %vm1725, %v2361, 0.0
        %2364 = vadd.xlane.f32.xlu0 %v2363
        %v2365 = vpop.xlane.xlu0 %2364
        %v2366 = vsel %vm1725, %v2362, 0.0
        %2367 = vadd.xlane.f32.xlu0 %v2366
        %v2368 = vpop.xlane.xlu0 %2367
        %v2369 = vmul.f32 %v2365, %v2356
        %v2370 = vmul.f32 %v2368, %v2356
        %v2371 = vadd.f32 %v2369, 1e-05
        %v2372 = vadd.f32 %v2370, 1e-05
        %v2373 = vrsqrt.pop %v2371
        %v2374 = vrsqrt.pop %v2372
        %v2375 = vmul.f32 %v2359, %v2373
        %v2376 = vmul.f32 %v2360, %v2374
        %v2378 = vlaneseq
        %v2379 = vshrl.u32 %v2378, 7
        %v2380 = vsub.s32 0, %v2379
        %v2381 = vrot.slane %v2348, %v2380
        %v2383 = vmul.f32 %v2375, %v2381
        %v2384 = vmul.f32 %v2376, %v2381
        %v2386 = vlaneseq
        %v2387 = vshrl.u32 %v2386, 7
        %v2388 = vsub.s32 0, %v2387
        %v2389 = vrot.slane %v2349, %v2388
        %v2391 = vadd.f32 %v2383, %v2389
        %v2392 = vadd.f32 %v2384, %v2389
        %v2393 = vpack.c.bf16 %v2392, %v2391
        %v2394 = vld [vmem:[%s55] sm:$0xf]
        %v2395 = vld [vmem:[%s55 + $0x4] sm:$0xf]
        %v2396 = vld [vmem:[%s55 + $0x8] sm:$0xf]
        %v2397 = vld [vmem:[%s55 + $0xc] sm:$0xf]
        %v2398 = vld [vmem:[%s57] sm:$0x1]
        %v2400 = vlaneseq
        %v2401 = vshrl.u32 %v2400, 7
        %v2402 = vsub.s32 0, %v2401
        %v2403 = vrot.slane %v2398, %v2402
        %v2409 = vunpack.c.l.b16 %v2394
        %v2410 = vunpack.c.l.b16 %v2395
        %v2411 = vunpack.c.l.b16 %v2396
        %v2412 = vunpack.c.l.b16 %v2397
        %v2413 = vpack.c.b16 %v2410, %v2409
        %v2414 = vpack.c.b16 %v2412, %v2411
        %v2418 = vsel %vm1725, %v2393, 0
        %2420 = vmatprep.subr.bf16.mxu0 0
        %2421 = vmatpush1.bf16.msra.mxu0 %v2413
        %2422 = vmatprep.subr.bf16.mxu0 0
        %2423 = vmatpush1.bf16.msra.mxu0 %v2414
        %2424 = vmatprep.subr.bf16.mxu0 0
        %2425 = vmatpush1.bf16.msra.mxu0 0
        %2426 = vmatprep.subr.bf16.mxu0 0
        %2427 = vmatpush1.bf16.msra.mxu0 0
        %2428 = vmatprep.subr.bf16.mxu0 0
        %2429 = vmatpush1.bf16.msra.mxu0 0
        %2430 = vmatprep.subr.bf16.mxu0 0
        %2431 = vmatpush1.bf16.msra.mxu0 0
        %2432 = vmatprep.subr.bf16.mxu0 0
        %2433 = vmatpush1.bf16.msra.mxu0 0
        %2434 = vmatprep.subr.bf16.mxu0 0
        %2435 = vmatpush1.bf16.msra.mxu0 0
        %2436 = vmatprep.subr.bf16.mxu0 0
        %2437 = vmatpush1.bf16.msra.mxu0 0
        %2438 = vmatprep.subr.bf16.mxu0 0
        %2439 = vmatpush1.bf16.msra.mxu0 0
        %2440 = vmatprep.subr.bf16.mxu0 0
        %2441 = vmatpush1.bf16.msra.mxu0 0
        %2442 = vmatprep.subr.bf16.mxu0 0
        %2443 = vmatpush1.bf16.msra.mxu0 0
        %2444 = vmatprep.subr.bf16.mxu0 0
        %2445 = vmatpush1.bf16.msra.mxu0 0
        %2446 = vmatprep.subr.bf16.mxu0 0
        %2447 = vmatpush1.bf16.msra.mxu0 0
        %2448 = vmatprep.subr.bf16.mxu0 0
        %2449 = vmatpush1.bf16.msra.mxu0 0
        %2450 = vmatprep.subr.bf16.mxu0 0
        %2451 = vmatpush1.bf16.msra.mxu0 0
        %2452 = vmatprep.mubr.bf16.mxu0 0
        %2453 = vmatmul.mubr.bf16.gmra.mrb[0].mxu0 %v2418
        %v2454 = vpop.f32.mrb[0].mxu0
        %v2455 = vadd.f32 %v2403, %v2454
        %v2456 = vpop.f32.mrb[0].mxu0
        %v2457 = vpop.f32.mrb[0].mxu0
        %v2458 = vadd.f32 %v2403, %v2457
        %v2459 = vpop.f32.mrb[0].mxu0
        %2460 = vdwg.mxu0
        %v2461 = vxor.u32 %v2455, 2147483648
        %v2462 = vxor.u32 %v2458, 2147483648
        %v2463 = vmul.f32 %v2461, 1.442695
        %v2464 = vpow.pop %v2463
        %v2465 = vmul.f32 %v2462, 1.442695
        %v2466 = vpow.pop %v2465
        %v2467 = vadd.f32 %v2464, 1.0
        %v2468 = vadd.f32 %v2466, 1.0
        %v2469 = vrcp.pop %v2467
        %v2470 = vmul.f32 1.0, %v2469
        %v2471 = vrcp.pop %v2468
        %v2472 = vmul.f32 1.0, %v2471
        %v2473 = vmul.f32 %v2455, %v2470
        %v2474 = vmul.f32 %v2458, %v2472
        %v2475 = vpack.c.bf16 %v2474, %v2473
        %v2476 = vld [vmem:[%s59] sm:$0xf]
        %v2477 = vld [vmem:[%s59 + $0x4] sm:$0xf]
        %v2478 = vld [vmem:[%s59 + $0x8] sm:$0xf]
        %v2479 = vld [vmem:[%s59 + $0xc] sm:$0xf]
        %v2480 = vld [vmem:[%s59 + $0x10] sm:$0xf]
        %v2481 = vld [vmem:[%s59 + $0x14] sm:$0xf]
        %v2482 = vld [vmem:[%s59 + $0x18] sm:$0xf]
        %v2483 = vld [vmem:[%s59 + $0x1c] sm:$0xf]
        %v2484 = vld [vmem:[%s61] sm:$0x1]
        %v2486 = vlaneseq
        %v2487 = vshrl.u32 %v2486, 7
        %v2488 = vsub.s32 0, %v2487
        %v2489 = vrot.slane %v2484, %v2488
        %v2499 = vunpack.c.l.b16 %v2476
        %v2500 = vunpack.c.l.b16 %v2477
        %v2501 = vunpack.c.l.b16 %v2478
        %v2502 = vunpack.c.l.b16 %v2479
        %v2503 = vunpack.c.l.b16 %v2480
        %v2504 = vunpack.c.l.b16 %v2481
        %v2505 = vunpack.c.l.b16 %v2482
        %v2506 = vunpack.c.l.b16 %v2483
        %v2507 = vpack.c.b16 %v2500, %v2499
        %v2508 = vpack.c.b16 %v2502, %v2501
        %v2509 = vpack.c.b16 %v2504, %v2503
        %v2510 = vpack.c.b16 %v2506, %v2505
        %v2516 = vsel %vm2281, %v2475, 0
        %2518 = vmatprep.subr.bf16.mxu0 0
        %2519 = vmatpush1.bf16.msra.mxu0 %v2507
        %2520 = vmatprep.subr.bf16.mxu0 0
        %2521 = vmatpush1.bf16.msra.mxu0 %v2508
        %2522 = vmatprep.subr.bf16.mxu0 0
        %2523 = vmatpush1.bf16.msra.mxu0 %v2509
        %2524 = vmatprep.subr.bf16.mxu0 0
        %2525 = vmatpush1.bf16.msra.mxu0 %v2510
        %2526 = vmatprep.subr.bf16.mxu0 0
        %2527 = vmatpush1.bf16.msra.mxu0 0
        %2528 = vmatprep.subr.bf16.mxu0 0
        %2529 = vmatpush1.bf16.msra.mxu0 0
        %2530 = vmatprep.subr.bf16.mxu0 0
        %2531 = vmatpush1.bf16.msra.mxu0 0
        %2532 = vmatprep.subr.bf16.mxu0 0
        %2533 = vmatpush1.bf16.msra.mxu0 0
        %2534 = vmatprep.subr.bf16.mxu0 0
        %2535 = vmatpush1.bf16.msra.mxu0 0
        %2536 = vmatprep.subr.bf16.mxu0 0
        %2537 = vmatpush1.bf16.msra.mxu0 0
        %2538 = vmatprep.subr.bf16.mxu0 0
        %2539 = vmatpush1.bf16.msra.mxu0 0
        %2540 = vmatprep.subr.bf16.mxu0 0
        %2541 = vmatpush1.bf16.msra.mxu0 0
        %2542 = vmatprep.subr.bf16.mxu0 0
        %2543 = vmatpush1.bf16.msra.mxu0 0
        %2544 = vmatprep.subr.bf16.mxu0 0
        %2545 = vmatpush1.bf16.msra.mxu0 0
        %2546 = vmatprep.subr.bf16.mxu0 0
        %2547 = vmatpush1.bf16.msra.mxu0 0
        %2548 = vmatprep.subr.bf16.mxu0 0
        %2549 = vmatpush1.bf16.msra.mxu0 0
        %2550 = vmatprep.mubr.bf16.mxu0 0
        %2551 = vmatmul.mubr.bf16.gmra.mrb[0].mxu0 %v2516
        %v2552 = vpop.f32.mrb[0].mxu0
        %v2553 = vadd.f32 %v2489, %v2552
        %v2554 = vpop.f32.mrb[0].mxu0
        %v2555 = vpop.f32.mrb[0].mxu0
        %v2556 = vadd.f32 %v2489, %v2555
        %v2557 = vpop.f32.mrb[0].mxu0
        %2558 = vdwg.mxu0
        %v2559 = vadd.f32 %v2553, %v2391
        %v2560 = vadd.f32 %v2556, %v2392
        %v2561 = vld [vmem:[%s63] sm:$0x1]
        %v2562 = vld [vmem:[%s65] sm:$0x1]
        %v2563 = vsel %vm1725, %v2559, 0.0
        %2564 = vadd.xlane.f32.xlu0 %v2563
        %v2565 = vpop.xlane.xlu0 %2564
        %v2566 = vsel %vm1725, %v2560, 0.0
        %2567 = vadd.xlane.f32.xlu0 %v2566
        %v2568 = vpop.xlane.xlu0 %2567
        %v2569 = vmul.f32 %v2565, %v2356
        %v2570 = vmul.f32 %v2568, %v2356
        %v2571 = vsub.f32 %v2559, %v2569
        %v2572 = vsub.f32 %v2560, %v2570
        %v2573 = vmul.f32 %v2571, %v2571
        %v2574 = vmul.f32 %v2572, %v2572
        %v2575 = vsel %vm1725, %v2573, 0.0
        %2576 = vadd.xlane.f32.xlu0 %v2575
        %v2577 = vpop.xlane.xlu0 %2576
        %v2578 = vsel %vm1725, %v2574, 0.0
        %2579 = vadd.xlane.f32.xlu0 %v2578
        %v2580 = vpop.xlane.xlu0 %2579
        %v2581 = vmul.f32 %v2577, %v2356
        %v2582 = vmul.f32 %v2580, %v2356
        %v2583 = vadd.f32 %v2581, 1e-05
        %v2584 = vadd.f32 %v2582, 1e-05
        %v2585 = vrsqrt.pop %v2583
        %v2586 = vrsqrt.pop %v2584
        %v2587 = vmul.f32 %v2571, %v2585
        %v2588 = vmul.f32 %v2572, %v2586
        %v2590 = vlaneseq
        %v2591 = vshrl.u32 %v2590, 7
        %v2592 = vsub.s32 0, %v2591
        %v2593 = vrot.slane %v2561, %v2592
        %v2595 = vmul.f32 %v2587, %v2593
        %v2596 = vmul.f32 %v2588, %v2593
        %v2598 = vlaneseq
        %v2599 = vshrl.u32 %v2598, 7
        %v2600 = vsub.s32 0, %v2599
        %v2601 = vrot.slane %v2562, %v2600
        %v2603 = vadd.f32 %v2595, %v2601
        %v2604 = vadd.f32 %v2596, %v2601
        %2605 = vst.msk [vmem:[%s1108] sm:$0xff] %vm1725, %v2603
        %2606 = vst.msk [vmem:[%s1108 + $0x8] sm:$0xff] %vm1725, %v2604
        %s2607 = sand.u32 %s792, 1
        %s2608 = scalar_lea.sflag [#allocation6], %s2607
        %s2609 = sand.u32 %s792, 1
        %s2610 = smul.addr %s2609, 16
        %s2611 = scalar_lea.vmem [#allocation18], %s2610
        // Predicated region
        $region185: #{tpu_custom_call.1} parent=151 // pred_check
          %p2612 = pneg %p802
        $region186: #{tpu_custom_call.1} parent=151 // pred_check_branch
          %2614 = sbr.rel (%p2612) target = $region188
        $region187: #{tpu_custom_call.1} parent=151 // pred_region
          %s2616 = ssub.s32 256, 256
          %2617 = vsyncadd %s2608, %s2616
          %s2618 = smul.addr %s86, 2
          %s2619 = smul.addr %s2618, 128
          %s2620 = scalar_lea.hbm %s67, %s2619
          %s2621 = sshll.u32 %s2611, 4
          %s2622 = int_to_ptr.vmem [resolvable:$true] %s2621
          %2627 = dma.vmem_to_hbm [thread:$0]  %s2622, 256, %s2620, %s2608, 128, 128, 8
        $region188: #{tpu_custom_call.1} parent=151 // pred_fallthru
          _
      $region152: #{tpu_custom_call.1} parent=5 // pred_fallthru
        _
      %p2628 = scmp.le.s32.totalorder 2, %s81
      // Predicated region
      $region189: #{tpu_custom_call.1} parent=5 // pred_check
        %p2629 = pneg %p2628
      $region190: #{tpu_custom_call.1} parent=5 // pred_check_branch
        %2631 = sbr.rel (%p2629) target = $region192
      $region191: #{tpu_custom_call.1} parent=5 // pred_region
        %s2632 = ssub.s32 %s81, 2
        // Predicated region
        $region193: #{tpu_custom_call.1} parent=191 // pred_check
          %p2633 = pneg %p808
        $region194: #{tpu_custom_call.1} parent=191 // pred_check_branch
          %2635 = sbr.rel (%p2633) target = $region196
        $region195: #{tpu_custom_call.1} parent=191 // pred_region
          %s2636 = sand.u32 %s793, 1
          %s2637 = scalar_lea.sflag [#allocation6], %s2636
          %s2638 = sand.u32 %s793, 1
          %s2639 = smul.addr %s2638, 16
          %s2640 = scalar_lea.vmem [#allocation18], %s2639
          %2641 = dma.done %s2637, 256
        $region196: #{tpu_custom_call.1} parent=191 // pred_fallthru
          _
      $region192: #{tpu_custom_call.1} parent=5 // pred_fallthru
        _
    $region6: #{tpu_custom_call.1} parent=1 // loop_footer
      %s85 = sadd.s32 1, %s81
    $region7: #{tpu_custom_call.1} parent=1 // loop_footer_branch
      %80 = sbr.rel target = $region3
    $region8: #{tpu_custom_call.1} parent=1 // loop_exit
      _
    %2642 = vsyncpa [#allocation5], 1
    %s2643 = scalar_lea.sflag [#allocation5], 1
    %2644 = vsyncpa %s2643, 1
    %2645 = vsyncpa [#allocation8], 1
    %2646 = vsyncpa [#allocation11], 1
    %2647 = vsyncpa [#allocation14], 1
    %2648 = vsyncpa [#allocation17], 1
    %2649 = vsyncpa [#allocation6], 1
    %s2650 = scalar_lea.sflag [#allocation6], 1
    %2651 = vsyncpa %s2650, 1

</llo_original>
